<compile_context>
chip_gen: v6e
topology: v6e:2x2x1
jax: 0.10.0
libtpu: 0.0.40
codegen_flags: <defaults>
</compile_context>

<pallas_src>
import jax
import jax.numpy as jnp
from jax.experimental import pallas as pl
from jax.experimental.pallas import tpu as pltpu

D_IN, D_H, D_Z = 784, 400, 50        # true (torch) feature sizes
P_H, P_Z = 512, 128                  # lane-padded hidden / latent sizes


def vae_kernel(x_ref, e_ref,
               w1_ref, b1_ref, w2_ref, b2_ref,
               w3_ref, b3_ref, w4_ref, b4_ref,
               out_ref):
    # x tile: (TB, 784) f32 straight from HBM; cast to bf16 for the MXU.
    x = x_ref[...].astype(jnp.bfloat16)

    # encode: fc1 + relu (f32 accumulation, f32 elementwise)
    h1 = jnp.dot(x, w1_ref[...], preferred_element_type=jnp.float32) + b1_ref[...]
    h1 = jnp.maximum(h1, 0.0)                                    # (TB, 512) f32

    # fc2 (the module applies the same layer for u and s, so u == s)
    u = jnp.dot(h1.astype(jnp.bfloat16), w2_ref[...],
                preferred_element_type=jnp.float32) + b2_ref[...]   # (TB, 128)

    # reparameterization: z = u + s*e with s == u  ->  z = u * (1 + e)
    z = u * (1.0 + e_ref[...].astype(jnp.float32))               # (TB, 128) f32

    # decode: fc3 + relu
    h3 = jnp.dot(z.astype(jnp.bfloat16), w3_ref[...],
                 preferred_element_type=jnp.float32) + b3_ref[...]
    h3 = jnp.maximum(h3, 0.0)                                    # (TB, 512) f32

    # fc4 + sigmoid; store bf16 at the true 784-wide output
    logits = jnp.dot(h3.astype(jnp.bfloat16), w4_ref[...],
                     preferred_element_type=jnp.float32) + b4_ref[...]
    out_ref[...] = jax.nn.sigmoid(logits).astype(out_ref.dtype)  # (TB, 784)


def _pad2d(a, rows, cols, dtype):
    """Zero-pad a 2-D array to (rows, cols) and cast."""
    out = jnp.zeros((rows, cols), dtype)
    return out.at[:a.shape[0], :a.shape[1]].set(a.astype(dtype))


def prepare_params(params):
    """Pad only the hidden/latent dims (with zeros); weights -> bf16,
    biases -> f32 (1, n).  Runs once; padded weights total ~1.9 MiB."""
    return dict(
        w1=_pad2d(params["w1"], D_IN, P_H, jnp.bfloat16),
        b1=_pad2d(params["b1"], 1, P_H, jnp.float32),
        w2=_pad2d(params["w2"], P_H, P_Z, jnp.bfloat16),
        b2=_pad2d(params["b2"], 1, P_Z, jnp.float32),
        w3=_pad2d(params["w3"], P_Z, P_H, jnp.bfloat16),
        b3=_pad2d(params["b3"], 1, P_H, jnp.float32),
        w4=_pad2d(params["w4"], P_H, D_IN, jnp.bfloat16),
        b4=_pad2d(params["b4"], 1, D_IN, jnp.float32),
    )


def _batch_tiling(B):
    """Pick (tile_rows, padded_batch).  Tile rows are a multiple of 16 (bf16
    output sublane packing); batches above 256 rows always get >= 2 grid
    steps so the batch-parallel axis can use both v7x TensorCores, and the
    tile is capped at 512 rows (~14 MiB total VMEM footprint)."""
    b = ((B + 15) // 16) * 16
    if b <= 256:
        return b, b                               # single tile, small batch
    n_tiles = max(2, -(-b // 512))                # >= 2 tiles, tile <= 512
    tb = ((-(-b // n_tiles) + 15) // 16) * 16
    return tb, n_tiles * tb


def vae_forward(x_img, e, padded_params):
    """x_img: (B, 1, 28, 28) f32; e: (B, 50) f32; params from prepare_params."""
    B = x_img.shape[0]
    x = x_img.reshape(B, D_IN)                    # x.view(-1, 784); stays f32

    TB, B_pad = _batch_tiling(B)
    n_tiles = B_pad // TB

    if B_pad != B:                                # rows only; no-op when aligned
        x = jnp.pad(x, ((0, B_pad - B), (0, 0)))
    # e is a tiny stream (~256 B/row): lane-pad with zeros in the wrapper, bf16.
    e_p = jnp.zeros((B_pad, P_Z), jnp.bfloat16).at[:B, :D_Z].set(
        e.astype(jnp.bfloat16))

    p = padded_params
    weights = (p["w1"], p["b1"], p["w2"], p["b2"],
               p["w3"], p["b3"], p["w4"], p["b4"])

    in_specs = [
        pl.BlockSpec((TB, D_IN), lambda i: (i, 0)),   # x  (f32, true width)
        pl.BlockSpec((TB, P_Z), lambda i: (i, 0)),    # e  (bf16)
        # Weights / biases: constant index_maps -> fetched once, VMEM resident.
        pl.BlockSpec((D_IN, P_H), lambda i: (0, 0)),  # w1
        pl.BlockSpec((1, P_H), lambda i: (0, 0)),     # b1
        pl.BlockSpec((P_H, P_Z), lambda i: (0, 0)),   # w2
        pl.BlockSpec((1, P_Z), lambda i: (0, 0)),     # b2
        pl.BlockSpec((P_Z, P_H), lambda i: (0, 0)),   # w3
        pl.BlockSpec((1, P_H), lambda i: (0, 0)),     # b3
        pl.BlockSpec((P_H, D_IN), lambda i: (0, 0)),  # w4
        pl.BlockSpec((1, D_IN), lambda i: (0, 0)),    # b4
    ]

    n_weight_elems = D_IN * P_H + P_H * P_Z + P_Z * P_H + P_H * D_IN
    flops = 2 * B_pad * n_weight_elems
    bytes_accessed = (2 * n_weight_elems + 4 * (P_H + P_Z + P_H + D_IN)
                      + B_pad * (4 * D_IN + 2 * P_Z + 2 * D_IN))

    out = pl.pallas_call(
        vae_kernel,
        out_shape=jax.ShapeDtypeStruct((B_pad, D_IN), jnp.bfloat16),
        grid=(n_tiles,),
        in_specs=in_specs,
        out_specs=pl.BlockSpec((TB, D_IN), lambda i: (i, 0)),
        compiler_params=pltpu.CompilerParams(
            dimension_semantics=("parallel",),
            vmem_limit_bytes=32 * 1024 * 1024),
        cost_estimate=pl.CostEstimate(
            flops=flops,
            transcendentals=B_pad * D_IN,             # sigmoid exp
            bytes_accessed=bytes_accessed),
    )(x, e_p, *weights)

    # Output is already 784 wide; only padded batch rows (if any) are dropped.
    return out if B_pad == B else out[:B]


def vae_reference(x_img, e, params):
    """Pure-JAX f32 reference matching the PyTorch module."""
    x = x_img.reshape(x_img.shape[0], D_IN)
    h1 = jnp.maximum(x @ params["w1"] + params["b1"], 0.0)
    u = h1 @ params["w2"] + params["b2"]
    s = u                                           # same fc2 applied twice
    z = u + s * e
    h3 = jnp.maximum(z @ params["w3"] + params["b3"], 0.0)
    return jax.nn.sigmoid(h3 @ params["w4"] + params["b4"])


def init_params(key):
    """Deterministic init; weights stored (in, out) so y = x @ W + b
    (equivalent to torch's x @ W.T + b)."""
    dims = [(D_IN, D_H), (D_H, D_Z), (D_Z, D_H), (D_H, D_IN)]
    params = {}
    for idx, (fin, fout) in enumerate(dims, start=1):
        key, kw, kb = jax.random.split(key, 3)
        bound = 1.0 / jnp.sqrt(fin)   # nn.Linear default U(-1/sqrt(in), 1/sqrt(in))
        params[f"w{idx}"] = jax.random.uniform(
            kw, (fin, fout), jnp.float32, minval=-bound, maxval=bound)
        params[f"b{idx}"] = jax.random.uniform(
            kb, (1, fout), jnp.float32, minval=-bound, maxval=bound)
    return params


if __name__ == "__main__":
    key = jax.random.PRNGKey(0)
    k_param, k_x, k_e = jax.random.split(key, 3)

    params = init_params(k_param)
    padded_params = prepare_params(params)

    B = 2
    x = jax.random.uniform(k_x, (B, 1, 28, 28), jnp.float32)   # MNIST-like input
    # TODO(synk): the module draws e = torch.randn(u.size()) inside forward();
    # the noise is supplied as an explicit, deterministic input here.
    e = jax.random.normal(k_e, (B, D_Z), jnp.float32)

    out = vae_forward(x, e, padded_params)
    out = jax.block_until_ready(out)

    assert out.shape == (B, D_IN)
    assert bool(jnp.all(jnp.isfinite(out)))
    assert bool(jnp.all((out >= 0.0) & (out <= 1.0)))    # sigmoid output range

    # Tolerance check against the f32 reference (bf16 MXU/output path).
    ref = vae_reference(x, e, params)
    max_err = float(jnp.max(jnp.abs(out.astype(jnp.float32) - ref)))
    assert max_err < 5e-2, f"max abs error vs f32 reference: {max_err}"

    print("KERNEL_OK")
</pallas_src>

<mosaic_0001>
module attributes {stable_mosaic.version = 11 : i64} {
  func.func @vae_kernel(%arg0: i32, %arg1: memref<16x784xf32, #tpu.memory_space<vmem>>, %arg2: memref<16x128xbf16, #tpu.memory_space<vmem>>, %arg3: memref<784x512xbf16, #tpu.memory_space<vmem>>, %arg4: memref<1x512xf32, #tpu.memory_space<vmem>>, %arg5: memref<512x128xbf16, #tpu.memory_space<vmem>>, %arg6: memref<1x128xf32, #tpu.memory_space<vmem>>, %arg7: memref<128x512xbf16, #tpu.memory_space<vmem>>, %arg8: memref<1x512xf32, #tpu.memory_space<vmem>>, %arg9: memref<512x784xbf16, #tpu.memory_space<vmem>>, %arg10: memref<1x784xf32, #tpu.memory_space<vmem>>, %arg11: memref<16x784xbf16, #tpu.memory_space<vmem>>) attributes {dimension_semantics = [#tpu.dimension_semantics<parallel>], iteration_bounds = array<i64: 1>, scalar_prefetch = 0 : i64, scratch_operands = 0 : i64, tpu.core_type = #tpu.core_type<tc>, window_params = [{transform_indices = @transform_0, window_bounds = array<i64: 16, 784>}, {transform_indices = @transform_1, window_bounds = array<i64: 16, 128>}, {pipeline_mode = #tpu.pipeline_mode<synchronous>, transform_indices = @transform_2, window_bounds = array<i64: 784, 512>}, {pipeline_mode = #tpu.pipeline_mode<synchronous>, transform_indices = @transform_3, window_bounds = array<i64: 1, 512>}, {pipeline_mode = #tpu.pipeline_mode<synchronous>, transform_indices = @transform_4, window_bounds = array<i64: 512, 128>}, {pipeline_mode = #tpu.pipeline_mode<synchronous>, transform_indices = @transform_5, window_bounds = array<i64: 1, 128>}, {pipeline_mode = #tpu.pipeline_mode<synchronous>, transform_indices = @transform_6, window_bounds = array<i64: 128, 512>}, {pipeline_mode = #tpu.pipeline_mode<synchronous>, transform_indices = @transform_7, window_bounds = array<i64: 1, 512>}, {pipeline_mode = #tpu.pipeline_mode<synchronous>, transform_indices = @transform_8, window_bounds = array<i64: 512, 784>}, {pipeline_mode = #tpu.pipeline_mode<synchronous>, transform_indices = @transform_9, window_bounds = array<i64: 1, 784>}, {transform_indices = @transform_10, window_bounds = array<i64: 16, 784>}]} {
    %c0 = arith.constant 0 : index
    %c0_0 = arith.constant 0 : index
    %0 = vector.load %arg1[%c0, %c0_0] : memref<16x784xf32, #tpu.memory_space<vmem>>, vector<16x784xf32>
    %1 = arith.truncf %0 : vector<16x784xf32> to vector<16x784xbf16>
    %c0_1 = arith.constant 0 : index
    %c0_2 = arith.constant 0 : index
    %2 = vector.load %arg3[%c0_1, %c0_2] : memref<784x512xbf16, #tpu.memory_space<vmem>>, vector<784x512xbf16>
    %cst = arith.constant dense<0.000000e+00> : vector<16x512xf32>
    %3 = tpu.matmul %1, %2, %cst {dimension_numbers = #tpu.dot_dimension_numbers<[1], [0], [0], [1], [0, 0, 1, 1], [], []>} : vector<16x784xbf16>, vector<784x512xbf16>, vector<16x512xf32> -> vector<16x512xf32>
    %c0_3 = arith.constant 0 : index
    %c0_4 = arith.constant 0 : index
    %4 = vector.load %arg4[%c0_3, %c0_4] : memref<1x512xf32, #tpu.memory_space<vmem>>, vector<1x512xf32>
    %5 = vector.broadcast %4 : vector<1x512xf32> to vector<16x512xf32>
    %6 = arith.addf %3, %5 : vector<16x512xf32>
    %cst_5 = arith.constant 0.000000e+00 : f32
    %7 = vector.broadcast %cst_5 : f32 to vector<16x512xf32>
    %8 = arith.maximumf %6, %7 : vector<16x512xf32>
    %9 = arith.truncf %8 : vector<16x512xf32> to vector<16x512xbf16>
    %c0_6 = arith.constant 0 : index
    %c0_7 = arith.constant 0 : index
    %10 = vector.load %arg5[%c0_6, %c0_7] : memref<512x128xbf16, #tpu.memory_space<vmem>>, vector<512x128xbf16>
    %cst_8 = arith.constant dense<0.000000e+00> : vector<16x128xf32>
    %11 = tpu.matmul %9, %10, %cst_8 {dimension_numbers = #tpu.dot_dimension_numbers<[1], [0], [0], [1], [0, 0, 1, 1], [], []>} : vector<16x512xbf16>, vector<512x128xbf16>, vector<16x128xf32> -> vector<16x128xf32>
    %c0_9 = arith.constant 0 : index
    %c0_10 = arith.constant 0 : index
    %12 = vector.load %arg6[%c0_9, %c0_10] : memref<1x128xf32, #tpu.memory_space<vmem>>, vector<1x128xf32>
    %13 = vector.broadcast %12 : vector<1x128xf32> to vector<16x128xf32>
    %14 = arith.addf %11, %13 : vector<16x128xf32>
    %c0_11 = arith.constant 0 : index
    %c0_12 = arith.constant 0 : index
    %15 = vector.load %arg2[%c0_11, %c0_12] : memref<16x128xbf16, #tpu.memory_space<vmem>>, vector<16x128xbf16>
    %16 = arith.extf %15 : vector<16x128xbf16> to vector<16x128xf32>
    %cst_13 = arith.constant 1.000000e+00 : f32
    %17 = vector.broadcast %cst_13 : f32 to vector<16x128xf32>
    %18 = arith.addf %17, %16 : vector<16x128xf32>
    %19 = arith.mulf %14, %18 : vector<16x128xf32>
    %20 = arith.truncf %19 : vector<16x128xf32> to vector<16x128xbf16>
    %c0_14 = arith.constant 0 : index
    %c0_15 = arith.constant 0 : index
    %21 = vector.load %arg7[%c0_14, %c0_15] : memref<128x512xbf16, #tpu.memory_space<vmem>>, vector<128x512xbf16>
    %cst_16 = arith.constant dense<0.000000e+00> : vector<16x512xf32>
    %22 = tpu.matmul %20, %21, %cst_16 {dimension_numbers = #tpu.dot_dimension_numbers<[1], [0], [0], [1], [0, 0, 1, 1], [], []>} : vector<16x128xbf16>, vector<128x512xbf16>, vector<16x512xf32> -> vector<16x512xf32>
    %c0_17 = arith.constant 0 : index
    %c0_18 = arith.constant 0 : index
    %23 = vector.load %arg8[%c0_17, %c0_18] : memref<1x512xf32, #tpu.memory_space<vmem>>, vector<1x512xf32>
    %24 = vector.broadcast %23 : vector<1x512xf32> to vector<16x512xf32>
    %25 = arith.addf %22, %24 : vector<16x512xf32>
    %cst_19 = arith.constant 0.000000e+00 : f32
    %26 = vector.broadcast %cst_19 : f32 to vector<16x512xf32>
    %27 = arith.maximumf %25, %26 : vector<16x512xf32>
    %28 = arith.truncf %27 : vector<16x512xf32> to vector<16x512xbf16>
    %c0_20 = arith.constant 0 : index
    %c0_21 = arith.constant 0 : index
    %29 = vector.load %arg9[%c0_20, %c0_21] : memref<512x784xbf16, #tpu.memory_space<vmem>>, vector<512x784xbf16>
    %cst_22 = arith.constant dense<0.000000e+00> : vector<16x784xf32>
    %30 = tpu.matmul %28, %29, %cst_22 {dimension_numbers = #tpu.dot_dimension_numbers<[1], [0], [0], [1], [0, 0, 1, 1], [], []>} : vector<16x512xbf16>, vector<512x784xbf16>, vector<16x784xf32> -> vector<16x784xf32>
    %c0_23 = arith.constant 0 : index
    %c0_24 = arith.constant 0 : index
    %31 = vector.load %arg10[%c0_23, %c0_24] : memref<1x784xf32, #tpu.memory_space<vmem>>, vector<1x784xf32>
    %32 = vector.broadcast %31 : vector<1x784xf32> to vector<16x784xf32>
    %33 = arith.addf %30, %32 : vector<16x784xf32>
    %34 = arith.negf %33 : vector<16x784xf32>
    %35 = math.exp %34 : vector<16x784xf32>
    %cst_25 = arith.constant 1.000000e+00 : f32
    %36 = vector.broadcast %cst_25 : f32 to vector<16x784xf32>
    %37 = arith.addf %36, %35 : vector<16x784xf32>
    %38 = arith.divf %36, %37 : vector<16x784xf32>
    %39 = arith.truncf %38 : vector<16x784xf32> to vector<16x784xbf16>
    %c0_26 = arith.constant 0 : index
    %c0_27 = arith.constant 0 : index
    %40 = vector.load %arg11[%c0_26, %c0_27] : memref<16x784xbf16, #tpu.memory_space<vmem>>, vector<16x784xbf16>
    tpu.vector_store %arg11[%c0_26, %c0_27], %39 {strides = array<i32>} : memref<16x784xbf16, #tpu.memory_space<vmem>>, vector<16x784xbf16>,
    return
  }
  func.func @transform_0(%arg0: i32) -> (i32, i32) {
    %c0_i32 = arith.constant 0 : i32
    %c0_i32_0 = arith.constant 0 : i32
    return %arg0, %c0_i32 : i32, i32
  }
  func.func @transform_1(%arg0: i32) -> (i32, i32) {
    %c0_i32 = arith.constant 0 : i32
    %c0_i32_0 = arith.constant 0 : i32
    return %arg0, %c0_i32 : i32, i32
  }
  func.func @transform_2(%arg0: i32) -> (i32, i32) {
    %c0_i32 = arith.constant 0 : i32
    %c0_i32_0 = arith.constant 0 : i32
    %c0_i32_1 = arith.constant 0 : i32
    return %c0_i32, %c0_i32_0 : i32, i32
  }
  func.func @transform_3(%arg0: i32) -> (i32, i32) {
    %c0_i32 = arith.constant 0 : i32
    %c0_i32_0 = arith.constant 0 : i32
    %c0_i32_1 = arith.constant 0 : i32
    return %c0_i32, %c0_i32_0 : i32, i32
  }
  func.func @transform_4(%arg0: i32) -> (i32, i32) {
    %c0_i32 = arith.constant 0 : i32
    %c0_i32_0 = arith.constant 0 : i32
    %c0_i32_1 = arith.constant 0 : i32
    return %c0_i32, %c0_i32_0 : i32, i32
  }
  func.func @transform_5(%arg0: i32) -> (i32, i32) {
    %c0_i32 = arith.constant 0 : i32
    %c0_i32_0 = arith.constant 0 : i32
    %c0_i32_1 = arith.constant 0 : i32
    return %c0_i32, %c0_i32_0 : i32, i32
  }
  func.func @transform_6(%arg0: i32) -> (i32, i32) {
    %c0_i32 = arith.constant 0 : i32
    %c0_i32_0 = arith.constant 0 : i32
    %c0_i32_1 = arith.constant 0 : i32
    return %c0_i32, %c0_i32_0 : i32, i32
  }
  func.func @transform_7(%arg0: i32) -> (i32, i32) {
    %c0_i32 = arith.constant 0 : i32
    %c0_i32_0 = arith.constant 0 : i32
    %c0_i32_1 = arith.constant 0 : i32
    return %c0_i32, %c0_i32_0 : i32, i32
  }
  func.func @transform_8(%arg0: i32) -> (i32, i32) {
    %c0_i32 = arith.constant 0 : i32
    %c0_i32_0 = arith.constant 0 : i32
    %c0_i32_1 = arith.constant 0 : i32
    return %c0_i32, %c0_i32_0 : i32, i32
  }
  func.func @transform_9(%arg0: i32) -> (i32, i32) {
    %c0_i32 = arith.constant 0 : i32
    %c0_i32_0 = arith.constant 0 : i32
    %c0_i32_1 = arith.constant 0 : i32
    return %c0_i32, %c0_i32_0 : i32, i32
  }
  func.func @transform_10(%arg0: i32) -> (i32, i32) {
    %c0_i32 = arith.constant 0 : i32
    %c0_i32_0 = arith.constant 0 : i32
    return %arg0, %c0_i32 : i32, i32
  }
}

</mosaic_0001>

<llo_original>
// kernel: tpu_custom_call.1
$region0: #{tpu_custom_call.1}
  #allocation0 [shape = 'u32[]', space=smem, size = 0x4, offset = 0x4, fixed_abs, tag = 'smem constant byte address 0x4 - core index']
  #allocation1 [shape = 'u32[144,128]{1,0:T(1,128)}', space=vmem, size = 0x12000, scoped, tag = 'internal scratch']
  %s0 = inlined_call_operand.vmem [shape: f32[16,784], index: 0, kind: input, shape index: {}]
  %s1 = inlined_call_operand.vmem [shape: bf16[16,128], index: 1, kind: input, shape index: {}]
  %s2 = inlined_call_operand.vmem [shape: bf16[784,512], index: 2, kind: input, shape index: {}]
  %s3 = inlined_call_operand.vmem [shape: f32[1,512], index: 3, kind: input, shape index: {}]
  %s4 = inlined_call_operand.vmem [shape: bf16[512,128], index: 4, kind: input, shape index: {}]
  %s5 = inlined_call_operand.vmem [shape: f32[1,128], index: 5, kind: input, shape index: {}]
  %s6 = inlined_call_operand.vmem [shape: bf16[128,512], index: 6, kind: input, shape index: {}]
  %s7 = inlined_call_operand.vmem [shape: f32[1,512], index: 7, kind: input, shape index: {}]
  %s8 = inlined_call_operand.vmem [shape: bf16[512,784], index: 8, kind: input, shape index: {}]
  %s9 = inlined_call_operand.vmem [shape: f32[1,784], index: 9, kind: input, shape index: {}]
  %s10 = inlined_call_operand.hbm [shape: bf16[16,784], index: 10, kind: output, shape index: {}]
  %s11 = sld [smem:[#allocation0]]
  $region50: #{tpu_custom_call.1} parent=0
    _
  %s13 = ssub.s32 1, %s11
  %s14 = scalar_select 0, %s13, %s11
  $region1: #{tpu_custom_call.1} parent=0
    #allocation2 [shape = 'u8[28672]{0}', space=vmem, size = 0x7000, scoped, tag = 'output window, operand 0, single buffered']
    #allocation3 [shape = 's32[1]{0}', space=sflag, size = 0x4, scoped, tag = 'scoped memory for tpu_custom_call.1']
    %15 = vsyncpa [#allocation3], 0
    // Predicated region
    $region2: #{tpu_custom_call.1} parent=1 // pred_check
      _
    $region3: #{tpu_custom_call.1} parent=1 // pred_check_branch
      %17 = sbr.rel (0) target = $region5
    $region4: #{tpu_custom_call.1} parent=1 // pred_region
      _
    $region5: #{tpu_custom_call.1} parent=1 // pred_fallthru
      _
    // Predicated region
    $region6: #{tpu_custom_call.1} parent=1 // pred_check
      _
    $region7: #{tpu_custom_call.1} parent=1 // pred_check_branch
      %19 = sbr.rel (0) target = $region9
    $region8: #{tpu_custom_call.1} parent=1 // pred_region
      _
    $region9: #{tpu_custom_call.1} parent=1 // pred_fallthru
      _
    // Predicated region
    $region10: #{tpu_custom_call.1} parent=1 // pred_check
      _
    $region11: #{tpu_custom_call.1} parent=1 // pred_check_branch
      %21 = sbr.rel (0) target = $region13
    $region12: #{tpu_custom_call.1} parent=1 // pred_region
      _
    $region13: #{tpu_custom_call.1} parent=1 // pred_fallthru
      _
    // Predicated region
    $region14: #{tpu_custom_call.1} parent=1 // pred_check
      _
    $region15: #{tpu_custom_call.1} parent=1 // pred_check_branch
      %23 = sbr.rel (0) target = $region17
    $region16: #{tpu_custom_call.1} parent=1 // pred_region
      _
    $region17: #{tpu_custom_call.1} parent=1 // pred_fallthru
      _
    // Predicated region
    $region18: #{tpu_custom_call.1} parent=1 // pred_check
      _
    $region19: #{tpu_custom_call.1} parent=1 // pred_check_branch
      %25 = sbr.rel (0) target = $region21
    $region20: #{tpu_custom_call.1} parent=1 // pred_region
      _
    $region21: #{tpu_custom_call.1} parent=1 // pred_fallthru
      _
    // Predicated region
    $region22: #{tpu_custom_call.1} parent=1 // pred_check
      _
    $region23: #{tpu_custom_call.1} parent=1 // pred_check_branch
      %27 = sbr.rel (0) target = $region25
    $region24: #{tpu_custom_call.1} parent=1 // pred_region
      _
    $region25: #{tpu_custom_call.1} parent=1 // pred_fallthru
      _
    // Predicated region
    $region26: #{tpu_custom_call.1} parent=1 // pred_check
      _
    $region27: #{tpu_custom_call.1} parent=1 // pred_check_branch
      %29 = sbr.rel (0) target = $region29
    $region28: #{tpu_custom_call.1} parent=1 // pred_region
      _
    $region29: #{tpu_custom_call.1} parent=1 // pred_fallthru
      _
    // Predicated region
    $region30: #{tpu_custom_call.1} parent=1 // pred_check
      _
    $region31: #{tpu_custom_call.1} parent=1 // pred_check_branch
      %31 = sbr.rel (0) target = $region33
    $region32: #{tpu_custom_call.1} parent=1 // pred_region
      _
    $region33: #{tpu_custom_call.1} parent=1 // pred_fallthru
      _
    // Predicated region
    $region34: #{tpu_custom_call.1} parent=1 // pred_check
      _
    $region35: #{tpu_custom_call.1} parent=1 // pred_check_branch
      %33 = sbr.rel (0) target = $region37
    $region36: #{tpu_custom_call.1} parent=1 // pred_region
      _
    $region37: #{tpu_custom_call.1} parent=1 // pred_fallthru
      _
    // Predicated region
    $region38: #{tpu_custom_call.1} parent=1 // pred_check
      _
    $region39: #{tpu_custom_call.1} parent=1 // pred_check_branch
      %35 = sbr.rel (0) target = $region41
    $region40: #{tpu_custom_call.1} parent=1 // pred_region
      _
    $region41: #{tpu_custom_call.1} parent=1 // pred_fallthru
      _
    %v37 = vld [vmem:[%s0] sm:$0xff]
    %v38 = vld [vmem:[%s0 + $0x8] sm:$0xff]
    %v39 = vld [vmem:[%s0 + $0x10] sm:$0xff]
    %v40 = vld [vmem:[%s0 + $0x18] sm:$0xff]
    %v41 = vld [vmem:[%s0 + $0x20] sm:$0xff]
    %v42 = vld [vmem:[%s0 + $0x28] sm:$0xff]
    %v43 = vld [vmem:[%s0 + $0x30] sm:$0xff]
    %v44 = vld [vmem:[%s0 + $0x38] sm:$0xff]
    %v45 = vld [vmem:[%s0 + $0x40] sm:$0xff]
    %v46 = vld [vmem:[%s0 + $0x48] sm:$0xff]
    %v47 = vld [vmem:[%s0 + $0x50] sm:$0xff]
    %v48 = vld [vmem:[%s0 + $0x58] sm:$0xff]
    %v49 = vld [vmem:[%s0 + $0x60] sm:$0xff]
    %v50 = vld [vmem:[%s0 + $0x68] sm:$0xff]
    %v51 = vpack.c.bf16 %v44, %v37
    %v52 = vpack.c.bf16 %v45, %v38
    %v53 = vpack.c.bf16 %v46, %v39
    %v54 = vpack.c.bf16 %v47, %v40
    %v55 = vpack.c.bf16 %v48, %v41
    %v56 = vpack.c.bf16 %v49, %v42
    %v57 = vpack.c.bf16 %v50, %v43
    %v58 = vld [vmem:[%s2] sm:$0xff]
    %v59 = vld [vmem:[%s2 + $0x8] sm:$0xff]
    %v60 = vld [vmem:[%s2 + $0x10] sm:$0xff]
    %v61 = vld [vmem:[%s2 + $0x18] sm:$0xff]
    %v62 = vld [vmem:[%s2 + $0x20] sm:$0xff]
    %v63 = vld [vmem:[%s2 + $0x28] sm:$0xff]
    %v64 = vld [vmem:[%s2 + $0x30] sm:$0xff]
    %v65 = vld [vmem:[%s2 + $0x38] sm:$0xff]
    %v66 = vld [vmem:[%s2 + $0x40] sm:$0xff]
    %v67 = vld [vmem:[%s2 + $0x48] sm:$0xff]
    %v68 = vld [vmem:[%s2 + $0x50] sm:$0xff]
    %v69 = vld [vmem:[%s2 + $0x58] sm:$0xff]
    %v70 = vld [vmem:[%s2 + $0x60] sm:$0xff]
    %v71 = vld [vmem:[%s2 + $0x68] sm:$0xff]
    %v72 = vld [vmem:[%s2 + $0x70] sm:$0xff]
    %v73 = vld [vmem:[%s2 + $0x78] sm:$0xff]
    %v74 = vld [vmem:[%s2 + $0x80] sm:$0xff]
    %v75 = vld [vmem:[%s2 + $0x88] sm:$0xff]
    %v76 = vld [vmem:[%s2 + $0x90] sm:$0xff]
    %v77 = vld [vmem:[%s2 + $0x98] sm:$0xff]
    %v78 = vld [vmem:[%s2 + $0xa0] sm:$0xff]
    %v79 = vld [vmem:[%s2 + $0xa8] sm:$0xff]
    %v80 = vld [vmem:[%s2 + $0xb0] sm:$0xff]
    %v81 = vld [vmem:[%s2 + $0xb8] sm:$0xff]
    %v82 = vld [vmem:[%s2 + $0xc0] sm:$0xff]
    %v83 = vld [vmem:[%s2 + $0xc8] sm:$0xff]
    %v84 = vld [vmem:[%s2 + $0xd0] sm:$0xff]
    %v85 = vld [vmem:[%s2 + $0xd8] sm:$0xff]
    %v86 = vld [vmem:[%s2 + $0xe0] sm:$0xff]
    %v87 = vld [vmem:[%s2 + $0xe8] sm:$0xff]
    %v88 = vld [vmem:[%s2 + $0xf0] sm:$0xff]
    %v89 = vld [vmem:[%s2 + $0xf8] sm:$0xff]
    %v90 = vld [vmem:[%s2 + $0x100] sm:$0xff]
    %v91 = vld [vmem:[%s2 + $0x108] sm:$0xff]
    %v92 = vld [vmem:[%s2 + $0x110] sm:$0xff]
    %v93 = vld [vmem:[%s2 + $0x118] sm:$0xff]
    %v94 = vld [vmem:[%s2 + $0x120] sm:$0xff]
    %v95 = vld [vmem:[%s2 + $0x128] sm:$0xff]
    %v96 = vld [vmem:[%s2 + $0x130] sm:$0xff]
    %v97 = vld [vmem:[%s2 + $0x138] sm:$0xff]
    %v98 = vld [vmem:[%s2 + $0x140] sm:$0xff]
    %v99 = vld [vmem:[%s2 + $0x148] sm:$0xff]
    %v100 = vld [vmem:[%s2 + $0x150] sm:$0xff]
    %v101 = vld [vmem:[%s2 + $0x158] sm:$0xff]
    %v102 = vld [vmem:[%s2 + $0x160] sm:$0xff]
    %v103 = vld [vmem:[%s2 + $0x168] sm:$0xff]
    %v104 = vld [vmem:[%s2 + $0x170] sm:$0xff]
    %v105 = vld [vmem:[%s2 + $0x178] sm:$0xff]
    %v106 = vld [vmem:[%s2 + $0x180] sm:$0xff]
    %v107 = vld [vmem:[%s2 + $0x188] sm:$0xff]
    %v108 = vld [vmem:[%s2 + $0x190] sm:$0xff]
    %v109 = vld [vmem:[%s2 + $0x198] sm:$0xff]
    %v110 = vld [vmem:[%s2 + $0x1a0] sm:$0xff]
    %v111 = vld [vmem:[%s2 + $0x1a8] sm:$0xff]
    %v112 = vld [vmem:[%s2 + $0x1b0] sm:$0xff]
    %v113 = vld [vmem:[%s2 + $0x1b8] sm:$0xff]
    %v114 = vld [vmem:[%s2 + $0x1c0] sm:$0xff]
    %v115 = vld [vmem:[%s2 + $0x1c8] sm:$0xff]
    %v116 = vld [vmem:[%s2 + $0x1d0] sm:$0xff]
    %v117 = vld [vmem:[%s2 + $0x1d8] sm:$0xff]
    %v118 = vld [vmem:[%s2 + $0x1e0] sm:$0xff]
    %v119 = vld [vmem:[%s2 + $0x1e8] sm:$0xff]
    %v120 = vld [vmem:[%s2 + $0x1f0] sm:$0xff]
    %v121 = vld [vmem:[%s2 + $0x1f8] sm:$0xff]
    %v122 = vld [vmem:[%s2 + $0x200] sm:$0xff]
    %v123 = vld [vmem:[%s2 + $0x208] sm:$0xff]
    %v124 = vld [vmem:[%s2 + $0x210] sm:$0xff]
    %v125 = vld [vmem:[%s2 + $0x218] sm:$0xff]
    %v126 = vld [vmem:[%s2 + $0x220] sm:$0xff]
    %v127 = vld [vmem:[%s2 + $0x228] sm:$0xff]
    %v128 = vld [vmem:[%s2 + $0x230] sm:$0xff]
    %v129 = vld [vmem:[%s2 + $0x238] sm:$0xff]
    %v130 = vld [vmem:[%s2 + $0x240] sm:$0xff]
    %v131 = vld [vmem:[%s2 + $0x248] sm:$0xff]
    %v132 = vld [vmem:[%s2 + $0x250] sm:$0xff]
    %v133 = vld [vmem:[%s2 + $0x258] sm:$0xff]
    %v134 = vld [vmem:[%s2 + $0x260] sm:$0xff]
    %v135 = vld [vmem:[%s2 + $0x268] sm:$0xff]
    %v136 = vld [vmem:[%s2 + $0x270] sm:$0xff]
    %v137 = vld [vmem:[%s2 + $0x278] sm:$0xff]
    %v138 = vld [vmem:[%s2 + $0x280] sm:$0xff]
    %v139 = vld [vmem:[%s2 + $0x288] sm:$0xff]
    %v140 = vld [vmem:[%s2 + $0x290] sm:$0xff]
    %v141 = vld [vmem:[%s2 + $0x298] sm:$0xff]
    %v142 = vld [vmem:[%s2 + $0x2a0] sm:$0xff]
    %v143 = vld [vmem:[%s2 + $0x2a8] sm:$0xff]
    %v144 = vld [vmem:[%s2 + $0x2b0] sm:$0xff]
    %v145 = vld [vmem:[%s2 + $0x2b8] sm:$0xff]
    %v146 = vld [vmem:[%s2 + $0x2c0] sm:$0xff]
    %v147 = vld [vmem:[%s2 + $0x2c8] sm:$0xff]
    %v148 = vld [vmem:[%s2 + $0x2d0] sm:$0xff]
    %v149 = vld [vmem:[%s2 + $0x2d8] sm:$0xff]
    %v150 = vld [vmem:[%s2 + $0x2e0] sm:$0xff]
    %v151 = vld [vmem:[%s2 + $0x2e8] sm:$0xff]
    %v152 = vld [vmem:[%s2 + $0x2f0] sm:$0xff]
    %v153 = vld [vmem:[%s2 + $0x2f8] sm:$0xff]
    %v154 = vld [vmem:[%s2 + $0x300] sm:$0xff]
    %v155 = vld [vmem:[%s2 + $0x308] sm:$0xff]
    %v156 = vld [vmem:[%s2 + $0x310] sm:$0xff]
    %v157 = vld [vmem:[%s2 + $0x318] sm:$0xff]
    %v158 = vld [vmem:[%s2 + $0x320] sm:$0xff]
    %v159 = vld [vmem:[%s2 + $0x328] sm:$0xff]
    %v160 = vld [vmem:[%s2 + $0x330] sm:$0xff]
    %v161 = vld [vmem:[%s2 + $0x338] sm:$0xff]
    %v162 = vld [vmem:[%s2 + $0x340] sm:$0xff]
    %v163 = vld [vmem:[%s2 + $0x348] sm:$0xff]
    %v164 = vld [vmem:[%s2 + $0x350] sm:$0xff]
    %v165 = vld [vmem:[%s2 + $0x358] sm:$0xff]
    %v166 = vld [vmem:[%s2 + $0x360] sm:$0xff]
    %v167 = vld [vmem:[%s2 + $0x368] sm:$0xff]
    %v168 = vld [vmem:[%s2 + $0x370] sm:$0xff]
    %v169 = vld [vmem:[%s2 + $0x378] sm:$0xff]
    %v170 = vld [vmem:[%s2 + $0x380] sm:$0xff]
    %v171 = vld [vmem:[%s2 + $0x388] sm:$0xff]
    %v172 = vld [vmem:[%s2 + $0x390] sm:$0xff]
    %v173 = vld [vmem:[%s2 + $0x398] sm:$0xff]
    %v174 = vld [vmem:[%s2 + $0x3a0] sm:$0xff]
    %v175 = vld [vmem:[%s2 + $0x3a8] sm:$0xff]
    %v176 = vld [vmem:[%s2 + $0x3b0] sm:$0xff]
    %v177 = vld [vmem:[%s2 + $0x3b8] sm:$0xff]
    %v178 = vld [vmem:[%s2 + $0x3c0] sm:$0xff]
    %v179 = vld [vmem:[%s2 + $0x3c8] sm:$0xff]
    %v180 = vld [vmem:[%s2 + $0x3d0] sm:$0xff]
    %v181 = vld [vmem:[%s2 + $0x3d8] sm:$0xff]
    %v182 = vld [vmem:[%s2 + $0x3e0] sm:$0xff]
    %v183 = vld [vmem:[%s2 + $0x3e8] sm:$0xff]
    %v184 = vld [vmem:[%s2 + $0x3f0] sm:$0xff]
    %v185 = vld [vmem:[%s2 + $0x3f8] sm:$0xff]
    %v186 = vld [vmem:[%s2 + $0x400] sm:$0xff]
    %v187 = vld [vmem:[%s2 + $0x408] sm:$0xff]
    %v188 = vld [vmem:[%s2 + $0x410] sm:$0xff]
    %v189 = vld [vmem:[%s2 + $0x418] sm:$0xff]
    %v190 = vld [vmem:[%s2 + $0x420] sm:$0xff]
    %v191 = vld [vmem:[%s2 + $0x428] sm:$0xff]
    %v192 = vld [vmem:[%s2 + $0x430] sm:$0xff]
    %v193 = vld [vmem:[%s2 + $0x438] sm:$0xff]
    %v194 = vld [vmem:[%s2 + $0x440] sm:$0xff]
    %v195 = vld [vmem:[%s2 + $0x448] sm:$0xff]
    %v196 = vld [vmem:[%s2 + $0x450] sm:$0xff]
    %v197 = vld [vmem:[%s2 + $0x458] sm:$0xff]
    %v198 = vld [vmem:[%s2 + $0x460] sm:$0xff]
    %v199 = vld [vmem:[%s2 + $0x468] sm:$0xff]
    %v200 = vld [vmem:[%s2 + $0x470] sm:$0xff]
    %v201 = vld [vmem:[%s2 + $0x478] sm:$0xff]
    %v202 = vld [vmem:[%s2 + $0x480] sm:$0xff]
    %v203 = vld [vmem:[%s2 + $0x488] sm:$0xff]
    %v204 = vld [vmem:[%s2 + $0x490] sm:$0xff]
    %v205 = vld [vmem:[%s2 + $0x498] sm:$0xff]
    %v206 = vld [vmem:[%s2 + $0x4a0] sm:$0xff]
    %v207 = vld [vmem:[%s2 + $0x4a8] sm:$0xff]
    %v208 = vld [vmem:[%s2 + $0x4b0] sm:$0xff]
    %v209 = vld [vmem:[%s2 + $0x4b8] sm:$0xff]
    %v210 = vld [vmem:[%s2 + $0x4c0] sm:$0xff]
    %v211 = vld [vmem:[%s2 + $0x4c8] sm:$0xff]
    %v212 = vld [vmem:[%s2 + $0x4d0] sm:$0xff]
    %v213 = vld [vmem:[%s2 + $0x4d8] sm:$0xff]
    %v214 = vld [vmem:[%s2 + $0x4e0] sm:$0xff]
    %v215 = vld [vmem:[%s2 + $0x4e8] sm:$0xff]
    %v216 = vld [vmem:[%s2 + $0x4f0] sm:$0xff]
    %v217 = vld [vmem:[%s2 + $0x4f8] sm:$0xff]
    %v218 = vld [vmem:[%s2 + $0x500] sm:$0xff]
    %v219 = vld [vmem:[%s2 + $0x508] sm:$0xff]
    %v220 = vld [vmem:[%s2 + $0x510] sm:$0xff]
    %v221 = vld [vmem:[%s2 + $0x518] sm:$0xff]
    %v222 = vld [vmem:[%s2 + $0x520] sm:$0xff]
    %v223 = vld [vmem:[%s2 + $0x528] sm:$0xff]
    %v224 = vld [vmem:[%s2 + $0x530] sm:$0xff]
    %v225 = vld [vmem:[%s2 + $0x538] sm:$0xff]
    %v226 = vld [vmem:[%s2 + $0x540] sm:$0xff]
    %v227 = vld [vmem:[%s2 + $0x548] sm:$0xff]
    %v228 = vld [vmem:[%s2 + $0x550] sm:$0xff]
    %v229 = vld [vmem:[%s2 + $0x558] sm:$0xff]
    %v230 = vld [vmem:[%s2 + $0x560] sm:$0xff]
    %v231 = vld [vmem:[%s2 + $0x568] sm:$0xff]
    %v232 = vld [vmem:[%s2 + $0x570] sm:$0xff]
    %v233 = vld [vmem:[%s2 + $0x578] sm:$0xff]
    %v234 = vld [vmem:[%s2 + $0x580] sm:$0xff]
    %v235 = vld [vmem:[%s2 + $0x588] sm:$0xff]
    %v236 = vld [vmem:[%s2 + $0x590] sm:$0xff]
    %v237 = vld [vmem:[%s2 + $0x598] sm:$0xff]
    %v238 = vld [vmem:[%s2 + $0x5a0] sm:$0xff]
    %v239 = vld [vmem:[%s2 + $0x5a8] sm:$0xff]
    %v240 = vld [vmem:[%s2 + $0x5b0] sm:$0xff]
    %v241 = vld [vmem:[%s2 + $0x5b8] sm:$0xff]
    %v242 = vld [vmem:[%s2 + $0x5c0] sm:$0xff]
    %v243 = vld [vmem:[%s2 + $0x5c8] sm:$0xff]
    %v244 = vld [vmem:[%s2 + $0x5d0] sm:$0xff]
    %v245 = vld [vmem:[%s2 + $0x5d8] sm:$0xff]
    %v246 = vld [vmem:[%s2 + $0x5e0] sm:$0xff]
    %v247 = vld [vmem:[%s2 + $0x5e8] sm:$0xff]
    %v248 = vld [vmem:[%s2 + $0x5f0] sm:$0xff]
    %v249 = vld [vmem:[%s2 + $0x5f8] sm:$0xff]
    %v250 = vld [vmem:[%s2 + $0x600] sm:$0xff]
    %v251 = vld [vmem:[%s2 + $0x608] sm:$0xff]
    %v252 = vld [vmem:[%s2 + $0x610] sm:$0xff]
    %v253 = vld [vmem:[%s2 + $0x618] sm:$0xff]
    %v254 = vld [vmem:[%s3] sm:$0xf]
    %v256 = vlaneseq
    %v257 = vshrl.u32 %v256, 7
    %v258 = vsub.s32 0, %v257
    %v259 = vrot.slane %v254, %v258
    %v260 = vlaneseq
    %v261 = vshrl.u32 %v260, 7
    %v262 = vsub.s32 1, %v261
    %v263 = vrot.slane %v254, %v262
    %v264 = vlaneseq
    %v265 = vshrl.u32 %v264, 7
    %v266 = vsub.s32 2, %v265
    %v267 = vrot.slane %v254, %v266
    %v268 = vlaneseq
    %v269 = vshrl.u32 %v268, 7
    %v270 = vsub.s32 3, %v269
    %v271 = vrot.slane %v254, %v270
    %v472 = vunpack.c.l.b16 %v58
    %v473 = vunpack.c.h.b16 %v58
    %v474 = vunpack.c.l.b16 %v59
    %v475 = vunpack.c.h.b16 %v59
    %v476 = vunpack.c.l.b16 %v60
    %v477 = vunpack.c.h.b16 %v60
    %v478 = vunpack.c.l.b16 %v61
    %v479 = vunpack.c.h.b16 %v61
    %v480 = vunpack.c.l.b16 %v62
    %v481 = vunpack.c.h.b16 %v62
    %v482 = vunpack.c.l.b16 %v63
    %v483 = vunpack.c.h.b16 %v63
    %v484 = vunpack.c.l.b16 %v64
    %v485 = vunpack.c.h.b16 %v64
    %v486 = vunpack.c.l.b16 %v65
    %v487 = vunpack.c.h.b16 %v65
    %v488 = vunpack.c.l.b16 %v66
    %v489 = vunpack.c.h.b16 %v66
    %v490 = vunpack.c.l.b16 %v67
    %v491 = vunpack.c.h.b16 %v67
    %v492 = vunpack.c.l.b16 %v68
    %v493 = vunpack.c.h.b16 %v68
    %v494 = vunpack.c.l.b16 %v69
    %v495 = vunpack.c.h.b16 %v69
    %v496 = vunpack.c.l.b16 %v70
    %v497 = vunpack.c.h.b16 %v70
    %v498 = vunpack.c.l.b16 %v71
    %v499 = vunpack.c.h.b16 %v71
    %v500 = vunpack.c.l.b16 %v72
    %v501 = vunpack.c.h.b16 %v72
    %v502 = vunpack.c.l.b16 %v73
    %v503 = vunpack.c.h.b16 %v73
    %v504 = vunpack.c.l.b16 %v74
    %v505 = vunpack.c.h.b16 %v74
    %v506 = vunpack.c.l.b16 %v75
    %v507 = vunpack.c.h.b16 %v75
    %v508 = vunpack.c.l.b16 %v76
    %v509 = vunpack.c.h.b16 %v76
    %v510 = vunpack.c.l.b16 %v77
    %v511 = vunpack.c.h.b16 %v77
    %v512 = vunpack.c.l.b16 %v78
    %v513 = vunpack.c.h.b16 %v78
    %v514 = vunpack.c.l.b16 %v79
    %v515 = vunpack.c.h.b16 %v79
    %v516 = vunpack.c.l.b16 %v80
    %v517 = vunpack.c.h.b16 %v80
    %v518 = vunpack.c.l.b16 %v81
    %v519 = vunpack.c.h.b16 %v81
    %v520 = vunpack.c.l.b16 %v82
    %v521 = vunpack.c.h.b16 %v82
    %v522 = vunpack.c.l.b16 %v83
    %v523 = vunpack.c.h.b16 %v83
    %v524 = vunpack.c.l.b16 %v84
    %v525 = vunpack.c.h.b16 %v84
    %v526 = vunpack.c.l.b16 %v85
    %v527 = vunpack.c.h.b16 %v85
    %v528 = vunpack.c.l.b16 %v86
    %v529 = vunpack.c.h.b16 %v86
    %v530 = vunpack.c.l.b16 %v87
    %v531 = vunpack.c.h.b16 %v87
    %v532 = vunpack.c.l.b16 %v88
    %v533 = vunpack.c.h.b16 %v88
    %v534 = vunpack.c.l.b16 %v89
    %v535 = vunpack.c.h.b16 %v89
    %v536 = vunpack.c.l.b16 %v90
    %v537 = vunpack.c.h.b16 %v90
    %v538 = vunpack.c.l.b16 %v91
    %v539 = vunpack.c.h.b16 %v91
    %v540 = vunpack.c.l.b16 %v92
    %v541 = vunpack.c.h.b16 %v92
    %v542 = vunpack.c.l.b16 %v93
    %v543 = vunpack.c.h.b16 %v93
    %v544 = vunpack.c.l.b16 %v94
    %v545 = vunpack.c.h.b16 %v94
    %v546 = vunpack.c.l.b16 %v95
    %v547 = vunpack.c.h.b16 %v95
    %v548 = vunpack.c.l.b16 %v96
    %v549 = vunpack.c.h.b16 %v96
    %v550 = vunpack.c.l.b16 %v97
    %v551 = vunpack.c.h.b16 %v97
    %v552 = vunpack.c.l.b16 %v98
    %v553 = vunpack.c.h.b16 %v98
    %v554 = vunpack.c.l.b16 %v99
    %v555 = vunpack.c.h.b16 %v99
    %v556 = vunpack.c.l.b16 %v100
    %v557 = vunpack.c.h.b16 %v100
    %v558 = vunpack.c.l.b16 %v101
    %v559 = vunpack.c.h.b16 %v101
    %v560 = vunpack.c.l.b16 %v102
    %v561 = vunpack.c.h.b16 %v102
    %v562 = vunpack.c.l.b16 %v103
    %v563 = vunpack.c.h.b16 %v103
    %v564 = vunpack.c.l.b16 %v104
    %v565 = vunpack.c.h.b16 %v104
    %v566 = vunpack.c.l.b16 %v105
    %v567 = vunpack.c.h.b16 %v105
    %v568 = vunpack.c.l.b16 %v106
    %v569 = vunpack.c.h.b16 %v106
    %v570 = vunpack.c.l.b16 %v107
    %v571 = vunpack.c.h.b16 %v107
    %v572 = vunpack.c.l.b16 %v108
    %v573 = vunpack.c.h.b16 %v108
    %v574 = vunpack.c.l.b16 %v109
    %v575 = vunpack.c.h.b16 %v109
    %v576 = vunpack.c.l.b16 %v110
    %v577 = vunpack.c.h.b16 %v110
    %v578 = vunpack.c.l.b16 %v111
    %v579 = vunpack.c.h.b16 %v111
    %v580 = vunpack.c.l.b16 %v112
    %v581 = vunpack.c.h.b16 %v112
    %v582 = vunpack.c.l.b16 %v113
    %v583 = vunpack.c.h.b16 %v113
    %v584 = vunpack.c.l.b16 %v114
    %v585 = vunpack.c.h.b16 %v114
    %v586 = vunpack.c.l.b16 %v115
    %v587 = vunpack.c.h.b16 %v115
    %v588 = vunpack.c.l.b16 %v116
    %v589 = vunpack.c.h.b16 %v116
    %v590 = vunpack.c.l.b16 %v117
    %v591 = vunpack.c.h.b16 %v117
    %v592 = vunpack.c.l.b16 %v118
    %v593 = vunpack.c.h.b16 %v118
    %v594 = vunpack.c.l.b16 %v119
    %v595 = vunpack.c.h.b16 %v119
    %v596 = vunpack.c.l.b16 %v120
    %v597 = vunpack.c.h.b16 %v120
    %v598 = vunpack.c.l.b16 %v121
    %v599 = vunpack.c.h.b16 %v121
    %v600 = vunpack.c.l.b16 %v122
    %v601 = vunpack.c.h.b16 %v122
    %v602 = vunpack.c.l.b16 %v123
    %v603 = vunpack.c.h.b16 %v123
    %v604 = vunpack.c.l.b16 %v124
    %v605 = vunpack.c.h.b16 %v124
    %v606 = vunpack.c.l.b16 %v125
    %v607 = vunpack.c.h.b16 %v125
    %v608 = vunpack.c.l.b16 %v126
    %v609 = vunpack.c.h.b16 %v126
    %v610 = vunpack.c.l.b16 %v127
    %v611 = vunpack.c.h.b16 %v127
    %v612 = vunpack.c.l.b16 %v128
    %v613 = vunpack.c.h.b16 %v128
    %v614 = vunpack.c.l.b16 %v129
    %v615 = vunpack.c.h.b16 %v129
    %v616 = vunpack.c.l.b16 %v130
    %v617 = vunpack.c.h.b16 %v130
    %v618 = vunpack.c.l.b16 %v131
    %v619 = vunpack.c.h.b16 %v131
    %v620 = vunpack.c.l.b16 %v132
    %v621 = vunpack.c.h.b16 %v132
    %v622 = vunpack.c.l.b16 %v133
    %v623 = vunpack.c.h.b16 %v133
    %v624 = vunpack.c.l.b16 %v134
    %v625 = vunpack.c.h.b16 %v134
    %v626 = vunpack.c.l.b16 %v135
    %v627 = vunpack.c.h.b16 %v135
    %v628 = vunpack.c.l.b16 %v136
    %v629 = vunpack.c.h.b16 %v136
    %v630 = vunpack.c.l.b16 %v137
    %v631 = vunpack.c.h.b16 %v137
    %v632 = vunpack.c.l.b16 %v138
    %v633 = vunpack.c.h.b16 %v138
    %v634 = vunpack.c.l.b16 %v139
    %v635 = vunpack.c.h.b16 %v139
    %v636 = vunpack.c.l.b16 %v140
    %v637 = vunpack.c.h.b16 %v140
    %v638 = vunpack.c.l.b16 %v141
    %v639 = vunpack.c.h.b16 %v141
    %v640 = vunpack.c.l.b16 %v142
    %v641 = vunpack.c.h.b16 %v142
    %v642 = vunpack.c.l.b16 %v143
    %v643 = vunpack.c.h.b16 %v143
    %v644 = vunpack.c.l.b16 %v144
    %v645 = vunpack.c.h.b16 %v144
    %v646 = vunpack.c.l.b16 %v145
    %v647 = vunpack.c.h.b16 %v145
    %v648 = vunpack.c.l.b16 %v146
    %v649 = vunpack.c.h.b16 %v146
    %v650 = vunpack.c.l.b16 %v147
    %v651 = vunpack.c.h.b16 %v147
    %v652 = vunpack.c.l.b16 %v148
    %v653 = vunpack.c.h.b16 %v148
    %v654 = vunpack.c.l.b16 %v149
    %v655 = vunpack.c.h.b16 %v149
    %v656 = vunpack.c.l.b16 %v150
    %v657 = vunpack.c.h.b16 %v150
    %v658 = vunpack.c.l.b16 %v151
    %v659 = vunpack.c.h.b16 %v151
    %v660 = vunpack.c.l.b16 %v152
    %v661 = vunpack.c.h.b16 %v152
    %v662 = vunpack.c.l.b16 %v153
    %v663 = vunpack.c.h.b16 %v153
    %v664 = vunpack.c.l.b16 %v154
    %v665 = vunpack.c.h.b16 %v154
    %v666 = vunpack.c.l.b16 %v155
    %v667 = vunpack.c.h.b16 %v155
    %v668 = vunpack.c.l.b16 %v156
    %v669 = vunpack.c.h.b16 %v156
    %v670 = vunpack.c.l.b16 %v157
    %v671 = vunpack.c.h.b16 %v157
    %v672 = vunpack.c.l.b16 %v158
    %v673 = vunpack.c.h.b16 %v158
    %v674 = vunpack.c.l.b16 %v159
    %v675 = vunpack.c.h.b16 %v159
    %v676 = vunpack.c.l.b16 %v160
    %v677 = vunpack.c.h.b16 %v160
    %v678 = vunpack.c.l.b16 %v161
    %v679 = vunpack.c.h.b16 %v161
    %v680 = vunpack.c.l.b16 %v162
    %v681 = vunpack.c.h.b16 %v162
    %v682 = vunpack.c.l.b16 %v163
    %v683 = vunpack.c.h.b16 %v163
    %v684 = vunpack.c.l.b16 %v164
    %v685 = vunpack.c.h.b16 %v164
    %v686 = vunpack.c.l.b16 %v165
    %v687 = vunpack.c.h.b16 %v165
    %v688 = vunpack.c.l.b16 %v166
    %v689 = vunpack.c.h.b16 %v166
    %v690 = vunpack.c.l.b16 %v167
    %v691 = vunpack.c.h.b16 %v167
    %v692 = vunpack.c.l.b16 %v168
    %v693 = vunpack.c.h.b16 %v168
    %v694 = vunpack.c.l.b16 %v169
    %v695 = vunpack.c.h.b16 %v169
    %v696 = vunpack.c.l.b16 %v170
    %v697 = vunpack.c.h.b16 %v170
    %v698 = vunpack.c.l.b16 %v171
    %v699 = vunpack.c.h.b16 %v171
    %v700 = vunpack.c.l.b16 %v172
    %v701 = vunpack.c.h.b16 %v172
    %v702 = vunpack.c.l.b16 %v173
    %v703 = vunpack.c.h.b16 %v173
    %v704 = vunpack.c.l.b16 %v174
    %v705 = vunpack.c.h.b16 %v174
    %v706 = vunpack.c.l.b16 %v175
    %v707 = vunpack.c.h.b16 %v175
    %v708 = vunpack.c.l.b16 %v176
    %v709 = vunpack.c.h.b16 %v176
    %v710 = vunpack.c.l.b16 %v177
    %v711 = vunpack.c.h.b16 %v177
    %v712 = vunpack.c.l.b16 %v178
    %v713 = vunpack.c.h.b16 %v178
    %v714 = vunpack.c.l.b16 %v179
    %v715 = vunpack.c.h.b16 %v179
    %v716 = vunpack.c.l.b16 %v180
    %v717 = vunpack.c.h.b16 %v180
    %v718 = vunpack.c.l.b16 %v181
    %v719 = vunpack.c.h.b16 %v181
    %v720 = vunpack.c.l.b16 %v182
    %v721 = vunpack.c.h.b16 %v182
    %v722 = vunpack.c.l.b16 %v183
    %v723 = vunpack.c.h.b16 %v183
    %v724 = vunpack.c.l.b16 %v184
    %v725 = vunpack.c.h.b16 %v184
    %v726 = vunpack.c.l.b16 %v185
    %v727 = vunpack.c.h.b16 %v185
    %v728 = vunpack.c.l.b16 %v186
    %v729 = vunpack.c.h.b16 %v186
    %v730 = vunpack.c.l.b16 %v187
    %v731 = vunpack.c.h.b16 %v187
    %v732 = vunpack.c.l.b16 %v188
    %v733 = vunpack.c.h.b16 %v188
    %v734 = vunpack.c.l.b16 %v189
    %v735 = vunpack.c.h.b16 %v189
    %v736 = vunpack.c.l.b16 %v190
    %v737 = vunpack.c.h.b16 %v190
    %v738 = vunpack.c.l.b16 %v191
    %v739 = vunpack.c.h.b16 %v191
    %v740 = vunpack.c.l.b16 %v192
    %v741 = vunpack.c.h.b16 %v192
    %v742 = vunpack.c.l.b16 %v193
    %v743 = vunpack.c.h.b16 %v193
    %v744 = vunpack.c.l.b16 %v194
    %v745 = vunpack.c.h.b16 %v194
    %v746 = vunpack.c.l.b16 %v195
    %v747 = vunpack.c.h.b16 %v195
    %v748 = vunpack.c.l.b16 %v196
    %v749 = vunpack.c.h.b16 %v196
    %v750 = vunpack.c.l.b16 %v197
    %v751 = vunpack.c.h.b16 %v197
    %v752 = vunpack.c.l.b16 %v198
    %v753 = vunpack.c.h.b16 %v198
    %v754 = vunpack.c.l.b16 %v199
    %v755 = vunpack.c.h.b16 %v199
    %v756 = vunpack.c.l.b16 %v200
    %v757 = vunpack.c.h.b16 %v200
    %v758 = vunpack.c.l.b16 %v201
    %v759 = vunpack.c.h.b16 %v201
    %v760 = vunpack.c.l.b16 %v202
    %v761 = vunpack.c.h.b16 %v202
    %v762 = vunpack.c.l.b16 %v203
    %v763 = vunpack.c.h.b16 %v203
    %v764 = vunpack.c.l.b16 %v204
    %v765 = vunpack.c.h.b16 %v204
    %v766 = vunpack.c.l.b16 %v205
    %v767 = vunpack.c.h.b16 %v205
    %v768 = vunpack.c.l.b16 %v206
    %v769 = vunpack.c.h.b16 %v206
    %v770 = vunpack.c.l.b16 %v207
    %v771 = vunpack.c.h.b16 %v207
    %v772 = vunpack.c.l.b16 %v208
    %v773 = vunpack.c.h.b16 %v208
    %v774 = vunpack.c.l.b16 %v209
    %v775 = vunpack.c.h.b16 %v209
    %v776 = vunpack.c.l.b16 %v210
    %v777 = vunpack.c.h.b16 %v210
    %v778 = vunpack.c.l.b16 %v211
    %v779 = vunpack.c.h.b16 %v211
    %v780 = vunpack.c.l.b16 %v212
    %v781 = vunpack.c.h.b16 %v212
    %v782 = vunpack.c.l.b16 %v213
    %v783 = vunpack.c.h.b16 %v213
    %v784 = vunpack.c.l.b16 %v214
    %v785 = vunpack.c.h.b16 %v214
    %v786 = vunpack.c.l.b16 %v215
    %v787 = vunpack.c.h.b16 %v215
    %v788 = vunpack.c.l.b16 %v216
    %v789 = vunpack.c.h.b16 %v216
    %v790 = vunpack.c.l.b16 %v217
    %v791 = vunpack.c.h.b16 %v217
    %v792 = vunpack.c.l.b16 %v218
    %v793 = vunpack.c.h.b16 %v218
    %v794 = vunpack.c.l.b16 %v219
    %v795 = vunpack.c.h.b16 %v219
    %v796 = vunpack.c.l.b16 %v220
    %v797 = vunpack.c.h.b16 %v220
    %v798 = vunpack.c.l.b16 %v221
    %v799 = vunpack.c.h.b16 %v221
    %v800 = vunpack.c.l.b16 %v222
    %v801 = vunpack.c.h.b16 %v222
    %v802 = vunpack.c.l.b16 %v223
    %v803 = vunpack.c.h.b16 %v223
    %v804 = vunpack.c.l.b16 %v224
    %v805 = vunpack.c.h.b16 %v224
    %v806 = vunpack.c.l.b16 %v225
    %v807 = vunpack.c.h.b16 %v225
    %v808 = vunpack.c.l.b16 %v226
    %v809 = vunpack.c.h.b16 %v226
    %v810 = vunpack.c.l.b16 %v227
    %v811 = vunpack.c.h.b16 %v227
    %v812 = vunpack.c.l.b16 %v228
    %v813 = vunpack.c.h.b16 %v228
    %v814 = vunpack.c.l.b16 %v229
    %v815 = vunpack.c.h.b16 %v229
    %v816 = vunpack.c.l.b16 %v230
    %v817 = vunpack.c.h.b16 %v230
    %v818 = vunpack.c.l.b16 %v231
    %v819 = vunpack.c.h.b16 %v231
    %v820 = vunpack.c.l.b16 %v232
    %v821 = vunpack.c.h.b16 %v232
    %v822 = vunpack.c.l.b16 %v233
    %v823 = vunpack.c.h.b16 %v233
    %v824 = vunpack.c.l.b16 %v234
    %v825 = vunpack.c.h.b16 %v234
    %v826 = vunpack.c.l.b16 %v235
    %v827 = vunpack.c.h.b16 %v235
    %v828 = vunpack.c.l.b16 %v236
    %v829 = vunpack.c.h.b16 %v236
    %v830 = vunpack.c.l.b16 %v237
    %v831 = vunpack.c.h.b16 %v237
    %v832 = vunpack.c.l.b16 %v238
    %v833 = vunpack.c.h.b16 %v238
    %v834 = vunpack.c.l.b16 %v239
    %v835 = vunpack.c.h.b16 %v239
    %v836 = vunpack.c.l.b16 %v240
    %v837 = vunpack.c.h.b16 %v240
    %v838 = vunpack.c.l.b16 %v241
    %v839 = vunpack.c.h.b16 %v241
    %v840 = vunpack.c.l.b16 %v242
    %v841 = vunpack.c.h.b16 %v242
    %v842 = vunpack.c.l.b16 %v243
    %v843 = vunpack.c.h.b16 %v243
    %v844 = vunpack.c.l.b16 %v244
    %v845 = vunpack.c.h.b16 %v244
    %v846 = vunpack.c.l.b16 %v245
    %v847 = vunpack.c.h.b16 %v245
    %v848 = vunpack.c.l.b16 %v246
    %v849 = vunpack.c.h.b16 %v246
    %v850 = vunpack.c.l.b16 %v247
    %v851 = vunpack.c.h.b16 %v247
    %v852 = vunpack.c.l.b16 %v248
    %v853 = vunpack.c.h.b16 %v248
    %v854 = vunpack.c.l.b16 %v249
    %v855 = vunpack.c.h.b16 %v249
    %v856 = vunpack.c.l.b16 %v250
    %v857 = vunpack.c.h.b16 %v250
    %v858 = vunpack.c.l.b16 %v251
    %v859 = vunpack.c.h.b16 %v251
    %v860 = vunpack.c.l.b16 %v252
    %v861 = vunpack.c.h.b16 %v252
    %v862 = vunpack.c.l.b16 %v253
    %v863 = vunpack.c.h.b16 %v253
    %v864 = vpack.c.b16 %v476, %v472
    %v865 = vpack.c.b16 %v477, %v473
    %v866 = vpack.c.b16 %v478, %v474
    %v867 = vpack.c.b16 %v479, %v475
    %v868 = vpack.c.b16 %v484, %v480
    %v869 = vpack.c.b16 %v485, %v481
    %v870 = vpack.c.b16 %v486, %v482
    %v871 = vpack.c.b16 %v487, %v483
    %v872 = vpack.c.b16 %v492, %v488
    %v873 = vpack.c.b16 %v493, %v489
    %v874 = vpack.c.b16 %v494, %v490
    %v875 = vpack.c.b16 %v495, %v491
    %v876 = vpack.c.b16 %v500, %v496
    %v877 = vpack.c.b16 %v501, %v497
    %v878 = vpack.c.b16 %v502, %v498
    %v879 = vpack.c.b16 %v503, %v499
    %v880 = vpack.c.b16 %v508, %v504
    %v881 = vpack.c.b16 %v509, %v505
    %v882 = vpack.c.b16 %v510, %v506
    %v883 = vpack.c.b16 %v511, %v507
    %v884 = vpack.c.b16 %v516, %v512
    %v885 = vpack.c.b16 %v517, %v513
    %v886 = vpack.c.b16 %v518, %v514
    %v887 = vpack.c.b16 %v519, %v515
    %v888 = vpack.c.b16 %v524, %v520
    %v889 = vpack.c.b16 %v525, %v521
    %v890 = vpack.c.b16 %v526, %v522
    %v891 = vpack.c.b16 %v527, %v523
    %v892 = vpack.c.b16 %v532, %v528
    %v893 = vpack.c.b16 %v533, %v529
    %v894 = vpack.c.b16 %v534, %v530
    %v895 = vpack.c.b16 %v535, %v531
    %v896 = vpack.c.b16 %v540, %v536
    %v897 = vpack.c.b16 %v541, %v537
    %v898 = vpack.c.b16 %v542, %v538
    %v899 = vpack.c.b16 %v543, %v539
    %v900 = vpack.c.b16 %v548, %v544
    %v901 = vpack.c.b16 %v549, %v545
    %v902 = vpack.c.b16 %v550, %v546
    %v903 = vpack.c.b16 %v551, %v547
    %v904 = vpack.c.b16 %v556, %v552
    %v905 = vpack.c.b16 %v557, %v553
    %v906 = vpack.c.b16 %v558, %v554
    %v907 = vpack.c.b16 %v559, %v555
    %v908 = vpack.c.b16 %v564, %v560
    %v909 = vpack.c.b16 %v565, %v561
    %v910 = vpack.c.b16 %v566, %v562
    %v911 = vpack.c.b16 %v567, %v563
    %v912 = vpack.c.b16 %v572, %v568
    %v913 = vpack.c.b16 %v573, %v569
    %v914 = vpack.c.b16 %v574, %v570
    %v915 = vpack.c.b16 %v575, %v571
    %v916 = vpack.c.b16 %v580, %v576
    %v917 = vpack.c.b16 %v581, %v577
    %v918 = vpack.c.b16 %v582, %v578
    %v919 = vpack.c.b16 %v583, %v579
    %v920 = vpack.c.b16 %v588, %v584
    %v921 = vpack.c.b16 %v589, %v585
    %v922 = vpack.c.b16 %v590, %v586
    %v923 = vpack.c.b16 %v591, %v587
    %v924 = vpack.c.b16 %v596, %v592
    %v925 = vpack.c.b16 %v597, %v593
    %v926 = vpack.c.b16 %v598, %v594
    %v927 = vpack.c.b16 %v599, %v595
    %v928 = vpack.c.b16 %v604, %v600
    %v929 = vpack.c.b16 %v605, %v601
    %v930 = vpack.c.b16 %v606, %v602
    %v931 = vpack.c.b16 %v607, %v603
    %v932 = vpack.c.b16 %v612, %v608
    %v933 = vpack.c.b16 %v613, %v609
    %v934 = vpack.c.b16 %v614, %v610
    %v935 = vpack.c.b16 %v615, %v611
    %v936 = vpack.c.b16 %v620, %v616
    %v937 = vpack.c.b16 %v621, %v617
    %v938 = vpack.c.b16 %v622, %v618
    %v939 = vpack.c.b16 %v623, %v619
    %v940 = vpack.c.b16 %v628, %v624
    %v941 = vpack.c.b16 %v629, %v625
    %v942 = vpack.c.b16 %v630, %v626
    %v943 = vpack.c.b16 %v631, %v627
    %v944 = vpack.c.b16 %v636, %v632
    %v945 = vpack.c.b16 %v637, %v633
    %v946 = vpack.c.b16 %v638, %v634
    %v947 = vpack.c.b16 %v639, %v635
    %v948 = vpack.c.b16 %v644, %v640
    %v949 = vpack.c.b16 %v645, %v641
    %v950 = vpack.c.b16 %v646, %v642
    %v951 = vpack.c.b16 %v647, %v643
    %v952 = vpack.c.b16 %v652, %v648
    %v953 = vpack.c.b16 %v653, %v649
    %v954 = vpack.c.b16 %v654, %v650
    %v955 = vpack.c.b16 %v655, %v651
    %v956 = vpack.c.b16 %v660, %v656
    %v957 = vpack.c.b16 %v661, %v657
    %v958 = vpack.c.b16 %v662, %v658
    %v959 = vpack.c.b16 %v663, %v659
    %v960 = vpack.c.b16 %v668, %v664
    %v961 = vpack.c.b16 %v669, %v665
    %v962 = vpack.c.b16 %v670, %v666
    %v963 = vpack.c.b16 %v671, %v667
    %v964 = vpack.c.b16 %v676, %v672
    %v965 = vpack.c.b16 %v677, %v673
    %v966 = vpack.c.b16 %v678, %v674
    %v967 = vpack.c.b16 %v679, %v675
    %v968 = vpack.c.b16 %v684, %v680
    %v969 = vpack.c.b16 %v685, %v681
    %v970 = vpack.c.b16 %v686, %v682
    %v971 = vpack.c.b16 %v687, %v683
    %v972 = vpack.c.b16 %v692, %v688
    %v973 = vpack.c.b16 %v693, %v689
    %v974 = vpack.c.b16 %v694, %v690
    %v975 = vpack.c.b16 %v695, %v691
    %v976 = vpack.c.b16 %v700, %v696
    %v977 = vpack.c.b16 %v701, %v697
    %v978 = vpack.c.b16 %v702, %v698
    %v979 = vpack.c.b16 %v703, %v699
    %v980 = vpack.c.b16 %v708, %v704
    %v981 = vpack.c.b16 %v709, %v705
    %v982 = vpack.c.b16 %v710, %v706
    %v983 = vpack.c.b16 %v711, %v707
    %v984 = vpack.c.b16 %v716, %v712
    %v985 = vpack.c.b16 %v717, %v713
    %v986 = vpack.c.b16 %v718, %v714
    %v987 = vpack.c.b16 %v719, %v715
    %v988 = vpack.c.b16 %v724, %v720
    %v989 = vpack.c.b16 %v725, %v721
    %v990 = vpack.c.b16 %v726, %v722
    %v991 = vpack.c.b16 %v727, %v723
    %v992 = vpack.c.b16 %v732, %v728
    %v993 = vpack.c.b16 %v733, %v729
    %v994 = vpack.c.b16 %v734, %v730
    %v995 = vpack.c.b16 %v735, %v731
    %v996 = vpack.c.b16 %v740, %v736
    %v997 = vpack.c.b16 %v741, %v737
    %v998 = vpack.c.b16 %v742, %v738
    %v999 = vpack.c.b16 %v743, %v739
    %v1000 = vpack.c.b16 %v748, %v744
    %v1001 = vpack.c.b16 %v749, %v745
    %v1002 = vpack.c.b16 %v750, %v746
    %v1003 = vpack.c.b16 %v751, %v747
    %v1004 = vpack.c.b16 %v756, %v752
    %v1005 = vpack.c.b16 %v757, %v753
    %v1006 = vpack.c.b16 %v758, %v754
    %v1007 = vpack.c.b16 %v759, %v755
    %v1008 = vpack.c.b16 %v764, %v760
    %v1009 = vpack.c.b16 %v765, %v761
    %v1010 = vpack.c.b16 %v766, %v762
    %v1011 = vpack.c.b16 %v767, %v763
    %v1012 = vpack.c.b16 %v772, %v768
    %v1013 = vpack.c.b16 %v773, %v769
    %v1014 = vpack.c.b16 %v774, %v770
    %v1015 = vpack.c.b16 %v775, %v771
    %v1016 = vpack.c.b16 %v780, %v776
    %v1017 = vpack.c.b16 %v781, %v777
    %v1018 = vpack.c.b16 %v782, %v778
    %v1019 = vpack.c.b16 %v783, %v779
    %v1020 = vpack.c.b16 %v788, %v784
    %v1021 = vpack.c.b16 %v789, %v785
    %v1022 = vpack.c.b16 %v790, %v786
    %v1023 = vpack.c.b16 %v791, %v787
    %v1024 = vpack.c.b16 %v796, %v792
    %v1025 = vpack.c.b16 %v797, %v793
    %v1026 = vpack.c.b16 %v798, %v794
    %v1027 = vpack.c.b16 %v799, %v795
    %v1028 = vpack.c.b16 %v804, %v800
    %v1029 = vpack.c.b16 %v805, %v801
    %v1030 = vpack.c.b16 %v806, %v802
    %v1031 = vpack.c.b16 %v807, %v803
    %v1032 = vpack.c.b16 %v812, %v808
    %v1033 = vpack.c.b16 %v813, %v809
    %v1034 = vpack.c.b16 %v814, %v810
    %v1035 = vpack.c.b16 %v815, %v811
    %v1036 = vpack.c.b16 %v820, %v816
    %v1037 = vpack.c.b16 %v821, %v817
    %v1038 = vpack.c.b16 %v822, %v818
    %v1039 = vpack.c.b16 %v823, %v819
    %v1040 = vpack.c.b16 %v828, %v824
    %v1041 = vpack.c.b16 %v829, %v825
    %v1042 = vpack.c.b16 %v830, %v826
    %v1043 = vpack.c.b16 %v831, %v827
    %v1044 = vpack.c.b16 %v836, %v832
    %v1045 = vpack.c.b16 %v837, %v833
    %v1046 = vpack.c.b16 %v838, %v834
    %v1047 = vpack.c.b16 %v839, %v835
    %v1048 = vpack.c.b16 %v844, %v840
    %v1049 = vpack.c.b16 %v845, %v841
    %v1050 = vpack.c.b16 %v846, %v842
    %v1051 = vpack.c.b16 %v847, %v843
    %v1052 = vpack.c.b16 %v852, %v848
    %v1053 = vpack.c.b16 %v853, %v849
    %v1054 = vpack.c.b16 %v854, %v850
    %v1055 = vpack.c.b16 %v855, %v851
    %v1056 = vpack.c.b16 %v860, %v856
    %v1057 = vpack.c.b16 %v861, %v857
    %v1058 = vpack.c.b16 %v862, %v858
    %v1059 = vpack.c.b16 %v863, %v859
    %vm1256 = vcmask 130048
    %v1258 = vsel %vm1256, %v57, 0
    %1260 = vmatprep.subr.bf16.mxu0 %v893
    %1261 = vmatpush1.bf16.msra.mxu0 %v892
    %1262 = vmatprep.subr.bf16.mxu0 %v889
    %1263 = vmatpush1.bf16.msra.mxu0 %v888
    %1264 = vmatprep.subr.bf16.mxu0 %v885
    %1265 = vmatpush1.bf16.msra.mxu0 %v884
    %1266 = vmatprep.subr.bf16.mxu0 %v881
    %1267 = vmatpush1.bf16.msra.mxu0 %v880
    %1268 = vmatprep.subr.bf16.mxu0 %v877
    %1269 = vmatpush1.bf16.msra.mxu0 %v876
    %1270 = vmatprep.subr.bf16.mxu0 %v873
    %1271 = vmatpush1.bf16.msra.mxu0 %v872
    %1272 = vmatprep.subr.bf16.mxu0 %v869
    %1273 = vmatpush1.bf16.msra.mxu0 %v868
    %1274 = vmatprep.subr.bf16.mxu0 %v865
    %1275 = vmatpush1.bf16.msra.mxu0 %v864
    %1276 = vmatprep.subr.bf16.mxu0 %v925
    %1277 = vmatpush2.bf16.msra.mxu0 %v924
    %1278 = vmatprep.subr.bf16.mxu0 %v921
    %1279 = vmatpush2.bf16.msra.mxu0 %v920
    %1280 = vmatprep.subr.bf16.mxu0 %v917
    %1281 = vmatpush2.bf16.msra.mxu0 %v916
    %1282 = vmatprep.subr.bf16.mxu0 %v913
    %1283 = vmatpush2.bf16.msra.mxu0 %v912
    %1284 = vmatprep.subr.bf16.mxu0 %v909
    %1285 = vmatpush2.bf16.msra.mxu0 %v908
    %1286 = vmatprep.subr.bf16.mxu0 %v905
    %1287 = vmatpush2.bf16.msra.mxu0 %v904
    %1288 = vmatprep.subr.bf16.mxu0 %v901
    %1289 = vmatpush2.bf16.msra.mxu0 %v900
    %1290 = vmatprep.subr.bf16.mxu0 %v897
    %1291 = vmatpush2.bf16.msra.mxu0 %v896
    %1292 = vmatprep.mubr.bf16.mxu0 %v52
    %1293 = vmatmul.mubr.bf16.gmra.mxu0 %v51
    %v1294 = vpop.f32.mrf.mxu0
    %v1295 = vadd.f32 %v259, %v1294
    %v1296 = vpop.f32.mrf.mxu0
    %v1297 = vadd.f32 %v263, %v1296
    %v1298 = vpop.f32.mrf.mxu0
    %v1299 = vadd.f32 %v259, %v1298
    %v1300 = vpop.f32.mrf.mxu0
    %v1301 = vadd.f32 %v263, %v1300
    %1302 = vdwg.mxu0
    %1303 = vmatprep.subr.bf16.mxu0 %v957
    %1304 = vmatpush1.bf16.msra.mxu0 %v956
    %1305 = vmatprep.subr.bf16.mxu0 %v953
    %1306 = vmatpush1.bf16.msra.mxu0 %v952
    %1307 = vmatprep.subr.bf16.mxu0 %v949
    %1308 = vmatpush1.bf16.msra.mxu0 %v948
    %1309 = vmatprep.subr.bf16.mxu0 %v945
    %1310 = vmatpush1.bf16.msra.mxu0 %v944
    %1311 = vmatprep.subr.bf16.mxu0 %v941
    %1312 = vmatpush1.bf16.msra.mxu0 %v940
    %1313 = vmatprep.subr.bf16.mxu0 %v937
    %1314 = vmatpush1.bf16.msra.mxu0 %v936
    %1315 = vmatprep.subr.bf16.mxu0 %v933
    %1316 = vmatpush1.bf16.msra.mxu0 %v932
    %1317 = vmatprep.subr.bf16.mxu0 %v929
    %1318 = vmatpush1.bf16.msra.mxu0 %v928
    %1319 = vmatprep.subr.bf16.mxu0 %v989
    %1320 = vmatpush2.bf16.msra.mxu0 %v988
    %1321 = vmatprep.subr.bf16.mxu0 %v985
    %1322 = vmatpush2.bf16.msra.mxu0 %v984
    %1323 = vmatprep.subr.bf16.mxu0 %v981
    %1324 = vmatpush2.bf16.msra.mxu0 %v980
    %1325 = vmatprep.subr.bf16.mxu0 %v977
    %1326 = vmatpush2.bf16.msra.mxu0 %v976
    %1327 = vmatprep.subr.bf16.mxu0 %v973
    %1328 = vmatpush2.bf16.msra.mxu0 %v972
    %1329 = vmatprep.subr.bf16.mxu0 %v969
    %1330 = vmatpush2.bf16.msra.mxu0 %v968
    %1331 = vmatprep.subr.bf16.mxu0 %v965
    %1332 = vmatpush2.bf16.msra.mxu0 %v964
    %1333 = vmatprep.subr.bf16.mxu0 %v961
    %1334 = vmatpush2.bf16.msra.mxu0 %v960
    %1335 = vmatprep.mubr.bf16.mxu0 %v54
    %1336 = vmatmul.mubr.bf16.gmra.mxu0 %v53
    %v1337 = vpop.f32.mrf.mxu0
    %v1338 = vadd.f32 %v1295, %v1337
    %v1339 = vpop.f32.mrf.mxu0
    %v1340 = vadd.f32 %v1297, %v1339
    %v1341 = vpop.f32.mrf.mxu0
    %v1342 = vadd.f32 %v1299, %v1341
    %v1343 = vpop.f32.mrf.mxu0
    %v1344 = vadd.f32 %v1301, %v1343
    %1345 = vdwg.mxu0
    %1346 = vmatprep.subr.bf16.mxu0 %v1021
    %1347 = vmatpush1.bf16.msra.mxu0 %v1020
    %1348 = vmatprep.subr.bf16.mxu0 %v1017
    %1349 = vmatpush1.bf16.msra.mxu0 %v1016
    %1350 = vmatprep.subr.bf16.mxu0 %v1013
    %1351 = vmatpush1.bf16.msra.mxu0 %v1012
    %1352 = vmatprep.subr.bf16.mxu0 %v1009
    %1353 = vmatpush1.bf16.msra.mxu0 %v1008
    %1354 = vmatprep.subr.bf16.mxu0 %v1005
    %1355 = vmatpush1.bf16.msra.mxu0 %v1004
    %1356 = vmatprep.subr.bf16.mxu0 %v1001
    %1357 = vmatpush1.bf16.msra.mxu0 %v1000
    %1358 = vmatprep.subr.bf16.mxu0 %v997
    %1359 = vmatpush1.bf16.msra.mxu0 %v996
    %1360 = vmatprep.subr.bf16.mxu0 %v993
    %1361 = vmatpush1.bf16.msra.mxu0 %v992
    %1362 = vmatprep.subr.bf16.mxu0 %v1053
    %1363 = vmatpush2.bf16.msra.mxu0 %v1052
    %1364 = vmatprep.subr.bf16.mxu0 %v1049
    %1365 = vmatpush2.bf16.msra.mxu0 %v1048
    %1366 = vmatprep.subr.bf16.mxu0 %v1045
    %1367 = vmatpush2.bf16.msra.mxu0 %v1044
    %1368 = vmatprep.subr.bf16.mxu0 %v1041
    %1369 = vmatpush2.bf16.msra.mxu0 %v1040
    %1370 = vmatprep.subr.bf16.mxu0 %v1037
    %1371 = vmatpush2.bf16.msra.mxu0 %v1036
    %1372 = vmatprep.subr.bf16.mxu0 %v1033
    %1373 = vmatpush2.bf16.msra.mxu0 %v1032
    %1374 = vmatprep.subr.bf16.mxu0 %v1029
    %1375 = vmatpush2.bf16.msra.mxu0 %v1028
    %1376 = vmatprep.subr.bf16.mxu0 %v1025
    %1377 = vmatpush2.bf16.msra.mxu0 %v1024
    %1378 = vmatprep.mubr.bf16.mxu0 %v56
    %1379 = vmatmul.mubr.bf16.gmra.mxu0 %v55
    %v1380 = vpop.f32.mrf.mxu0
    %v1381 = vadd.f32 %v1338, %v1380
    %v1382 = vpop.f32.mrf.mxu0
    %v1383 = vadd.f32 %v1340, %v1382
    %v1384 = vpop.f32.mrf.mxu0
    %v1385 = vadd.f32 %v1342, %v1384
    %v1386 = vpop.f32.mrf.mxu0
    %v1387 = vadd.f32 %v1344, %v1386
    %1388 = vdwg.mxu0
    %1389 = vmatprep.subr.bf16.mxu0 0
    %1390 = vmatpush1.bf16.msra.mxu0 0
    %1391 = vmatprep.subr.bf16.mxu0 0
    %1392 = vmatpush1.bf16.msra.mxu0 0
    %1393 = vmatprep.subr.bf16.mxu0 0
    %1394 = vmatpush1.bf16.msra.mxu0 0
    %1395 = vmatprep.subr.bf16.mxu0 0
    %1396 = vmatpush1.bf16.msra.mxu0 0
    %1397 = vmatprep.subr.bf16.mxu0 0
    %1398 = vmatpush1.bf16.msra.mxu0 0
    %1399 = vmatprep.subr.bf16.mxu0 0
    %1400 = vmatpush1.bf16.msra.mxu0 0
    %1401 = vmatprep.subr.bf16.mxu0 0
    %1402 = vmatpush1.bf16.msra.mxu0 0
    %1403 = vmatprep.subr.bf16.mxu0 %v1057
    %1404 = vmatpush1.bf16.msra.mxu0 %v1056
    %1405 = vmatprep.subr.bf16.mxu0 0
    %1406 = vmatpush2.bf16.msra.mxu0 0
    %1407 = vmatprep.subr.bf16.mxu0 0
    %1408 = vmatpush2.bf16.msra.mxu0 0
    %1409 = vmatprep.subr.bf16.mxu0 0
    %1410 = vmatpush2.bf16.msra.mxu0 0
    %1411 = vmatprep.subr.bf16.mxu0 0
    %1412 = vmatpush2.bf16.msra.mxu0 0
    %1413 = vmatprep.subr.bf16.mxu0 0
    %1414 = vmatpush2.bf16.msra.mxu0 0
    %1415 = vmatprep.subr.bf16.mxu0 0
    %1416 = vmatpush2.bf16.msra.mxu0 0
    %1417 = vmatprep.subr.bf16.mxu0 0
    %1418 = vmatpush2.bf16.msra.mxu0 0
    %1419 = vmatprep.subr.bf16.mxu0 0
    %1420 = vmatpush2.bf16.msra.mxu0 0
    %1421 = vmatprep.mubr.bf16.mxu0 0
    %1422 = vmatmul.mubr.bf16.gmra.mxu0 %v1258
    %v1423 = vpop.f32.mrf.mxu0
    %v1424 = vadd.f32 %v1381, %v1423
    %v1425 = vpop.f32.mrf.mxu0
    %v1426 = vadd.f32 %v1383, %v1425
    %v1427 = vpop.f32.mrf.mxu0
    %v1428 = vadd.f32 %v1385, %v1427
    %v1429 = vpop.f32.mrf.mxu0
    %v1430 = vadd.f32 %v1387, %v1429
    %1431 = vdwg.mxu0
    %1432 = vmatprep.subr.bf16.mxu0 %v895
    %1433 = vmatpush1.bf16.msra.mxu0 %v894
    %1434 = vmatprep.subr.bf16.mxu0 %v891
    %1435 = vmatpush1.bf16.msra.mxu0 %v890
    %1436 = vmatprep.subr.bf16.mxu0 %v887
    %1437 = vmatpush1.bf16.msra.mxu0 %v886
    %1438 = vmatprep.subr.bf16.mxu0 %v883
    %1439 = vmatpush1.bf16.msra.mxu0 %v882
    %1440 = vmatprep.subr.bf16.mxu0 %v879
    %1441 = vmatpush1.bf16.msra.mxu0 %v878
    %1442 = vmatprep.subr.bf16.mxu0 %v875
    %1443 = vmatpush1.bf16.msra.mxu0 %v874
    %1444 = vmatprep.subr.bf16.mxu0 %v871
    %1445 = vmatpush1.bf16.msra.mxu0 %v870
    %1446 = vmatprep.subr.bf16.mxu0 %v867
    %1447 = vmatpush1.bf16.msra.mxu0 %v866
    %1448 = vmatprep.subr.bf16.mxu0 %v927
    %1449 = vmatpush2.bf16.msra.mxu0 %v926
    %1450 = vmatprep.subr.bf16.mxu0 %v923
    %1451 = vmatpush2.bf16.msra.mxu0 %v922
    %1452 = vmatprep.subr.bf16.mxu0 %v919
    %1453 = vmatpush2.bf16.msra.mxu0 %v918
    %1454 = vmatprep.subr.bf16.mxu0 %v915
    %1455 = vmatpush2.bf16.msra.mxu0 %v914
    %1456 = vmatprep.subr.bf16.mxu0 %v911
    %1457 = vmatpush2.bf16.msra.mxu0 %v910
    %1458 = vmatprep.subr.bf16.mxu0 %v907
    %1459 = vmatpush2.bf16.msra.mxu0 %v906
    %1460 = vmatprep.subr.bf16.mxu0 %v903
    %1461 = vmatpush2.bf16.msra.mxu0 %v902
    %1462 = vmatprep.subr.bf16.mxu0 %v899
    %1463 = vmatpush2.bf16.msra.mxu0 %v898
    %1464 = vmatprep.mubr.bf16.mxu0 %v52
    %1465 = vmatmul.mubr.bf16.gmra.mxu0 %v51
    %v1466 = vpop.f32.mrf.mxu0
    %v1467 = vadd.f32 %v267, %v1466
    %v1468 = vpop.f32.mrf.mxu0
    %v1469 = vadd.f32 %v271, %v1468
    %v1470 = vpop.f32.mrf.mxu0
    %v1471 = vadd.f32 %v267, %v1470
    %v1472 = vpop.f32.mrf.mxu0
    %v1473 = vadd.f32 %v271, %v1472
    %1474 = vdwg.mxu0
    %1475 = vmatprep.subr.bf16.mxu0 %v959
    %1476 = vmatpush1.bf16.msra.mxu0 %v958
    %1477 = vmatprep.subr.bf16.mxu0 %v955
    %1478 = vmatpush1.bf16.msra.mxu0 %v954
    %1479 = vmatprep.subr.bf16.mxu0 %v951
    %1480 = vmatpush1.bf16.msra.mxu0 %v950
    %1481 = vmatprep.subr.bf16.mxu0 %v947
    %1482 = vmatpush1.bf16.msra.mxu0 %v946
    %1483 = vmatprep.subr.bf16.mxu0 %v943
    %1484 = vmatpush1.bf16.msra.mxu0 %v942
    %1485 = vmatprep.subr.bf16.mxu0 %v939
    %1486 = vmatpush1.bf16.msra.mxu0 %v938
    %1487 = vmatprep.subr.bf16.mxu0 %v935
    %1488 = vmatpush1.bf16.msra.mxu0 %v934
    %1489 = vmatprep.subr.bf16.mxu0 %v931
    %1490 = vmatpush1.bf16.msra.mxu0 %v930
    %1491 = vmatprep.subr.bf16.mxu0 %v991
    %1492 = vmatpush2.bf16.msra.mxu0 %v990
    %1493 = vmatprep.subr.bf16.mxu0 %v987
    %1494 = vmatpush2.bf16.msra.mxu0 %v986
    %1495 = vmatprep.subr.bf16.mxu0 %v983
    %1496 = vmatpush2.bf16.msra.mxu0 %v982
    %1497 = vmatprep.subr.bf16.mxu0 %v979
    %1498 = vmatpush2.bf16.msra.mxu0 %v978
    %1499 = vmatprep.subr.bf16.mxu0 %v975
    %1500 = vmatpush2.bf16.msra.mxu0 %v974
    %1501 = vmatprep.subr.bf16.mxu0 %v971
    %1502 = vmatpush2.bf16.msra.mxu0 %v970
    %1503 = vmatprep.subr.bf16.mxu0 %v967
    %1504 = vmatpush2.bf16.msra.mxu0 %v966
    %1505 = vmatprep.subr.bf16.mxu0 %v963
    %1506 = vmatpush2.bf16.msra.mxu0 %v962
    %1507 = vmatprep.mubr.bf16.mxu0 %v54
    %1508 = vmatmul.mubr.bf16.gmra.mxu0 %v53
    %v1509 = vpop.f32.mrf.mxu0
    %v1510 = vadd.f32 %v1467, %v1509
    %v1511 = vpop.f32.mrf.mxu0
    %v1512 = vadd.f32 %v1469, %v1511
    %v1513 = vpop.f32.mrf.mxu0
    %v1514 = vadd.f32 %v1471, %v1513
    %v1515 = vpop.f32.mrf.mxu0
    %v1516 = vadd.f32 %v1473, %v1515
    %1517 = vdwg.mxu0
    %1518 = vmatprep.subr.bf16.mxu0 %v1023
    %1519 = vmatpush1.bf16.msra.mxu0 %v1022
    %1520 = vmatprep.subr.bf16.mxu0 %v1019
    %1521 = vmatpush1.bf16.msra.mxu0 %v1018
    %1522 = vmatprep.subr.bf16.mxu0 %v1015
    %1523 = vmatpush1.bf16.msra.mxu0 %v1014
    %1524 = vmatprep.subr.bf16.mxu0 %v1011
    %1525 = vmatpush1.bf16.msra.mxu0 %v1010
    %1526 = vmatprep.subr.bf16.mxu0 %v1007
    %1527 = vmatpush1.bf16.msra.mxu0 %v1006
    %1528 = vmatprep.subr.bf16.mxu0 %v1003
    %1529 = vmatpush1.bf16.msra.mxu0 %v1002
    %1530 = vmatprep.subr.bf16.mxu0 %v999
    %1531 = vmatpush1.bf16.msra.mxu0 %v998
    %1532 = vmatprep.subr.bf16.mxu0 %v995
    %1533 = vmatpush1.bf16.msra.mxu0 %v994
    %1534 = vmatprep.subr.bf16.mxu0 %v1055
    %1535 = vmatpush2.bf16.msra.mxu0 %v1054
    %1536 = vmatprep.subr.bf16.mxu0 %v1051
    %1537 = vmatpush2.bf16.msra.mxu0 %v1050
    %1538 = vmatprep.subr.bf16.mxu0 %v1047
    %1539 = vmatpush2.bf16.msra.mxu0 %v1046
    %1540 = vmatprep.subr.bf16.mxu0 %v1043
    %1541 = vmatpush2.bf16.msra.mxu0 %v1042
    %1542 = vmatprep.subr.bf16.mxu0 %v1039
    %1543 = vmatpush2.bf16.msra.mxu0 %v1038
    %1544 = vmatprep.subr.bf16.mxu0 %v1035
    %1545 = vmatpush2.bf16.msra.mxu0 %v1034
    %1546 = vmatprep.subr.bf16.mxu0 %v1031
    %1547 = vmatpush2.bf16.msra.mxu0 %v1030
    %1548 = vmatprep.subr.bf16.mxu0 %v1027
    %1549 = vmatpush2.bf16.msra.mxu0 %v1026
    %1550 = vmatprep.mubr.bf16.mxu0 %v56
    %1551 = vmatmul.mubr.bf16.gmra.mxu0 %v55
    %v1552 = vpop.f32.mrf.mxu0
    %v1553 = vadd.f32 %v1510, %v1552
    %v1554 = vpop.f32.mrf.mxu0
    %v1555 = vadd.f32 %v1512, %v1554
    %v1556 = vpop.f32.mrf.mxu0
    %v1557 = vadd.f32 %v1514, %v1556
    %v1558 = vpop.f32.mrf.mxu0
    %v1559 = vadd.f32 %v1516, %v1558
    %1560 = vdwg.mxu0
    %1561 = vmatprep.subr.bf16.mxu0 0
    %1562 = vmatpush1.bf16.msra.mxu0 0
    %1563 = vmatprep.subr.bf16.mxu0 0
    %1564 = vmatpush1.bf16.msra.mxu0 0
    %1565 = vmatprep.subr.bf16.mxu0 0
    %1566 = vmatpush1.bf16.msra.mxu0 0
    %1567 = vmatprep.subr.bf16.mxu0 0
    %1568 = vmatpush1.bf16.msra.mxu0 0
    %1569 = vmatprep.subr.bf16.mxu0 0
    %1570 = vmatpush1.bf16.msra.mxu0 0
    %1571 = vmatprep.subr.bf16.mxu0 0
    %1572 = vmatpush1.bf16.msra.mxu0 0
    %1573 = vmatprep.subr.bf16.mxu0 0
    %1574 = vmatpush1.bf16.msra.mxu0 0
    %1575 = vmatprep.subr.bf16.mxu0 %v1059
    %1576 = vmatpush1.bf16.msra.mxu0 %v1058
    %1577 = vmatprep.subr.bf16.mxu0 0
    %1578 = vmatpush2.bf16.msra.mxu0 0
    %1579 = vmatprep.subr.bf16.mxu0 0
    %1580 = vmatpush2.bf16.msra.mxu0 0
    %1581 = vmatprep.subr.bf16.mxu0 0
    %1582 = vmatpush2.bf16.msra.mxu0 0
    %1583 = vmatprep.subr.bf16.mxu0 0
    %1584 = vmatpush2.bf16.msra.mxu0 0
    %1585 = vmatprep.subr.bf16.mxu0 0
    %1586 = vmatpush2.bf16.msra.mxu0 0
    %1587 = vmatprep.subr.bf16.mxu0 0
    %1588 = vmatpush2.bf16.msra.mxu0 0
    %1589 = vmatprep.subr.bf16.mxu0 0
    %1590 = vmatpush2.bf16.msra.mxu0 0
    %1591 = vmatprep.subr.bf16.mxu0 0
    %1592 = vmatpush2.bf16.msra.mxu0 0
    %1593 = vmatprep.mubr.bf16.mxu0 0
    %1594 = vmatmul.mubr.bf16.gmra.mxu0 %v1258
    %v1595 = vpop.f32.mrf.mxu0
    %v1596 = vadd.f32 %v1553, %v1595
    %v1597 = vpop.f32.mrf.mxu0
    %v1598 = vadd.f32 %v1555, %v1597
    %v1599 = vpop.f32.mrf.mxu0
    %v1600 = vadd.f32 %v1557, %v1599
    %v1601 = vpop.f32.mrf.mxu0
    %v1602 = vadd.f32 %v1559, %v1601
    %1603 = vdwg.mxu0
    %v1604 = vmax.f32 %v1424, 0.0
    %v1605 = vmax.f32 %v1426, 0.0
    %v1606 = vmax.f32 %v1596, 0.0
    %v1607 = vmax.f32 %v1598, 0.0
    %v1608 = vmax.f32 %v1428, 0.0
    %v1609 = vmax.f32 %v1430, 0.0
    %v1610 = vmax.f32 %v1600, 0.0
    %v1611 = vmax.f32 %v1602, 0.0
    %v1612 = vpack.c.bf16 %v1608, %v1604
    %v1613 = vpack.c.bf16 %v1609, %v1605
    %v1614 = vpack.c.bf16 %v1610, %v1606
    %v1615 = vpack.c.bf16 %v1611, %v1607
    %v1616 = vld [vmem:[%s4] sm:$0xf]
    %v1617 = vld [vmem:[%s4 + $0x4] sm:$0xf]
    %v1618 = vld [vmem:[%s4 + $0x8] sm:$0xf]
    %v1619 = vld [vmem:[%s4 + $0xc] sm:$0xf]
    %v1620 = vld [vmem:[%s4 + $0x10] sm:$0xf]
    %v1621 = vld [vmem:[%s4 + $0x14] sm:$0xf]
    %v1622 = vld [vmem:[%s4 + $0x18] sm:$0xf]
    %v1623 = vld [vmem:[%s4 + $0x1c] sm:$0xf]
    %v1624 = vld [vmem:[%s4 + $0x20] sm:$0xf]
    %v1625 = vld [vmem:[%s4 + $0x24] sm:$0xf]
    %v1626 = vld [vmem:[%s4 + $0x28] sm:$0xf]
    %v1627 = vld [vmem:[%s4 + $0x2c] sm:$0xf]
    %v1628 = vld [vmem:[%s4 + $0x30] sm:$0xf]
    %v1629 = vld [vmem:[%s4 + $0x34] sm:$0xf]
    %v1630 = vld [vmem:[%s4 + $0x38] sm:$0xf]
    %v1631 = vld [vmem:[%s4 + $0x3c] sm:$0xf]
    %v1632 = vld [vmem:[%s4 + $0x40] sm:$0xf]
    %v1633 = vld [vmem:[%s4 + $0x44] sm:$0xf]
    %v1634 = vld [vmem:[%s4 + $0x48] sm:$0xf]
    %v1635 = vld [vmem:[%s4 + $0x4c] sm:$0xf]
    %v1636 = vld [vmem:[%s4 + $0x50] sm:$0xf]
    %v1637 = vld [vmem:[%s4 + $0x54] sm:$0xf]
    %v1638 = vld [vmem:[%s4 + $0x58] sm:$0xf]
    %v1639 = vld [vmem:[%s4 + $0x5c] sm:$0xf]
    %v1640 = vld [vmem:[%s4 + $0x60] sm:$0xf]
    %v1641 = vld [vmem:[%s4 + $0x64] sm:$0xf]
    %v1642 = vld [vmem:[%s4 + $0x68] sm:$0xf]
    %v1643 = vld [vmem:[%s4 + $0x6c] sm:$0xf]
    %v1644 = vld [vmem:[%s4 + $0x70] sm:$0xf]
    %v1645 = vld [vmem:[%s4 + $0x74] sm:$0xf]
    %v1646 = vld [vmem:[%s4 + $0x78] sm:$0xf]
    %v1647 = vld [vmem:[%s4 + $0x7c] sm:$0xf]
    %v1648 = vld [vmem:[%s4 + $0x80] sm:$0xf]
    %v1649 = vld [vmem:[%s4 + $0x84] sm:$0xf]
    %v1650 = vld [vmem:[%s4 + $0x88] sm:$0xf]
    %v1651 = vld [vmem:[%s4 + $0x8c] sm:$0xf]
    %v1652 = vld [vmem:[%s4 + $0x90] sm:$0xf]
    %v1653 = vld [vmem:[%s4 + $0x94] sm:$0xf]
    %v1654 = vld [vmem:[%s4 + $0x98] sm:$0xf]
    %v1655 = vld [vmem:[%s4 + $0x9c] sm:$0xf]
    %v1656 = vld [vmem:[%s4 + $0xa0] sm:$0xf]
    %v1657 = vld [vmem:[%s4 + $0xa4] sm:$0xf]
    %v1658 = vld [vmem:[%s4 + $0xa8] sm:$0xf]
    %v1659 = vld [vmem:[%s4 + $0xac] sm:$0xf]
    %v1660 = vld [vmem:[%s4 + $0xb0] sm:$0xf]
    %v1661 = vld [vmem:[%s4 + $0xb4] sm:$0xf]
    %v1662 = vld [vmem:[%s4 + $0xb8] sm:$0xf]
    %v1663 = vld [vmem:[%s4 + $0xbc] sm:$0xf]
    %v1664 = vld [vmem:[%s4 + $0xc0] sm:$0xf]
    %v1665 = vld [vmem:[%s4 + $0xc4] sm:$0xf]
    %v1666 = vld [vmem:[%s4 + $0xc8] sm:$0xf]
    %v1667 = vld [vmem:[%s4 + $0xcc] sm:$0xf]
    %v1668 = vld [vmem:[%s4 + $0xd0] sm:$0xf]
    %v1669 = vld [vmem:[%s4 + $0xd4] sm:$0xf]
    %v1670 = vld [vmem:[%s4 + $0xd8] sm:$0xf]
    %v1671 = vld [vmem:[%s4 + $0xdc] sm:$0xf]
    %v1672 = vld [vmem:[%s4 + $0xe0] sm:$0xf]
    %v1673 = vld [vmem:[%s4 + $0xe4] sm:$0xf]
    %v1674 = vld [vmem:[%s4 + $0xe8] sm:$0xf]
    %v1675 = vld [vmem:[%s4 + $0xec] sm:$0xf]
    %v1676 = vld [vmem:[%s4 + $0xf0] sm:$0xf]
    %v1677 = vld [vmem:[%s4 + $0xf4] sm:$0xf]
    %v1678 = vld [vmem:[%s4 + $0xf8] sm:$0xf]
    %v1679 = vld [vmem:[%s4 + $0xfc] sm:$0xf]
    %v1680 = vld [vmem:[%s5] sm:$0x1]
    %v1682 = vlaneseq
    %v1683 = vshrl.u32 %v1682, 7
    %v1684 = vsub.s32 0, %v1683
    %v1685 = vrot.slane %v1680, %v1684
    %v1751 = vunpack.c.l.b16 %v1616
    %v1752 = vunpack.c.l.b16 %v1617
    %v1753 = vunpack.c.l.b16 %v1618
    %v1754 = vunpack.c.l.b16 %v1619
    %v1755 = vunpack.c.l.b16 %v1620
    %v1756 = vunpack.c.l.b16 %v1621
    %v1757 = vunpack.c.l.b16 %v1622
    %v1758 = vunpack.c.l.b16 %v1623
    %v1759 = vunpack.c.l.b16 %v1624
    %v1760 = vunpack.c.l.b16 %v1625
    %v1761 = vunpack.c.l.b16 %v1626
    %v1762 = vunpack.c.l.b16 %v1627
    %v1763 = vunpack.c.l.b16 %v1628
    %v1764 = vunpack.c.l.b16 %v1629
    %v1765 = vunpack.c.l.b16 %v1630
    %v1766 = vunpack.c.l.b16 %v1631
    %v1767 = vunpack.c.l.b16 %v1632
    %v1768 = vunpack.c.l.b16 %v1633
    %v1769 = vunpack.c.l.b16 %v1634
    %v1770 = vunpack.c.l.b16 %v1635
    %v1771 = vunpack.c.l.b16 %v1636
    %v1772 = vunpack.c.l.b16 %v1637
    %v1773 = vunpack.c.l.b16 %v1638
    %v1774 = vunpack.c.l.b16 %v1639
    %v1775 = vunpack.c.l.b16 %v1640
    %v1776 = vunpack.c.l.b16 %v1641
    %v1777 = vunpack.c.l.b16 %v1642
    %v1778 = vunpack.c.l.b16 %v1643
    %v1779 = vunpack.c.l.b16 %v1644
    %v1780 = vunpack.c.l.b16 %v1645
    %v1781 = vunpack.c.l.b16 %v1646
    %v1782 = vunpack.c.l.b16 %v1647
    %v1783 = vunpack.c.l.b16 %v1648
    %v1784 = vunpack.c.l.b16 %v1649
    %v1785 = vunpack.c.l.b16 %v1650
    %v1786 = vunpack.c.l.b16 %v1651
    %v1787 = vunpack.c.l.b16 %v1652
    %v1788 = vunpack.c.l.b16 %v1653
    %v1789 = vunpack.c.l.b16 %v1654
    %v1790 = vunpack.c.l.b16 %v1655
    %v1791 = vunpack.c.l.b16 %v1656
    %v1792 = vunpack.c.l.b16 %v1657
    %v1793 = vunpack.c.l.b16 %v1658
    %v1794 = vunpack.c.l.b16 %v1659
    %v1795 = vunpack.c.l.b16 %v1660
    %v1796 = vunpack.c.l.b16 %v1661
    %v1797 = vunpack.c.l.b16 %v1662
    %v1798 = vunpack.c.l.b16 %v1663
    %v1799 = vunpack.c.l.b16 %v1664
    %v1800 = vunpack.c.l.b16 %v1665
    %v1801 = vunpack.c.l.b16 %v1666
    %v1802 = vunpack.c.l.b16 %v1667
    %v1803 = vunpack.c.l.b16 %v1668
    %v1804 = vunpack.c.l.b16 %v1669
    %v1805 = vunpack.c.l.b16 %v1670
    %v1806 = vunpack.c.l.b16 %v1671
    %v1807 = vunpack.c.l.b16 %v1672
    %v1808 = vunpack.c.l.b16 %v1673
    %v1809 = vunpack.c.l.b16 %v1674
    %v1810 = vunpack.c.l.b16 %v1675
    %v1811 = vunpack.c.l.b16 %v1676
    %v1812 = vunpack.c.l.b16 %v1677
    %v1813 = vunpack.c.l.b16 %v1678
    %v1814 = vunpack.c.l.b16 %v1679
    %v1815 = vpack.c.b16 %v1752, %v1751
    %v1816 = vpack.c.b16 %v1754, %v1753
    %v1817 = vpack.c.b16 %v1756, %v1755
    %v1818 = vpack.c.b16 %v1758, %v1757
    %v1819 = vpack.c.b16 %v1760, %v1759
    %v1820 = vpack.c.b16 %v1762, %v1761
    %v1821 = vpack.c.b16 %v1764, %v1763
    %v1822 = vpack.c.b16 %v1766, %v1765
    %v1823 = vpack.c.b16 %v1768, %v1767
    %v1824 = vpack.c.b16 %v1770, %v1769
    %v1825 = vpack.c.b16 %v1772, %v1771
    %v1826 = vpack.c.b16 %v1774, %v1773
    %v1827 = vpack.c.b16 %v1776, %v1775
    %v1828 = vpack.c.b16 %v1778, %v1777
    %v1829 = vpack.c.b16 %v1780, %v1779
    %v1830 = vpack.c.b16 %v1782, %v1781
    %v1831 = vpack.c.b16 %v1784, %v1783
    %v1832 = vpack.c.b16 %v1786, %v1785
    %v1833 = vpack.c.b16 %v1788, %v1787
    %v1834 = vpack.c.b16 %v1790, %v1789
    %v1835 = vpack.c.b16 %v1792, %v1791
    %v1836 = vpack.c.b16 %v1794, %v1793
    %v1837 = vpack.c.b16 %v1796, %v1795
    %v1838 = vpack.c.b16 %v1798, %v1797
    %v1839 = vpack.c.b16 %v1800, %v1799
    %v1840 = vpack.c.b16 %v1802, %v1801
    %v1841 = vpack.c.b16 %v1804, %v1803
    %v1842 = vpack.c.b16 %v1806, %v1805
    %v1843 = vpack.c.b16 %v1808, %v1807
    %v1844 = vpack.c.b16 %v1810, %v1809
    %v1845 = vpack.c.b16 %v1812, %v1811
    %v1846 = vpack.c.b16 %v1814, %v1813
    %1879 = vmatprep.subr.bf16.mxu0 0
    %1880 = vmatpush1.bf16.msra.mxu0 %v1822
    %1881 = vmatprep.subr.bf16.mxu0 0
    %1882 = vmatpush1.bf16.msra.mxu0 %v1821
    %1883 = vmatprep.subr.bf16.mxu0 0
    %1884 = vmatpush1.bf16.msra.mxu0 %v1820
    %1885 = vmatprep.subr.bf16.mxu0 0
    %1886 = vmatpush1.bf16.msra.mxu0 %v1819
    %1887 = vmatprep.subr.bf16.mxu0 0
    %1888 = vmatpush1.bf16.msra.mxu0 %v1818
    %1889 = vmatprep.subr.bf16.mxu0 0
    %1890 = vmatpush1.bf16.msra.mxu0 %v1817
    %1891 = vmatprep.subr.bf16.mxu0 0
    %1892 = vmatpush1.bf16.msra.mxu0 %v1816
    %1893 = vmatprep.subr.bf16.mxu0 0
    %1894 = vmatpush1.bf16.msra.mxu0 %v1815
    %1895 = vmatprep.subr.bf16.mxu0 0
    %1896 = vmatpush2.bf16.msra.mxu0 %v1830
    %1897 = vmatprep.subr.bf16.mxu0 0
    %1898 = vmatpush2.bf16.msra.mxu0 %v1829
    %1899 = vmatprep.subr.bf16.mxu0 0
    %1900 = vmatpush2.bf16.msra.mxu0 %v1828
    %1901 = vmatprep.subr.bf16.mxu0 0
    %1902 = vmatpush2.bf16.msra.mxu0 %v1827
    %1903 = vmatprep.subr.bf16.mxu0 0
    %1904 = vmatpush2.bf16.msra.mxu0 %v1826
    %1905 = vmatprep.subr.bf16.mxu0 0
    %1906 = vmatpush2.bf16.msra.mxu0 %v1825
    %1907 = vmatprep.subr.bf16.mxu0 0
    %1908 = vmatpush2.bf16.msra.mxu0 %v1824
    %1909 = vmatprep.subr.bf16.mxu0 0
    %1910 = vmatpush2.bf16.msra.mxu0 %v1823
    %1911 = vmatprep.mubr.bf16.mxu0 %v1613
    %1912 = vmatmul.mubr.bf16.gmra.mxu0 %v1612
    %v1913 = vpop.f32.mrf.mxu0
    %v1914 = vadd.f32 %v1685, %v1913
    %v1915 = vpop.f32.mrf.mxu0
    %v1916 = vpop.f32.mrf.mxu0
    %v1917 = vadd.f32 %v1685, %v1916
    %v1918 = vpop.f32.mrf.mxu0
    %1919 = vdwg.mxu0
    %1920 = vmatprep.subr.bf16.mxu0 0
    %1921 = vmatpush1.bf16.msra.mxu0 %v1838
    %1922 = vmatprep.subr.bf16.mxu0 0
    %1923 = vmatpush1.bf16.msra.mxu0 %v1837
    %1924 = vmatprep.subr.bf16.mxu0 0
    %1925 = vmatpush1.bf16.msra.mxu0 %v1836
    %1926 = vmatprep.subr.bf16.mxu0 0
    %1927 = vmatpush1.bf16.msra.mxu0 %v1835
    %1928 = vmatprep.subr.bf16.mxu0 0
    %1929 = vmatpush1.bf16.msra.mxu0 %v1834
    %1930 = vmatprep.subr.bf16.mxu0 0
    %1931 = vmatpush1.bf16.msra.mxu0 %v1833
    %1932 = vmatprep.subr.bf16.mxu0 0
    %1933 = vmatpush1.bf16.msra.mxu0 %v1832
    %1934 = vmatprep.subr.bf16.mxu0 0
    %1935 = vmatpush1.bf16.msra.mxu0 %v1831
    %1936 = vmatprep.subr.bf16.mxu0 0
    %1937 = vmatpush2.bf16.msra.mxu0 %v1846
    %1938 = vmatprep.subr.bf16.mxu0 0
    %1939 = vmatpush2.bf16.msra.mxu0 %v1845
    %1940 = vmatprep.subr.bf16.mxu0 0
    %1941 = vmatpush2.bf16.msra.mxu0 %v1844
    %1942 = vmatprep.subr.bf16.mxu0 0
    %1943 = vmatpush2.bf16.msra.mxu0 %v1843
    %1944 = vmatprep.subr.bf16.mxu0 0
    %1945 = vmatpush2.bf16.msra.mxu0 %v1842
    %1946 = vmatprep.subr.bf16.mxu0 0
    %1947 = vmatpush2.bf16.msra.mxu0 %v1841
    %1948 = vmatprep.subr.bf16.mxu0 0
    %1949 = vmatpush2.bf16.msra.mxu0 %v1840
    %1950 = vmatprep.subr.bf16.mxu0 0
    %1951 = vmatpush2.bf16.msra.mxu0 %v1839
    %1952 = vmatprep.mubr.bf16.mxu0 %v1615
    %1953 = vmatmul.mubr.bf16.gmra.mxu0 %v1614
    %v1954 = vpop.f32.mrf.mxu0
    %v1955 = vadd.f32 %v1914, %v1954
    %v1956 = vpop.f32.mrf.mxu0
    %v1957 = vpop.f32.mrf.mxu0
    %v1958 = vadd.f32 %v1917, %v1957
    %v1959 = vpop.f32.mrf.mxu0
    %1960 = vdwg.mxu0
    %v1961 = vld [vmem:[%s1] sm:$0xf]
    %v1962 = vld [vmem:[%s1 + $0x4] sm:$0xf]
    %v1963 = vunpack.c.l.bf16 %v1961
    %v1964 = vunpack.c.l.bf16 %v1962
    %v1965 = vadd.f32 %v1963, 1.0
    %v1966 = vadd.f32 %v1964, 1.0
    %v1967 = vmul.f32 %v1955, %v1965
    %v1968 = vmul.f32 %v1958, %v1966
    %v1969 = vpack.c.bf16 %v1968, %v1967
    %v1970 = vld [vmem:[%s6] sm:$0xff]
    %v1971 = vld [vmem:[%s6 + $0x8] sm:$0xff]
    %v1972 = vld [vmem:[%s6 + $0x10] sm:$0xff]
    %v1973 = vld [vmem:[%s6 + $0x18] sm:$0xff]
    %v1974 = vld [vmem:[%s6 + $0x20] sm:$0xff]
    %v1975 = vld [vmem:[%s6 + $0x28] sm:$0xff]
    %v1976 = vld [vmem:[%s6 + $0x30] sm:$0xff]
    %v1977 = vld [vmem:[%s6 + $0x38] sm:$0xff]
    %v1978 = vld [vmem:[%s6 + $0x40] sm:$0xff]
    %v1979 = vld [vmem:[%s6 + $0x48] sm:$0xff]
    %v1980 = vld [vmem:[%s6 + $0x50] sm:$0xff]
    %v1981 = vld [vmem:[%s6 + $0x58] sm:$0xff]
    %v1982 = vld [vmem:[%s6 + $0x60] sm:$0xff]
    %v1983 = vld [vmem:[%s6 + $0x68] sm:$0xff]
    %v1984 = vld [vmem:[%s6 + $0x70] sm:$0xff]
    %v1985 = vld [vmem:[%s6 + $0x78] sm:$0xff]
    %v1986 = vld [vmem:[%s6 + $0x80] sm:$0xff]
    %v1987 = vld [vmem:[%s6 + $0x88] sm:$0xff]
    %v1988 = vld [vmem:[%s6 + $0x90] sm:$0xff]
    %v1989 = vld [vmem:[%s6 + $0x98] sm:$0xff]
    %v1990 = vld [vmem:[%s6 + $0xa0] sm:$0xff]
    %v1991 = vld [vmem:[%s6 + $0xa8] sm:$0xff]
    %v1992 = vld [vmem:[%s6 + $0xb0] sm:$0xff]
    %v1993 = vld [vmem:[%s6 + $0xb8] sm:$0xff]
    %v1994 = vld [vmem:[%s6 + $0xc0] sm:$0xff]
    %v1995 = vld [vmem:[%s6 + $0xc8] sm:$0xff]
    %v1996 = vld [vmem:[%s6 + $0xd0] sm:$0xff]
    %v1997 = vld [vmem:[%s6 + $0xd8] sm:$0xff]
    %v1998 = vld [vmem:[%s6 + $0xe0] sm:$0xff]
    %v1999 = vld [vmem:[%s6 + $0xe8] sm:$0xff]
    %v2000 = vld [vmem:[%s6 + $0xf0] sm:$0xff]
    %v2001 = vld [vmem:[%s6 + $0xf8] sm:$0xff]
    %v2002 = vld [vmem:[%s7] sm:$0xf]
    %v2004 = vlaneseq
    %v2005 = vshrl.u32 %v2004, 7
    %v2006 = vsub.s32 0, %v2005
    %v2007 = vrot.slane %v2002, %v2006
    %v2008 = vlaneseq
    %v2009 = vshrl.u32 %v2008, 7
    %v2010 = vsub.s32 1, %v2009
    %v2011 = vrot.slane %v2002, %v2010
    %v2012 = vlaneseq
    %v2013 = vshrl.u32 %v2012, 7
    %v2014 = vsub.s32 2, %v2013
    %v2015 = vrot.slane %v2002, %v2014
    %v2016 = vlaneseq
    %v2017 = vshrl.u32 %v2016, 7
    %v2018 = vsub.s32 3, %v2017
    %v2019 = vrot.slane %v2002, %v2018
    %v2056 = vunpack.c.l.b16 %v1970
    %v2057 = vunpack.c.h.b16 %v1970
    %v2058 = vunpack.c.l.b16 %v1971
    %v2059 = vunpack.c.h.b16 %v1971
    %v2060 = vunpack.c.l.b16 %v1972
    %v2061 = vunpack.c.h.b16 %v1972
    %v2062 = vunpack.c.l.b16 %v1973
    %v2063 = vunpack.c.h.b16 %v1973
    %v2064 = vunpack.c.l.b16 %v1974
    %v2065 = vunpack.c.h.b16 %v1974
    %v2066 = vunpack.c.l.b16 %v1975
    %v2067 = vunpack.c.h.b16 %v1975
    %v2068 = vunpack.c.l.b16 %v1976
    %v2069 = vunpack.c.h.b16 %v1976
    %v2070 = vunpack.c.l.b16 %v1977
    %v2071 = vunpack.c.h.b16 %v1977
    %v2072 = vunpack.c.l.b16 %v1978
    %v2073 = vunpack.c.h.b16 %v1978
    %v2074 = vunpack.c.l.b16 %v1979
    %v2075 = vunpack.c.h.b16 %v1979
    %v2076 = vunpack.c.l.b16 %v1980
    %v2077 = vunpack.c.h.b16 %v1980
    %v2078 = vunpack.c.l.b16 %v1981
    %v2079 = vunpack.c.h.b16 %v1981
    %v2080 = vunpack.c.l.b16 %v1982
    %v2081 = vunpack.c.h.b16 %v1982
    %v2082 = vunpack.c.l.b16 %v1983
    %v2083 = vunpack.c.h.b16 %v1983
    %v2084 = vunpack.c.l.b16 %v1984
    %v2085 = vunpack.c.h.b16 %v1984
    %v2086 = vunpack.c.l.b16 %v1985
    %v2087 = vunpack.c.h.b16 %v1985
    %v2088 = vunpack.c.l.b16 %v1986
    %v2089 = vunpack.c.h.b16 %v1986
    %v2090 = vunpack.c.l.b16 %v1987
    %v2091 = vunpack.c.h.b16 %v1987
    %v2092 = vunpack.c.l.b16 %v1988
    %v2093 = vunpack.c.h.b16 %v1988
    %v2094 = vunpack.c.l.b16 %v1989
    %v2095 = vunpack.c.h.b16 %v1989
    %v2096 = vunpack.c.l.b16 %v1990
    %v2097 = vunpack.c.h.b16 %v1990
    %v2098 = vunpack.c.l.b16 %v1991
    %v2099 = vunpack.c.h.b16 %v1991
    %v2100 = vunpack.c.l.b16 %v1992
    %v2101 = vunpack.c.h.b16 %v1992
    %v2102 = vunpack.c.l.b16 %v1993
    %v2103 = vunpack.c.h.b16 %v1993
    %v2104 = vunpack.c.l.b16 %v1994
    %v2105 = vunpack.c.h.b16 %v1994
    %v2106 = vunpack.c.l.b16 %v1995
    %v2107 = vunpack.c.h.b16 %v1995
    %v2108 = vunpack.c.l.b16 %v1996
    %v2109 = vunpack.c.h.b16 %v1996
    %v2110 = vunpack.c.l.b16 %v1997
    %v2111 = vunpack.c.h.b16 %v1997
    %v2112 = vunpack.c.l.b16 %v1998
    %v2113 = vunpack.c.h.b16 %v1998
    %v2114 = vunpack.c.l.b16 %v1999
    %v2115 = vunpack.c.h.b16 %v1999
    %v2116 = vunpack.c.l.b16 %v2000
    %v2117 = vunpack.c.h.b16 %v2000
    %v2118 = vunpack.c.l.b16 %v2001
    %v2119 = vunpack.c.h.b16 %v2001
    %v2120 = vpack.c.b16 %v2060, %v2056
    %v2121 = vpack.c.b16 %v2061, %v2057
    %v2122 = vpack.c.b16 %v2062, %v2058
    %v2123 = vpack.c.b16 %v2063, %v2059
    %v2124 = vpack.c.b16 %v2068, %v2064
    %v2125 = vpack.c.b16 %v2069, %v2065
    %v2126 = vpack.c.b16 %v2070, %v2066
    %v2127 = vpack.c.b16 %v2071, %v2067
    %v2128 = vpack.c.b16 %v2076, %v2072
    %v2129 = vpack.c.b16 %v2077, %v2073
    %v2130 = vpack.c.b16 %v2078, %v2074
    %v2131 = vpack.c.b16 %v2079, %v2075
    %v2132 = vpack.c.b16 %v2084, %v2080
    %v2133 = vpack.c.b16 %v2085, %v2081
    %v2134 = vpack.c.b16 %v2086, %v2082
    %v2135 = vpack.c.b16 %v2087, %v2083
    %v2136 = vpack.c.b16 %v2092, %v2088
    %v2137 = vpack.c.b16 %v2093, %v2089
    %v2138 = vpack.c.b16 %v2094, %v2090
    %v2139 = vpack.c.b16 %v2095, %v2091
    %v2140 = vpack.c.b16 %v2100, %v2096
    %v2141 = vpack.c.b16 %v2101, %v2097
    %v2142 = vpack.c.b16 %v2102, %v2098
    %v2143 = vpack.c.b16 %v2103, %v2099
    %v2144 = vpack.c.b16 %v2108, %v2104
    %v2145 = vpack.c.b16 %v2109, %v2105
    %v2146 = vpack.c.b16 %v2110, %v2106
    %v2147 = vpack.c.b16 %v2111, %v2107
    %v2148 = vpack.c.b16 %v2116, %v2112
    %v2149 = vpack.c.b16 %v2117, %v2113
    %v2150 = vpack.c.b16 %v2118, %v2114
    %v2151 = vpack.c.b16 %v2119, %v2115
    %2184 = vmatprep.subr.bf16.mxu0 %v2149
    %2185 = vmatpush1.bf16.msra.mxu0 %v2148
    %2186 = vmatprep.subr.bf16.mxu0 %v2145
    %2187 = vmatpush1.bf16.msra.mxu0 %v2144
    %2188 = vmatprep.subr.bf16.mxu0 %v2141
    %2189 = vmatpush1.bf16.msra.mxu0 %v2140
    %2190 = vmatprep.subr.bf16.mxu0 %v2137
    %2191 = vmatpush1.bf16.msra.mxu0 %v2136
    %2192 = vmatprep.subr.bf16.mxu0 %v2133
    %2193 = vmatpush1.bf16.msra.mxu0 %v2132
    %2194 = vmatprep.subr.bf16.mxu0 %v2129
    %2195 = vmatpush1.bf16.msra.mxu0 %v2128
    %2196 = vmatprep.subr.bf16.mxu0 %v2125
    %2197 = vmatpush1.bf16.msra.mxu0 %v2124
    %2198 = vmatprep.subr.bf16.mxu0 %v2121
    %2199 = vmatpush1.bf16.msra.mxu0 %v2120
    %2200 = vmatprep.subr.bf16.mxu0 0
    %2201 = vmatpush2.bf16.msra.mxu0 0
    %2202 = vmatprep.subr.bf16.mxu0 0
    %2203 = vmatpush2.bf16.msra.mxu0 0
    %2204 = vmatprep.subr.bf16.mxu0 0
    %2205 = vmatpush2.bf16.msra.mxu0 0
    %2206 = vmatprep.subr.bf16.mxu0 0
    %2207 = vmatpush2.bf16.msra.mxu0 0
    %2208 = vmatprep.subr.bf16.mxu0 0
    %2209 = vmatpush2.bf16.msra.mxu0 0
    %2210 = vmatprep.subr.bf16.mxu0 0
    %2211 = vmatpush2.bf16.msra.mxu0 0
    %2212 = vmatprep.subr.bf16.mxu0 0
    %2213 = vmatpush2.bf16.msra.mxu0 0
    %2214 = vmatprep.subr.bf16.mxu0 0
    %2215 = vmatpush2.bf16.msra.mxu0 0
    %2216 = vmatprep.mubr.bf16.mxu0 0
    %2217 = vmatmul.mubr.bf16.gmra.mxu0 %v1969
    %v2218 = vpop.f32.mrf.mxu0
    %v2219 = vadd.f32 %v2007, %v2218
    %v2220 = vpop.f32.mrf.mxu0
    %v2221 = vadd.f32 %v2011, %v2220
    %v2222 = vpop.f32.mrf.mxu0
    %v2223 = vadd.f32 %v2007, %v2222
    %v2224 = vpop.f32.mrf.mxu0
    %v2225 = vadd.f32 %v2011, %v2224
    %2226 = vdwg.mxu0
    %2227 = vmatprep.subr.bf16.mxu0 %v2151
    %2228 = vmatpush1.bf16.msra.mxu0 %v2150
    %2229 = vmatprep.subr.bf16.mxu0 %v2147
    %2230 = vmatpush1.bf16.msra.mxu0 %v2146
    %2231 = vmatprep.subr.bf16.mxu0 %v2143
    %2232 = vmatpush1.bf16.msra.mxu0 %v2142
    %2233 = vmatprep.subr.bf16.mxu0 %v2139
    %2234 = vmatpush1.bf16.msra.mxu0 %v2138
    %2235 = vmatprep.subr.bf16.mxu0 %v2135
    %2236 = vmatpush1.bf16.msra.mxu0 %v2134
    %2237 = vmatprep.subr.bf16.mxu0 %v2131
    %2238 = vmatpush1.bf16.msra.mxu0 %v2130
    %2239 = vmatprep.subr.bf16.mxu0 %v2127
    %2240 = vmatpush1.bf16.msra.mxu0 %v2126
    %2241 = vmatprep.subr.bf16.mxu0 %v2123
    %2242 = vmatpush1.bf16.msra.mxu0 %v2122
    %2243 = vmatprep.subr.bf16.mxu0 0
    %2244 = vmatpush2.bf16.msra.mxu0 0
    %2245 = vmatprep.subr.bf16.mxu0 0
    %2246 = vmatpush2.bf16.msra.mxu0 0
    %2247 = vmatprep.subr.bf16.mxu0 0
    %2248 = vmatpush2.bf16.msra.mxu0 0
    %2249 = vmatprep.subr.bf16.mxu0 0
    %2250 = vmatpush2.bf16.msra.mxu0 0
    %2251 = vmatprep.subr.bf16.mxu0 0
    %2252 = vmatpush2.bf16.msra.mxu0 0
    %2253 = vmatprep.subr.bf16.mxu0 0
    %2254 = vmatpush2.bf16.msra.mxu0 0
    %2255 = vmatprep.subr.bf16.mxu0 0
    %2256 = vmatpush2.bf16.msra.mxu0 0
    %2257 = vmatprep.subr.bf16.mxu0 0
    %2258 = vmatpush2.bf16.msra.mxu0 0
    %2259 = vmatprep.mubr.bf16.mxu0 0
    %2260 = vmatmul.mubr.bf16.gmra.mxu0 %v1969
    %v2261 = vpop.f32.mrf.mxu0
    %v2262 = vadd.f32 %v2015, %v2261
    %v2263 = vpop.f32.mrf.mxu0
    %v2264 = vadd.f32 %v2019, %v2263
    %v2265 = vpop.f32.mrf.mxu0
    %v2266 = vadd.f32 %v2015, %v2265
    %v2267 = vpop.f32.mrf.mxu0
    %v2268 = vadd.f32 %v2019, %v2267
    %2269 = vdwg.mxu0
    %v2270 = vmax.f32 %v2219, 0.0
    %v2271 = vmax.f32 %v2221, 0.0
    %v2272 = vmax.f32 %v2262, 0.0
    %v2273 = vmax.f32 %v2264, 0.0
    %v2274 = vmax.f32 %v2223, 0.0
    %v2275 = vmax.f32 %v2225, 0.0
    %v2276 = vmax.f32 %v2266, 0.0
    %v2277 = vmax.f32 %v2268, 0.0
    %v2278 = vpack.c.bf16 %v2274, %v2270
    %v2279 = vpack.c.bf16 %v2275, %v2271
    %v2280 = vpack.c.bf16 %v2276, %v2272
    %v2281 = vpack.c.bf16 %v2277, %v2273
    %v2282 = vld [vmem:[%s8] sm:$0xff]
    %v2283 = vld [vmem:[%s8 + $0x8] sm:$0xff]
    %v2284 = vld [vmem:[%s8 + $0x10] sm:$0xff]
    %v2285 = vld [vmem:[%s8 + $0x18] sm:$0xf]
    %v2286 = vld [vmem:[%s8 + $0x1c] sm:$0xff]
    %v2287 = vld [vmem:[%s8 + $0x24] sm:$0xff]
    %v2288 = vld [vmem:[%s8 + $0x2c] sm:$0xff]
    %v2289 = vld [vmem:[%s8 + $0x34] sm:$0xf]
    %v2290 = vld [vmem:[%s8 + $0x38] sm:$0xff]
    %v2291 = vld [vmem:[%s8 + $0x40] sm:$0xff]
    %v2292 = vld [vmem:[%s8 + $0x48] sm:$0xff]
    %v2293 = vld [vmem:[%s8 + $0x50] sm:$0xf]
    %v2294 = vld [vmem:[%s8 + $0x54] sm:$0xff]
    %v2295 = vld [vmem:[%s8 + $0x5c] sm:$0xff]
    %v2296 = vld [vmem:[%s8 + $0x64] sm:$0xff]
    %v2297 = vld [vmem:[%s8 + $0x6c] sm:$0xf]
    %v2298 = vld [vmem:[%s8 + $0x70] sm:$0xff]
    %v2299 = vld [vmem:[%s8 + $0x78] sm:$0xff]
    %v2300 = vld [vmem:[%s8 + $0x80] sm:$0xff]
    %v2301 = vld [vmem:[%s8 + $0x88] sm:$0xf]
    %v2302 = vld [vmem:[%s8 + $0x8c] sm:$0xff]
    %v2303 = vld [vmem:[%s8 + $0x94] sm:$0xff]
    %v2304 = vld [vmem:[%s8 + $0x9c] sm:$0xff]
    %v2305 = vld [vmem:[%s8 + $0xa4] sm:$0xf]
    %v2306 = vld [vmem:[%s8 + $0xa8] sm:$0xff]
    %v2307 = vld [vmem:[%s8 + $0xb0] sm:$0xff]
    %v2308 = vld [vmem:[%s8 + $0xb8] sm:$0xff]
    %v2309 = vld [vmem:[%s8 + $0xc0] sm:$0xf]
    %v2310 = vld [vmem:[%s8 + $0xc4] sm:$0xff]
    %v2311 = vld [vmem:[%s8 + $0xcc] sm:$0xff]
    %v2312 = vld [vmem:[%s8 + $0xd4] sm:$0xff]
    %v2313 = vld [vmem:[%s8 + $0xdc] sm:$0xf]
    %v2314 = vld [vmem:[%s8 + $0xe0] sm:$0xff]
    %v2315 = vld [vmem:[%s8 + $0xe8] sm:$0xff]
    %v2316 = vld [vmem:[%s8 + $0xf0] sm:$0xff]
    %v2317 = vld [vmem:[%s8 + $0xf8] sm:$0xf]
    %v2318 = vld [vmem:[%s8 + $0xfc] sm:$0xff]
    %v2319 = vld [vmem:[%s8 + $0x104] sm:$0xff]
    %v2320 = vld [vmem:[%s8 + $0x10c] sm:$0xff]
    %v2321 = vld [vmem:[%s8 + $0x114] sm:$0xf]
    %v2322 = vld [vmem:[%s8 + $0x118] sm:$0xff]
    %v2323 = vld [vmem:[%s8 + $0x120] sm:$0xff]
    %v2324 = vld [vmem:[%s8 + $0x128] sm:$0xff]
    %v2325 = vld [vmem:[%s8 + $0x130] sm:$0xf]
    %v2326 = vld [vmem:[%s8 + $0x134] sm:$0xff]
    %v2327 = vld [vmem:[%s8 + $0x13c] sm:$0xff]
    %v2328 = vld [vmem:[%s8 + $0x144] sm:$0xff]
    %v2329 = vld [vmem:[%s8 + $0x14c] sm:$0xf]
    %v2330 = vld [vmem:[%s8 + $0x150] sm:$0xff]
    %v2331 = vld [vmem:[%s8 + $0x158] sm:$0xff]
    %v2332 = vld [vmem:[%s8 + $0x160] sm:$0xff]
    %v2333 = vld [vmem:[%s8 + $0x168] sm:$0xf]
    %v2334 = vld [vmem:[%s8 + $0x16c] sm:$0xff]
    %v2335 = vld [vmem:[%s8 + $0x174] sm:$0xff]
    %v2336 = vld [vmem:[%s8 + $0x17c] sm:$0xff]
    %v2337 = vld [vmem:[%s8 + $0x184] sm:$0xf]
    %v2338 = vld [vmem:[%s8 + $0x188] sm:$0xff]
    %v2339 = vld [vmem:[%s8 + $0x190] sm:$0xff]
    %v2340 = vld [vmem:[%s8 + $0x198] sm:$0xff]
    %v2341 = vld [vmem:[%s8 + $0x1a0] sm:$0xf]
    %v2342 = vld [vmem:[%s8 + $0x1a4] sm:$0xff]
    %v2343 = vld [vmem:[%s8 + $0x1ac] sm:$0xff]
    %v2344 = vld [vmem:[%s8 + $0x1b4] sm:$0xff]
    %v2345 = vld [vmem:[%s8 + $0x1bc] sm:$0xf]
    %v2346 = vld [vmem:[%s8 + $0x1c0] sm:$0xff]
    %v2347 = vld [vmem:[%s8 + $0x1c8] sm:$0xff]
    %v2348 = vld [vmem:[%s8 + $0x1d0] sm:$0xff]
    %v2349 = vld [vmem:[%s8 + $0x1d8] sm:$0xf]
    %v2350 = vld [vmem:[%s8 + $0x1dc] sm:$0xff]
    %v2351 = vld [vmem:[%s8 + $0x1e4] sm:$0xff]
    %v2352 = vld [vmem:[%s8 + $0x1ec] sm:$0xff]
    %v2353 = vld [vmem:[%s8 + $0x1f4] sm:$0xf]
    %v2354 = vld [vmem:[%s8 + $0x1f8] sm:$0xff]
    %v2355 = vld [vmem:[%s8 + $0x200] sm:$0xff]
    %v2356 = vld [vmem:[%s8 + $0x208] sm:$0xff]
    %v2357 = vld [vmem:[%s8 + $0x210] sm:$0xf]
    %v2358 = vld [vmem:[%s8 + $0x214] sm:$0xff]
    %v2359 = vld [vmem:[%s8 + $0x21c] sm:$0xff]
    %v2360 = vld [vmem:[%s8 + $0x224] sm:$0xff]
    %v2361 = vld [vmem:[%s8 + $0x22c] sm:$0xf]
    %v2362 = vld [vmem:[%s8 + $0x230] sm:$0xff]
    %v2363 = vld [vmem:[%s8 + $0x238] sm:$0xff]
    %v2364 = vld [vmem:[%s8 + $0x240] sm:$0xff]
    %v2365 = vld [vmem:[%s8 + $0x248] sm:$0xf]
    %v2366 = vld [vmem:[%s8 + $0x24c] sm:$0xff]
    %v2367 = vld [vmem:[%s8 + $0x254] sm:$0xff]
    %v2368 = vld [vmem:[%s8 + $0x25c] sm:$0xff]
    %v2369 = vld [vmem:[%s8 + $0x264] sm:$0xf]
    %v2370 = vld [vmem:[%s8 + $0x268] sm:$0xff]
    %v2371 = vld [vmem:[%s8 + $0x270] sm:$0xff]
    %v2372 = vld [vmem:[%s8 + $0x278] sm:$0xff]
    %v2373 = vld [vmem:[%s8 + $0x280] sm:$0xf]
    %v2374 = vld [vmem:[%s8 + $0x284] sm:$0xff]
    %v2375 = vld [vmem:[%s8 + $0x28c] sm:$0xff]
    %v2376 = vld [vmem:[%s8 + $0x294] sm:$0xff]
    %v2377 = vld [vmem:[%s8 + $0x29c] sm:$0xf]
    %v2378 = vld [vmem:[%s8 + $0x2a0] sm:$0xff]
    %v2379 = vld [vmem:[%s8 + $0x2a8] sm:$0xff]
    %v2380 = vld [vmem:[%s8 + $0x2b0] sm:$0xff]
    %v2381 = vld [vmem:[%s8 + $0x2b8] sm:$0xf]
    %v2382 = vld [vmem:[%s8 + $0x2bc] sm:$0xff]
    %v2383 = vld [vmem:[%s8 + $0x2c4] sm:$0xff]
    %v2384 = vld [vmem:[%s8 + $0x2cc] sm:$0xff]
    %v2385 = vld [vmem:[%s8 + $0x2d4] sm:$0xf]
    %v2386 = vld [vmem:[%s8 + $0x2d8] sm:$0xff]
    %v2387 = vld [vmem:[%s8 + $0x2e0] sm:$0xff]
    %v2388 = vld [vmem:[%s8 + $0x2e8] sm:$0xff]
    %v2389 = vld [vmem:[%s8 + $0x2f0] sm:$0xf]
    %v2390 = vld [vmem:[%s8 + $0x2f4] sm:$0xff]
    %v2391 = vld [vmem:[%s8 + $0x2fc] sm:$0xff]
    %v2392 = vld [vmem:[%s8 + $0x304] sm:$0xff]
    %v2393 = vld [vmem:[%s8 + $0x30c] sm:$0xf]
    %v2394 = vld [vmem:[%s8 + $0x310] sm:$0xff]
    %v2395 = vld [vmem:[%s8 + $0x318] sm:$0xff]
    %v2396 = vld [vmem:[%s8 + $0x320] sm:$0xff]
    %v2397 = vld [vmem:[%s8 + $0x328] sm:$0xf]
    %v2398 = vld [vmem:[%s8 + $0x32c] sm:$0xff]
    %v2399 = vld [vmem:[%s8 + $0x334] sm:$0xff]
    %v2400 = vld [vmem:[%s8 + $0x33c] sm:$0xff]
    %v2401 = vld [vmem:[%s8 + $0x344] sm:$0xf]
    %v2402 = vld [vmem:[%s8 + $0x348] sm:$0xff]
    %v2403 = vld [vmem:[%s8 + $0x350] sm:$0xff]
    %v2404 = vld [vmem:[%s8 + $0x358] sm:$0xff]
    %v2405 = vld [vmem:[%s8 + $0x360] sm:$0xf]
    %v2406 = vld [vmem:[%s8 + $0x364] sm:$0xff]
    %v2407 = vld [vmem:[%s8 + $0x36c] sm:$0xff]
    %v2408 = vld [vmem:[%s8 + $0x374] sm:$0xff]
    %v2409 = vld [vmem:[%s8 + $0x37c] sm:$0xf]
    %v2410 = vld [vmem:[%s8 + $0x380] sm:$0xff]
    %v2411 = vld [vmem:[%s8 + $0x388] sm:$0xff]
    %v2412 = vld [vmem:[%s8 + $0x390] sm:$0xff]
    %v2413 = vld [vmem:[%s8 + $0x398] sm:$0xf]
    %v2414 = vld [vmem:[%s8 + $0x39c] sm:$0xff]
    %v2415 = vld [vmem:[%s8 + $0x3a4] sm:$0xff]
    %v2416 = vld [vmem:[%s8 + $0x3ac] sm:$0xff]
    %v2417 = vld [vmem:[%s8 + $0x3b4] sm:$0xf]
    %v2418 = vld [vmem:[%s8 + $0x3b8] sm:$0xff]
    %v2419 = vld [vmem:[%s8 + $0x3c0] sm:$0xff]
    %v2420 = vld [vmem:[%s8 + $0x3c8] sm:$0xff]
    %v2421 = vld [vmem:[%s8 + $0x3d0] sm:$0xf]
    %v2422 = vld [vmem:[%s8 + $0x3d4] sm:$0xff]
    %v2423 = vld [vmem:[%s8 + $0x3dc] sm:$0xff]
    %v2424 = vld [vmem:[%s8 + $0x3e4] sm:$0xff]
    %v2425 = vld [vmem:[%s8 + $0x3ec] sm:$0xf]
    %v2426 = vld [vmem:[%s8 + $0x3f0] sm:$0xff]
    %v2427 = vld [vmem:[%s8 + $0x3f8] sm:$0xff]
    %v2428 = vld [vmem:[%s8 + $0x400] sm:$0xff]
    %v2429 = vld [vmem:[%s8 + $0x408] sm:$0xf]
    %v2430 = vld [vmem:[%s8 + $0x40c] sm:$0xff]
    %v2431 = vld [vmem:[%s8 + $0x414] sm:$0xff]
    %v2432 = vld [vmem:[%s8 + $0x41c] sm:$0xff]
    %v2433 = vld [vmem:[%s8 + $0x424] sm:$0xf]
    %v2434 = vld [vmem:[%s8 + $0x428] sm:$0xff]
    %v2435 = vld [vmem:[%s8 + $0x430] sm:$0xff]
    %v2436 = vld [vmem:[%s8 + $0x438] sm:$0xff]
    %v2437 = vld [vmem:[%s8 + $0x440] sm:$0xf]
    %v2438 = vld [vmem:[%s8 + $0x444] sm:$0xff]
    %v2439 = vld [vmem:[%s8 + $0x44c] sm:$0xff]
    %v2440 = vld [vmem:[%s8 + $0x454] sm:$0xff]
    %v2441 = vld [vmem:[%s8 + $0x45c] sm:$0xf]
    %v2442 = vld [vmem:[%s8 + $0x460] sm:$0xff]
    %v2443 = vld [vmem:[%s8 + $0x468] sm:$0xff]
    %v2444 = vld [vmem:[%s8 + $0x470] sm:$0xff]
    %v2445 = vld [vmem:[%s8 + $0x478] sm:$0xf]
    %v2446 = vld [vmem:[%s8 + $0x47c] sm:$0xff]
    %v2447 = vld [vmem:[%s8 + $0x484] sm:$0xff]
    %v2448 = vld [vmem:[%s8 + $0x48c] sm:$0xff]
    %v2449 = vld [vmem:[%s8 + $0x494] sm:$0xf]
    %v2450 = vld [vmem:[%s8 + $0x498] sm:$0xff]
    %v2451 = vld [vmem:[%s8 + $0x4a0] sm:$0xff]
    %v2452 = vld [vmem:[%s8 + $0x4a8] sm:$0xff]
    %v2453 = vld [vmem:[%s8 + $0x4b0] sm:$0xf]
    %v2454 = vld [vmem:[%s8 + $0x4b4] sm:$0xff]
    %v2455 = vld [vmem:[%s8 + $0x4bc] sm:$0xff]
    %v2456 = vld [vmem:[%s8 + $0x4c4] sm:$0xff]
    %v2457 = vld [vmem:[%s8 + $0x4cc] sm:$0xf]
    %v2458 = vld [vmem:[%s8 + $0x4d0] sm:$0xff]
    %v2459 = vld [vmem:[%s8 + $0x4d8] sm:$0xff]
    %v2460 = vld [vmem:[%s8 + $0x4e0] sm:$0xff]
    %v2461 = vld [vmem:[%s8 + $0x4e8] sm:$0xf]
    %v2462 = vld [vmem:[%s8 + $0x4ec] sm:$0xff]
    %v2463 = vld [vmem:[%s8 + $0x4f4] sm:$0xff]
    %v2464 = vld [vmem:[%s8 + $0x4fc] sm:$0xff]
    %v2465 = vld [vmem:[%s8 + $0x504] sm:$0xf]
    %v2466 = vld [vmem:[%s8 + $0x508] sm:$0xff]
    %v2467 = vld [vmem:[%s8 + $0x510] sm:$0xff]
    %v2468 = vld [vmem:[%s8 + $0x518] sm:$0xff]
    %v2469 = vld [vmem:[%s8 + $0x520] sm:$0xf]
    %v2470 = vld [vmem:[%s8 + $0x524] sm:$0xff]
    %v2471 = vld [vmem:[%s8 + $0x52c] sm:$0xff]
    %v2472 = vld [vmem:[%s8 + $0x534] sm:$0xff]
    %v2473 = vld [vmem:[%s8 + $0x53c] sm:$0xf]
    %v2474 = vld [vmem:[%s8 + $0x540] sm:$0xff]
    %v2475 = vld [vmem:[%s8 + $0x548] sm:$0xff]
    %v2476 = vld [vmem:[%s8 + $0x550] sm:$0xff]
    %v2477 = vld [vmem:[%s8 + $0x558] sm:$0xf]
    %v2478 = vld [vmem:[%s8 + $0x55c] sm:$0xff]
    %v2479 = vld [vmem:[%s8 + $0x564] sm:$0xff]
    %v2480 = vld [vmem:[%s8 + $0x56c] sm:$0xff]
    %v2481 = vld [vmem:[%s8 + $0x574] sm:$0xf]
    %v2482 = vld [vmem:[%s8 + $0x578] sm:$0xff]
    %v2483 = vld [vmem:[%s8 + $0x580] sm:$0xff]
    %v2484 = vld [vmem:[%s8 + $0x588] sm:$0xff]
    %v2485 = vld [vmem:[%s8 + $0x590] sm:$0xf]
    %v2486 = vld [vmem:[%s8 + $0x594] sm:$0xff]
    %v2487 = vld [vmem:[%s8 + $0x59c] sm:$0xff]
    %v2488 = vld [vmem:[%s8 + $0x5a4] sm:$0xff]
    %v2489 = vld [vmem:[%s8 + $0x5ac] sm:$0xf]
    %v2490 = vld [vmem:[%s8 + $0x5b0] sm:$0xff]
    %v2491 = vld [vmem:[%s8 + $0x5b8] sm:$0xff]
    %v2492 = vld [vmem:[%s8 + $0x5c0] sm:$0xff]
    %v2493 = vld [vmem:[%s8 + $0x5c8] sm:$0xf]
    %v2494 = vld [vmem:[%s8 + $0x5cc] sm:$0xff]
    %v2495 = vld [vmem:[%s8 + $0x5d4] sm:$0xff]
    %v2496 = vld [vmem:[%s8 + $0x5dc] sm:$0xff]
    %v2497 = vld [vmem:[%s8 + $0x5e4] sm:$0xf]
    %v2498 = vld [vmem:[%s8 + $0x5e8] sm:$0xff]
    %v2499 = vld [vmem:[%s8 + $0x5f0] sm:$0xff]
    %v2500 = vld [vmem:[%s8 + $0x5f8] sm:$0xff]
    %v2501 = vld [vmem:[%s8 + $0x600] sm:$0xf]
    %v2502 = vld [vmem:[%s8 + $0x604] sm:$0xff]
    %v2503 = vld [vmem:[%s8 + $0x60c] sm:$0xff]
    %v2504 = vld [vmem:[%s8 + $0x614] sm:$0xff]
    %v2505 = vld [vmem:[%s8 + $0x61c] sm:$0xf]
    %v2506 = vld [vmem:[%s8 + $0x620] sm:$0xff]
    %v2507 = vld [vmem:[%s8 + $0x628] sm:$0xff]
    %v2508 = vld [vmem:[%s8 + $0x630] sm:$0xff]
    %v2509 = vld [vmem:[%s8 + $0x638] sm:$0xf]
    %v2510 = vld [vmem:[%s8 + $0x63c] sm:$0xff]
    %v2511 = vld [vmem:[%s8 + $0x644] sm:$0xff]
    %v2512 = vld [vmem:[%s8 + $0x64c] sm:$0xff]
    %v2513 = vld [vmem:[%s8 + $0x654] sm:$0xf]
    %v2514 = vld [vmem:[%s8 + $0x658] sm:$0xff]
    %v2515 = vld [vmem:[%s8 + $0x660] sm:$0xff]
    %v2516 = vld [vmem:[%s8 + $0x668] sm:$0xff]
    %v2517 = vld [vmem:[%s8 + $0x670] sm:$0xf]
    %v2518 = vld [vmem:[%s8 + $0x674] sm:$0xff]
    %v2519 = vld [vmem:[%s8 + $0x67c] sm:$0xff]
    %v2520 = vld [vmem:[%s8 + $0x684] sm:$0xff]
    %v2521 = vld [vmem:[%s8 + $0x68c] sm:$0xf]
    %v2522 = vld [vmem:[%s8 + $0x690] sm:$0xff]
    %v2523 = vld [vmem:[%s8 + $0x698] sm:$0xff]
    %v2524 = vld [vmem:[%s8 + $0x6a0] sm:$0xff]
    %v2525 = vld [vmem:[%s8 + $0x6a8] sm:$0xf]
    %v2526 = vld [vmem:[%s8 + $0x6ac] sm:$0xff]
    %v2527 = vld [vmem:[%s8 + $0x6b4] sm:$0xff]
    %v2528 = vld [vmem:[%s8 + $0x6bc] sm:$0xff]
    %v2529 = vld [vmem:[%s8 + $0x6c4] sm:$0xf]
    %v2530 = vld [vmem:[%s8 + $0x6c8] sm:$0xff]
    %v2531 = vld [vmem:[%s8 + $0x6d0] sm:$0xff]
    %v2532 = vld [vmem:[%s8 + $0x6d8] sm:$0xff]
    %v2533 = vld [vmem:[%s8 + $0x6e0] sm:$0xf]
    %v2534 = vld [vmem:[%s8 + $0x6e4] sm:$0xff]
    %v2535 = vld [vmem:[%s8 + $0x6ec] sm:$0xff]
    %v2536 = vld [vmem:[%s8 + $0x6f4] sm:$0xff]
    %v2537 = vld [vmem:[%s8 + $0x6fc] sm:$0xf]
    %v2538 = vld [vmem:[%s9] sm:$0x7f]
    %v2540 = vlaneseq
    %v2541 = vshrl.u32 %v2540, 7
    %v2542 = vsub.s32 0, %v2541
    %v2543 = vrot.slane %v2538, %v2542
    %v2544 = vlaneseq
    %v2545 = vshrl.u32 %v2544, 7
    %v2546 = vsub.s32 1, %v2545
    %v2547 = vrot.slane %v2538, %v2546
    %v2548 = vlaneseq
    %v2549 = vshrl.u32 %v2548, 7
    %v2550 = vsub.s32 2, %v2549
    %v2551 = vrot.slane %v2538, %v2550
    %v2552 = vlaneseq
    %v2553 = vshrl.u32 %v2552, 7
    %v2554 = vsub.s32 3, %v2553
    %v2555 = vrot.slane %v2538, %v2554
    %v2556 = vlaneseq
    %v2557 = vshrl.u32 %v2556, 7
    %v2558 = vsub.s32 4, %v2557
    %v2559 = vrot.slane %v2538, %v2558
    %v2560 = vlaneseq
    %v2561 = vshrl.u32 %v2560, 7
    %v2562 = vsub.s32 5, %v2561
    %v2563 = vrot.slane %v2538, %v2562
    %v2564 = vlaneseq
    %v2565 = vshrl.u32 %v2564, 7
    %v2566 = vsub.s32 6, %v2565
    %v2567 = vrot.slane %v2538, %v2566
    %v2831 = vunpack.c.l.b16 %v2282
    %v2832 = vunpack.c.h.b16 %v2282
    %v2833 = vunpack.c.l.b16 %v2283
    %v2834 = vunpack.c.h.b16 %v2283
    %v2835 = vunpack.c.l.b16 %v2284
    %v2836 = vunpack.c.h.b16 %v2284
    %v2837 = vunpack.c.l.b16 %v2285
    %v2838 = vunpack.c.l.b16 %v2286
    %v2839 = vunpack.c.h.b16 %v2286
    %v2840 = vunpack.c.l.b16 %v2287
    %v2841 = vunpack.c.h.b16 %v2287
    %v2842 = vunpack.c.l.b16 %v2288
    %v2843 = vunpack.c.h.b16 %v2288
    %v2844 = vunpack.c.l.b16 %v2289
    %v2845 = vunpack.c.l.b16 %v2290
    %v2846 = vunpack.c.h.b16 %v2290
    %v2847 = vunpack.c.l.b16 %v2291
    %v2848 = vunpack.c.h.b16 %v2291
    %v2849 = vunpack.c.l.b16 %v2292
    %v2850 = vunpack.c.h.b16 %v2292
    %v2851 = vunpack.c.l.b16 %v2293
    %v2852 = vunpack.c.l.b16 %v2294
    %v2853 = vunpack.c.h.b16 %v2294
    %v2854 = vunpack.c.l.b16 %v2295
    %v2855 = vunpack.c.h.b16 %v2295
    %v2856 = vunpack.c.l.b16 %v2296
    %v2857 = vunpack.c.h.b16 %v2296
    %v2858 = vunpack.c.l.b16 %v2297
    %v2859 = vunpack.c.l.b16 %v2298
    %v2860 = vunpack.c.h.b16 %v2298
    %v2861 = vunpack.c.l.b16 %v2299
    %v2862 = vunpack.c.h.b16 %v2299
    %v2863 = vunpack.c.l.b16 %v2300
    %v2864 = vunpack.c.h.b16 %v2300
    %v2865 = vunpack.c.l.b16 %v2301
    %v2866 = vunpack.c.l.b16 %v2302
    %v2867 = vunpack.c.h.b16 %v2302
    %v2868 = vunpack.c.l.b16 %v2303
    %v2869 = vunpack.c.h.b16 %v2303
    %v2870 = vunpack.c.l.b16 %v2304
    %v2871 = vunpack.c.h.b16 %v2304
    %v2872 = vunpack.c.l.b16 %v2305
    %v2873 = vunpack.c.l.b16 %v2306
    %v2874 = vunpack.c.h.b16 %v2306
    %v2875 = vunpack.c.l.b16 %v2307
    %v2876 = vunpack.c.h.b16 %v2307
    %v2877 = vunpack.c.l.b16 %v2308
    %v2878 = vunpack.c.h.b16 %v2308
    %v2879 = vunpack.c.l.b16 %v2309
    %v2880 = vunpack.c.l.b16 %v2310
    %v2881 = vunpack.c.h.b16 %v2310
    %v2882 = vunpack.c.l.b16 %v2311
    %v2883 = vunpack.c.h.b16 %v2311
    %v2884 = vunpack.c.l.b16 %v2312
    %v2885 = vunpack.c.h.b16 %v2312
    %v2886 = vunpack.c.l.b16 %v2313
    %v2887 = vunpack.c.l.b16 %v2314
    %v2888 = vunpack.c.h.b16 %v2314
    %v2889 = vunpack.c.l.b16 %v2315
    %v2890 = vunpack.c.h.b16 %v2315
    %v2891 = vunpack.c.l.b16 %v2316
    %v2892 = vunpack.c.h.b16 %v2316
    %v2893 = vunpack.c.l.b16 %v2317
    %v2894 = vunpack.c.l.b16 %v2318
    %v2895 = vunpack.c.h.b16 %v2318
    %v2896 = vunpack.c.l.b16 %v2319
    %v2897 = vunpack.c.h.b16 %v2319
    %v2898 = vunpack.c.l.b16 %v2320
    %v2899 = vunpack.c.h.b16 %v2320
    %v2900 = vunpack.c.l.b16 %v2321
    %v2901 = vunpack.c.l.b16 %v2322
    %v2902 = vunpack.c.h.b16 %v2322
    %v2903 = vunpack.c.l.b16 %v2323
    %v2904 = vunpack.c.h.b16 %v2323
    %v2905 = vunpack.c.l.b16 %v2324
    %v2906 = vunpack.c.h.b16 %v2324
    %v2907 = vunpack.c.l.b16 %v2325
    %v2908 = vunpack.c.l.b16 %v2326
    %v2909 = vunpack.c.h.b16 %v2326
    %v2910 = vunpack.c.l.b16 %v2327
    %v2911 = vunpack.c.h.b16 %v2327
    %v2912 = vunpack.c.l.b16 %v2328
    %v2913 = vunpack.c.h.b16 %v2328
    %v2914 = vunpack.c.l.b16 %v2329
    %v2915 = vunpack.c.l.b16 %v2330
    %v2916 = vunpack.c.h.b16 %v2330
    %v2917 = vunpack.c.l.b16 %v2331
    %v2918 = vunpack.c.h.b16 %v2331
    %v2919 = vunpack.c.l.b16 %v2332
    %v2920 = vunpack.c.h.b16 %v2332
    %v2921 = vunpack.c.l.b16 %v2333
    %v2922 = vunpack.c.l.b16 %v2334
    %v2923 = vunpack.c.h.b16 %v2334
    %v2924 = vunpack.c.l.b16 %v2335
    %v2925 = vunpack.c.h.b16 %v2335
    %v2926 = vunpack.c.l.b16 %v2336
    %v2927 = vunpack.c.h.b16 %v2336
    %v2928 = vunpack.c.l.b16 %v2337
    %v2929 = vunpack.c.l.b16 %v2338
    %v2930 = vunpack.c.h.b16 %v2338
    %v2931 = vunpack.c.l.b16 %v2339
    %v2932 = vunpack.c.h.b16 %v2339
    %v2933 = vunpack.c.l.b16 %v2340
    %v2934 = vunpack.c.h.b16 %v2340
    %v2935 = vunpack.c.l.b16 %v2341
    %v2936 = vunpack.c.l.b16 %v2342
    %v2937 = vunpack.c.h.b16 %v2342
    %v2938 = vunpack.c.l.b16 %v2343
    %v2939 = vunpack.c.h.b16 %v2343
    %v2940 = vunpack.c.l.b16 %v2344
    %v2941 = vunpack.c.h.b16 %v2344
    %v2942 = vunpack.c.l.b16 %v2345
    %v2943 = vunpack.c.l.b16 %v2346
    %v2944 = vunpack.c.h.b16 %v2346
    %v2945 = vunpack.c.l.b16 %v2347
    %v2946 = vunpack.c.h.b16 %v2347
    %v2947 = vunpack.c.l.b16 %v2348
    %v2948 = vunpack.c.h.b16 %v2348
    %v2949 = vunpack.c.l.b16 %v2349
    %v2950 = vunpack.c.l.b16 %v2350
    %v2951 = vunpack.c.h.b16 %v2350
    %v2952 = vunpack.c.l.b16 %v2351
    %v2953 = vunpack.c.h.b16 %v2351
    %v2954 = vunpack.c.l.b16 %v2352
    %v2955 = vunpack.c.h.b16 %v2352
    %v2956 = vunpack.c.l.b16 %v2353
    %v2957 = vunpack.c.l.b16 %v2354
    %v2958 = vunpack.c.h.b16 %v2354
    %v2959 = vunpack.c.l.b16 %v2355
    %v2960 = vunpack.c.h.b16 %v2355
    %v2961 = vunpack.c.l.b16 %v2356
    %v2962 = vunpack.c.h.b16 %v2356
    %v2963 = vunpack.c.l.b16 %v2357
    %v2964 = vunpack.c.l.b16 %v2358
    %v2965 = vunpack.c.h.b16 %v2358
    %v2966 = vunpack.c.l.b16 %v2359
    %v2967 = vunpack.c.h.b16 %v2359
    %v2968 = vunpack.c.l.b16 %v2360
    %v2969 = vunpack.c.h.b16 %v2360
    %v2970 = vunpack.c.l.b16 %v2361
    %v2971 = vunpack.c.l.b16 %v2362
    %v2972 = vunpack.c.h.b16 %v2362
    %v2973 = vunpack.c.l.b16 %v2363
    %v2974 = vunpack.c.h.b16 %v2363
    %v2975 = vunpack.c.l.b16 %v2364
    %v2976 = vunpack.c.h.b16 %v2364
    %v2977 = vunpack.c.l.b16 %v2365
    %v2978 = vunpack.c.l.b16 %v2366
    %v2979 = vunpack.c.h.b16 %v2366
    %v2980 = vunpack.c.l.b16 %v2367
    %v2981 = vunpack.c.h.b16 %v2367
    %v2982 = vunpack.c.l.b16 %v2368
    %v2983 = vunpack.c.h.b16 %v2368
    %v2984 = vunpack.c.l.b16 %v2369
    %v2985 = vunpack.c.l.b16 %v2370
    %v2986 = vunpack.c.h.b16 %v2370
    %v2987 = vunpack.c.l.b16 %v2371
    %v2988 = vunpack.c.h.b16 %v2371
    %v2989 = vunpack.c.l.b16 %v2372
    %v2990 = vunpack.c.h.b16 %v2372
    %v2991 = vunpack.c.l.b16 %v2373
    %v2992 = vunpack.c.l.b16 %v2374
    %v2993 = vunpack.c.h.b16 %v2374
    %v2994 = vunpack.c.l.b16 %v2375
    %v2995 = vunpack.c.h.b16 %v2375
    %v2996 = vunpack.c.l.b16 %v2376
    %v2997 = vunpack.c.h.b16 %v2376
    %v2998 = vunpack.c.l.b16 %v2377
    %v2999 = vunpack.c.l.b16 %v2378
    %v3000 = vunpack.c.h.b16 %v2378
    %v3001 = vunpack.c.l.b16 %v2379
    %v3002 = vunpack.c.h.b16 %v2379
    %v3003 = vunpack.c.l.b16 %v2380
    %v3004 = vunpack.c.h.b16 %v2380
    %v3005 = vunpack.c.l.b16 %v2381
    %v3006 = vunpack.c.l.b16 %v2382
    %v3007 = vunpack.c.h.b16 %v2382
    %v3008 = vunpack.c.l.b16 %v2383
    %v3009 = vunpack.c.h.b16 %v2383
    %v3010 = vunpack.c.l.b16 %v2384
    %v3011 = vunpack.c.h.b16 %v2384
    %v3012 = vunpack.c.l.b16 %v2385
    %v3013 = vunpack.c.l.b16 %v2386
    %v3014 = vunpack.c.h.b16 %v2386
    %v3015 = vunpack.c.l.b16 %v2387
    %v3016 = vunpack.c.h.b16 %v2387
    %v3017 = vunpack.c.l.b16 %v2388
    %v3018 = vunpack.c.h.b16 %v2388
    %v3019 = vunpack.c.l.b16 %v2389
    %v3020 = vunpack.c.l.b16 %v2390
    %v3021 = vunpack.c.h.b16 %v2390
    %v3022 = vunpack.c.l.b16 %v2391
    %v3023 = vunpack.c.h.b16 %v2391
    %v3024 = vunpack.c.l.b16 %v2392
    %v3025 = vunpack.c.h.b16 %v2392
    %v3026 = vunpack.c.l.b16 %v2393
    %v3027 = vunpack.c.l.b16 %v2394
    %v3028 = vunpack.c.h.b16 %v2394
    %v3029 = vunpack.c.l.b16 %v2395
    %v3030 = vunpack.c.h.b16 %v2395
    %v3031 = vunpack.c.l.b16 %v2396
    %v3032 = vunpack.c.h.b16 %v2396
    %v3033 = vunpack.c.l.b16 %v2397
    %v3034 = vunpack.c.l.b16 %v2398
    %v3035 = vunpack.c.h.b16 %v2398
    %v3036 = vunpack.c.l.b16 %v2399
    %v3037 = vunpack.c.h.b16 %v2399
    %v3038 = vunpack.c.l.b16 %v2400
    %v3039 = vunpack.c.h.b16 %v2400
    %v3040 = vunpack.c.l.b16 %v2401
    %v3041 = vunpack.c.l.b16 %v2402
    %v3042 = vunpack.c.h.b16 %v2402
    %v3043 = vunpack.c.l.b16 %v2403
    %v3044 = vunpack.c.h.b16 %v2403
    %v3045 = vunpack.c.l.b16 %v2404
    %v3046 = vunpack.c.h.b16 %v2404
    %v3047 = vunpack.c.l.b16 %v2405
    %v3048 = vunpack.c.l.b16 %v2406
    %v3049 = vunpack.c.h.b16 %v2406
    %v3050 = vunpack.c.l.b16 %v2407
    %v3051 = vunpack.c.h.b16 %v2407
    %v3052 = vunpack.c.l.b16 %v2408
    %v3053 = vunpack.c.h.b16 %v2408
    %v3054 = vunpack.c.l.b16 %v2409
    %v3055 = vunpack.c.l.b16 %v2410
    %v3056 = vunpack.c.h.b16 %v2410
    %v3057 = vunpack.c.l.b16 %v2411
    %v3058 = vunpack.c.h.b16 %v2411
    %v3059 = vunpack.c.l.b16 %v2412
    %v3060 = vunpack.c.h.b16 %v2412
    %v3061 = vunpack.c.l.b16 %v2413
    %v3062 = vunpack.c.l.b16 %v2414
    %v3063 = vunpack.c.h.b16 %v2414
    %v3064 = vunpack.c.l.b16 %v2415
    %v3065 = vunpack.c.h.b16 %v2415
    %v3066 = vunpack.c.l.b16 %v2416
    %v3067 = vunpack.c.h.b16 %v2416
    %v3068 = vunpack.c.l.b16 %v2417
    %v3069 = vunpack.c.l.b16 %v2418
    %v3070 = vunpack.c.h.b16 %v2418
    %v3071 = vunpack.c.l.b16 %v2419
    %v3072 = vunpack.c.h.b16 %v2419
    %v3073 = vunpack.c.l.b16 %v2420
    %v3074 = vunpack.c.h.b16 %v2420
    %v3075 = vunpack.c.l.b16 %v2421
    %v3076 = vunpack.c.l.b16 %v2422
    %v3077 = vunpack.c.h.b16 %v2422
    %v3078 = vunpack.c.l.b16 %v2423
    %v3079 = vunpack.c.h.b16 %v2423
    %v3080 = vunpack.c.l.b16 %v2424
    %v3081 = vunpack.c.h.b16 %v2424
    %v3082 = vunpack.c.l.b16 %v2425
    %v3083 = vunpack.c.l.b16 %v2426
    %v3084 = vunpack.c.h.b16 %v2426
    %v3085 = vunpack.c.l.b16 %v2427
    %v3086 = vunpack.c.h.b16 %v2427
    %v3087 = vunpack.c.l.b16 %v2428
    %v3088 = vunpack.c.h.b16 %v2428
    %v3089 = vunpack.c.l.b16 %v2429
    %v3090 = vunpack.c.l.b16 %v2430
    %v3091 = vunpack.c.h.b16 %v2430
    %v3092 = vunpack.c.l.b16 %v2431
    %v3093 = vunpack.c.h.b16 %v2431
    %v3094 = vunpack.c.l.b16 %v2432
    %v3095 = vunpack.c.h.b16 %v2432
    %v3096 = vunpack.c.l.b16 %v2433
    %v3097 = vunpack.c.l.b16 %v2434
    %v3098 = vunpack.c.h.b16 %v2434
    %v3099 = vunpack.c.l.b16 %v2435
    %v3100 = vunpack.c.h.b16 %v2435
    %v3101 = vunpack.c.l.b16 %v2436
    %v3102 = vunpack.c.h.b16 %v2436
    %v3103 = vunpack.c.l.b16 %v2437
    %v3104 = vunpack.c.l.b16 %v2438
    %v3105 = vunpack.c.h.b16 %v2438
    %v3106 = vunpack.c.l.b16 %v2439
    %v3107 = vunpack.c.h.b16 %v2439
    %v3108 = vunpack.c.l.b16 %v2440
    %v3109 = vunpack.c.h.b16 %v2440
    %v3110 = vunpack.c.l.b16 %v2441
    %v3111 = vunpack.c.l.b16 %v2442
    %v3112 = vunpack.c.h.b16 %v2442
    %v3113 = vunpack.c.l.b16 %v2443
    %v3114 = vunpack.c.h.b16 %v2443
    %v3115 = vunpack.c.l.b16 %v2444
    %v3116 = vunpack.c.h.b16 %v2444
    %v3117 = vunpack.c.l.b16 %v2445
    %v3118 = vunpack.c.l.b16 %v2446
    %v3119 = vunpack.c.h.b16 %v2446
    %v3120 = vunpack.c.l.b16 %v2447
    %v3121 = vunpack.c.h.b16 %v2447
    %v3122 = vunpack.c.l.b16 %v2448
    %v3123 = vunpack.c.h.b16 %v2448
    %v3124 = vunpack.c.l.b16 %v2449
    %v3125 = vunpack.c.l.b16 %v2450
    %v3126 = vunpack.c.h.b16 %v2450
    %v3127 = vunpack.c.l.b16 %v2451
    %v3128 = vunpack.c.h.b16 %v2451
    %v3129 = vunpack.c.l.b16 %v2452
    %v3130 = vunpack.c.h.b16 %v2452
    %v3131 = vunpack.c.l.b16 %v2453
    %v3132 = vunpack.c.l.b16 %v2454
    %v3133 = vunpack.c.h.b16 %v2454
    %v3134 = vunpack.c.l.b16 %v2455
    %v3135 = vunpack.c.h.b16 %v2455
    %v3136 = vunpack.c.l.b16 %v2456
    %v3137 = vunpack.c.h.b16 %v2456
    %v3138 = vunpack.c.l.b16 %v2457
    %v3139 = vunpack.c.l.b16 %v2458
    %v3140 = vunpack.c.h.b16 %v2458
    %v3141 = vunpack.c.l.b16 %v2459
    %v3142 = vunpack.c.h.b16 %v2459
    %v3143 = vunpack.c.l.b16 %v2460
    %v3144 = vunpack.c.h.b16 %v2460
    %v3145 = vunpack.c.l.b16 %v2461
    %v3146 = vunpack.c.l.b16 %v2462
    %v3147 = vunpack.c.h.b16 %v2462
    %v3148 = vunpack.c.l.b16 %v2463
    %v3149 = vunpack.c.h.b16 %v2463
    %v3150 = vunpack.c.l.b16 %v2464
    %v3151 = vunpack.c.h.b16 %v2464
    %v3152 = vunpack.c.l.b16 %v2465
    %v3153 = vunpack.c.l.b16 %v2466
    %v3154 = vunpack.c.h.b16 %v2466
    %v3155 = vunpack.c.l.b16 %v2467
    %v3156 = vunpack.c.h.b16 %v2467
    %v3157 = vunpack.c.l.b16 %v2468
    %v3158 = vunpack.c.h.b16 %v2468
    %v3159 = vunpack.c.l.b16 %v2469
    %v3160 = vunpack.c.l.b16 %v2470
    %v3161 = vunpack.c.h.b16 %v2470
    %v3162 = vunpack.c.l.b16 %v2471
    %v3163 = vunpack.c.h.b16 %v2471
    %v3164 = vunpack.c.l.b16 %v2472
    %v3165 = vunpack.c.h.b16 %v2472
    %v3166 = vunpack.c.l.b16 %v2473
    %v3167 = vunpack.c.l.b16 %v2474
    %v3168 = vunpack.c.h.b16 %v2474
    %v3169 = vunpack.c.l.b16 %v2475
    %v3170 = vunpack.c.h.b16 %v2475
    %v3171 = vunpack.c.l.b16 %v2476
    %v3172 = vunpack.c.h.b16 %v2476
    %v3173 = vunpack.c.l.b16 %v2477
    %v3174 = vunpack.c.l.b16 %v2478
    %v3175 = vunpack.c.h.b16 %v2478
    %v3176 = vunpack.c.l.b16 %v2479
    %v3177 = vunpack.c.h.b16 %v2479
    %v3178 = vunpack.c.l.b16 %v2480
    %v3179 = vunpack.c.h.b16 %v2480
    %v3180 = vunpack.c.l.b16 %v2481
    %v3181 = vunpack.c.l.b16 %v2482
    %v3182 = vunpack.c.h.b16 %v2482
    %v3183 = vunpack.c.l.b16 %v2483
    %v3184 = vunpack.c.h.b16 %v2483
    %v3185 = vunpack.c.l.b16 %v2484
    %v3186 = vunpack.c.h.b16 %v2484
    %v3187 = vunpack.c.l.b16 %v2485
    %v3188 = vunpack.c.l.b16 %v2486
    %v3189 = vunpack.c.h.b16 %v2486
    %v3190 = vunpack.c.l.b16 %v2487
    %v3191 = vunpack.c.h.b16 %v2487
    %v3192 = vunpack.c.l.b16 %v2488
    %v3193 = vunpack.c.h.b16 %v2488
    %v3194 = vunpack.c.l.b16 %v2489
    %v3195 = vunpack.c.l.b16 %v2490
    %v3196 = vunpack.c.h.b16 %v2490
    %v3197 = vunpack.c.l.b16 %v2491
    %v3198 = vunpack.c.h.b16 %v2491
    %v3199 = vunpack.c.l.b16 %v2492
    %v3200 = vunpack.c.h.b16 %v2492
    %v3201 = vunpack.c.l.b16 %v2493
    %v3202 = vunpack.c.l.b16 %v2494
    %v3203 = vunpack.c.h.b16 %v2494
    %v3204 = vunpack.c.l.b16 %v2495
    %v3205 = vunpack.c.h.b16 %v2495
    %v3206 = vunpack.c.l.b16 %v2496
    %v3207 = vunpack.c.h.b16 %v2496
    %v3208 = vunpack.c.l.b16 %v2497
    %v3209 = vunpack.c.l.b16 %v2498
    %v3210 = vunpack.c.h.b16 %v2498
    %v3211 = vunpack.c.l.b16 %v2499
    %v3212 = vunpack.c.h.b16 %v2499
    %v3213 = vunpack.c.l.b16 %v2500
    %v3214 = vunpack.c.h.b16 %v2500
    %v3215 = vunpack.c.l.b16 %v2501
    %v3216 = vunpack.c.l.b16 %v2502
    %v3217 = vunpack.c.h.b16 %v2502
    %v3218 = vunpack.c.l.b16 %v2503
    %v3219 = vunpack.c.h.b16 %v2503
    %v3220 = vunpack.c.l.b16 %v2504
    %v3221 = vunpack.c.h.b16 %v2504
    %v3222 = vunpack.c.l.b16 %v2505
    %v3223 = vunpack.c.l.b16 %v2506
    %v3224 = vunpack.c.h.b16 %v2506
    %v3225 = vunpack.c.l.b16 %v2507
    %v3226 = vunpack.c.h.b16 %v2507
    %v3227 = vunpack.c.l.b16 %v2508
    %v3228 = vunpack.c.h.b16 %v2508
    %v3229 = vunpack.c.l.b16 %v2509
    %v3230 = vunpack.c.l.b16 %v2510
    %v3231 = vunpack.c.h.b16 %v2510
    %v3232 = vunpack.c.l.b16 %v2511
    %v3233 = vunpack.c.h.b16 %v2511
    %v3234 = vunpack.c.l.b16 %v2512
    %v3235 = vunpack.c.h.b16 %v2512
    %v3236 = vunpack.c.l.b16 %v2513
    %v3237 = vunpack.c.l.b16 %v2514
    %v3238 = vunpack.c.h.b16 %v2514
    %v3239 = vunpack.c.l.b16 %v2515
    %v3240 = vunpack.c.h.b16 %v2515
    %v3241 = vunpack.c.l.b16 %v2516
    %v3242 = vunpack.c.h.b16 %v2516
    %v3243 = vunpack.c.l.b16 %v2517
    %v3244 = vunpack.c.l.b16 %v2518
    %v3245 = vunpack.c.h.b16 %v2518
    %v3246 = vunpack.c.l.b16 %v2519
    %v3247 = vunpack.c.h.b16 %v2519
    %v3248 = vunpack.c.l.b16 %v2520
    %v3249 = vunpack.c.h.b16 %v2520
    %v3250 = vunpack.c.l.b16 %v2521
    %v3251 = vunpack.c.l.b16 %v2522
    %v3252 = vunpack.c.h.b16 %v2522
    %v3253 = vunpack.c.l.b16 %v2523
    %v3254 = vunpack.c.h.b16 %v2523
    %v3255 = vunpack.c.l.b16 %v2524
    %v3256 = vunpack.c.h.b16 %v2524
    %v3257 = vunpack.c.l.b16 %v2525
    %v3258 = vunpack.c.l.b16 %v2526
    %v3259 = vunpack.c.h.b16 %v2526
    %v3260 = vunpack.c.l.b16 %v2527
    %v3261 = vunpack.c.h.b16 %v2527
    %v3262 = vunpack.c.l.b16 %v2528
    %v3263 = vunpack.c.h.b16 %v2528
    %v3264 = vunpack.c.l.b16 %v2529
    %v3265 = vunpack.c.l.b16 %v2530
    %v3266 = vunpack.c.h.b16 %v2530
    %v3267 = vunpack.c.l.b16 %v2531
    %v3268 = vunpack.c.h.b16 %v2531
    %v3269 = vunpack.c.l.b16 %v2532
    %v3270 = vunpack.c.h.b16 %v2532
    %v3271 = vunpack.c.l.b16 %v2533
    %v3272 = vunpack.c.l.b16 %v2534
    %v3273 = vunpack.c.h.b16 %v2534
    %v3274 = vunpack.c.l.b16 %v2535
    %v3275 = vunpack.c.h.b16 %v2535
    %v3276 = vunpack.c.l.b16 %v2536
    %v3277 = vunpack.c.h.b16 %v2536
    %v3278 = vunpack.c.l.b16 %v2537
    %v3279 = vpack.c.b16 %v2838, %v2831
    %v3280 = vpack.c.b16 %v2839, %v2832
    %v3281 = vpack.c.b16 %v2840, %v2833
    %v3282 = vpack.c.b16 %v2841, %v2834
    %v3283 = vpack.c.b16 %v2842, %v2835
    %v3284 = vpack.c.b16 %v2843, %v2836
    %v3285 = vpack.c.b16 %v2844, %v2837
    %v3286 = vpack.c.b16 %v2852, %v2845
    %v3287 = vpack.c.b16 %v2853, %v2846
    %v3288 = vpack.c.b16 %v2854, %v2847
    %v3289 = vpack.c.b16 %v2855, %v2848
    %v3290 = vpack.c.b16 %v2856, %v2849
    %v3291 = vpack.c.b16 %v2857, %v2850
    %v3292 = vpack.c.b16 %v2858, %v2851
    %v3293 = vpack.c.b16 %v2866, %v2859
    %v3294 = vpack.c.b16 %v2867, %v2860
    %v3295 = vpack.c.b16 %v2868, %v2861
    %v3296 = vpack.c.b16 %v2869, %v2862
    %v3297 = vpack.c.b16 %v2870, %v2863
    %v3298 = vpack.c.b16 %v2871, %v2864
    %v3299 = vpack.c.b16 %v2872, %v2865
    %v3300 = vpack.c.b16 %v2880, %v2873
    %v3301 = vpack.c.b16 %v2881, %v2874
    %v3302 = vpack.c.b16 %v2882, %v2875
    %v3303 = vpack.c.b16 %v2883, %v2876
    %v3304 = vpack.c.b16 %v2884, %v2877
    %v3305 = vpack.c.b16 %v2885, %v2878
    %v3306 = vpack.c.b16 %v2886, %v2879
    %v3307 = vpack.c.b16 %v2894, %v2887
    %v3308 = vpack.c.b16 %v2895, %v2888
    %v3309 = vpack.c.b16 %v2896, %v2889
    %v3310 = vpack.c.b16 %v2897, %v2890
    %v3311 = vpack.c.b16 %v2898, %v2891
    %v3312 = vpack.c.b16 %v2899, %v2892
    %v3313 = vpack.c.b16 %v2900, %v2893
    %v3314 = vpack.c.b16 %v2908, %v2901
    %v3315 = vpack.c.b16 %v2909, %v2902
    %v3316 = vpack.c.b16 %v2910, %v2903
    %v3317 = vpack.c.b16 %v2911, %v2904
    %v3318 = vpack.c.b16 %v2912, %v2905
    %v3319 = vpack.c.b16 %v2913, %v2906
    %v3320 = vpack.c.b16 %v2914, %v2907
    %v3321 = vpack.c.b16 %v2922, %v2915
    %v3322 = vpack.c.b16 %v2923, %v2916
    %v3323 = vpack.c.b16 %v2924, %v2917
    %v3324 = vpack.c.b16 %v2925, %v2918
    %v3325 = vpack.c.b16 %v2926, %v2919
    %v3326 = vpack.c.b16 %v2927, %v2920
    %v3327 = vpack.c.b16 %v2928, %v2921
    %v3328 = vpack.c.b16 %v2936, %v2929
    %v3329 = vpack.c.b16 %v2937, %v2930
    %v3330 = vpack.c.b16 %v2938, %v2931
    %v3331 = vpack.c.b16 %v2939, %v2932
    %v3332 = vpack.c.b16 %v2940, %v2933
    %v3333 = vpack.c.b16 %v2941, %v2934
    %v3334 = vpack.c.b16 %v2942, %v2935
    %v3335 = vpack.c.b16 %v2950, %v2943
    %v3336 = vpack.c.b16 %v2951, %v2944
    %v3337 = vpack.c.b16 %v2952, %v2945
    %v3338 = vpack.c.b16 %v2953, %v2946
    %v3339 = vpack.c.b16 %v2954, %v2947
    %v3340 = vpack.c.b16 %v2955, %v2948
    %v3341 = vpack.c.b16 %v2956, %v2949
    %v3342 = vpack.c.b16 %v2964, %v2957
    %v3343 = vpack.c.b16 %v2965, %v2958
    %v3344 = vpack.c.b16 %v2966, %v2959
    %v3345 = vpack.c.b16 %v2967, %v2960
    %v3346 = vpack.c.b16 %v2968, %v2961
    %v3347 = vpack.c.b16 %v2969, %v2962
    %v3348 = vpack.c.b16 %v2970, %v2963
    %v3349 = vpack.c.b16 %v2978, %v2971
    %v3350 = vpack.c.b16 %v2979, %v2972
    %v3351 = vpack.c.b16 %v2980, %v2973
    %v3352 = vpack.c.b16 %v2981, %v2974
    %v3353 = vpack.c.b16 %v2982, %v2975
    %v3354 = vpack.c.b16 %v2983, %v2976
    %v3355 = vpack.c.b16 %v2984, %v2977
    %v3356 = vpack.c.b16 %v2992, %v2985
    %v3357 = vpack.c.b16 %v2993, %v2986
    %v3358 = vpack.c.b16 %v2994, %v2987
    %v3359 = vpack.c.b16 %v2995, %v2988
    %v3360 = vpack.c.b16 %v2996, %v2989
    %v3361 = vpack.c.b16 %v2997, %v2990
    %v3362 = vpack.c.b16 %v2998, %v2991
    %v3363 = vpack.c.b16 %v3006, %v2999
    %v3364 = vpack.c.b16 %v3007, %v3000
    %v3365 = vpack.c.b16 %v3008, %v3001
    %v3366 = vpack.c.b16 %v3009, %v3002
    %v3367 = vpack.c.b16 %v3010, %v3003
    %v3368 = vpack.c.b16 %v3011, %v3004
    %v3369 = vpack.c.b16 %v3012, %v3005
    %v3370 = vpack.c.b16 %v3020, %v3013
    %v3371 = vpack.c.b16 %v3021, %v3014
    %v3372 = vpack.c.b16 %v3022, %v3015
    %v3373 = vpack.c.b16 %v3023, %v3016
    %v3374 = vpack.c.b16 %v3024, %v3017
    %v3375 = vpack.c.b16 %v3025, %v3018
    %v3376 = vpack.c.b16 %v3026, %v3019
    %v3377 = vpack.c.b16 %v3034, %v3027
    %v3378 = vpack.c.b16 %v3035, %v3028
    %v3379 = vpack.c.b16 %v3036, %v3029
    %v3380 = vpack.c.b16 %v3037, %v3030
    %v3381 = vpack.c.b16 %v3038, %v3031
    %v3382 = vpack.c.b16 %v3039, %v3032
    %v3383 = vpack.c.b16 %v3040, %v3033
    %v3384 = vpack.c.b16 %v3048, %v3041
    %v3385 = vpack.c.b16 %v3049, %v3042
    %v3386 = vpack.c.b16 %v3050, %v3043
    %v3387 = vpack.c.b16 %v3051, %v3044
    %v3388 = vpack.c.b16 %v3052, %v3045
    %v3389 = vpack.c.b16 %v3053, %v3046
    %v3390 = vpack.c.b16 %v3054, %v3047
    %v3391 = vpack.c.b16 %v3062, %v3055
    %v3392 = vpack.c.b16 %v3063, %v3056
    %v3393 = vpack.c.b16 %v3064, %v3057
    %v3394 = vpack.c.b16 %v3065, %v3058
    %v3395 = vpack.c.b16 %v3066, %v3059
    %v3396 = vpack.c.b16 %v3067, %v3060
    %v3397 = vpack.c.b16 %v3068, %v3061
    %v3398 = vpack.c.b16 %v3076, %v3069
    %v3399 = vpack.c.b16 %v3077, %v3070
    %v3400 = vpack.c.b16 %v3078, %v3071
    %v3401 = vpack.c.b16 %v3079, %v3072
    %v3402 = vpack.c.b16 %v3080, %v3073
    %v3403 = vpack.c.b16 %v3081, %v3074
    %v3404 = vpack.c.b16 %v3082, %v3075
    %v3405 = vpack.c.b16 %v3090, %v3083
    %v3406 = vpack.c.b16 %v3091, %v3084
    %v3407 = vpack.c.b16 %v3092, %v3085
    %v3408 = vpack.c.b16 %v3093, %v3086
    %v3409 = vpack.c.b16 %v3094, %v3087
    %v3410 = vpack.c.b16 %v3095, %v3088
    %v3411 = vpack.c.b16 %v3096, %v3089
    %v3412 = vpack.c.b16 %v3104, %v3097
    %v3413 = vpack.c.b16 %v3105, %v3098
    %v3414 = vpack.c.b16 %v3106, %v3099
    %v3415 = vpack.c.b16 %v3107, %v3100
    %v3416 = vpack.c.b16 %v3108, %v3101
    %v3417 = vpack.c.b16 %v3109, %v3102
    %v3418 = vpack.c.b16 %v3110, %v3103
    %v3419 = vpack.c.b16 %v3118, %v3111
    %v3420 = vpack.c.b16 %v3119, %v3112
    %v3421 = vpack.c.b16 %v3120, %v3113
    %v3422 = vpack.c.b16 %v3121, %v3114
    %v3423 = vpack.c.b16 %v3122, %v3115
    %v3424 = vpack.c.b16 %v3123, %v3116
    %v3425 = vpack.c.b16 %v3124, %v3117
    %v3426 = vpack.c.b16 %v3132, %v3125
    %v3427 = vpack.c.b16 %v3133, %v3126
    %v3428 = vpack.c.b16 %v3134, %v3127
    %v3429 = vpack.c.b16 %v3135, %v3128
    %v3430 = vpack.c.b16 %v3136, %v3129
    %v3431 = vpack.c.b16 %v3137, %v3130
    %v3432 = vpack.c.b16 %v3138, %v3131
    %v3433 = vpack.c.b16 %v3146, %v3139
    %v3434 = vpack.c.b16 %v3147, %v3140
    %v3435 = vpack.c.b16 %v3148, %v3141
    %v3436 = vpack.c.b16 %v3149, %v3142
    %v3437 = vpack.c.b16 %v3150, %v3143
    %v3438 = vpack.c.b16 %v3151, %v3144
    %v3439 = vpack.c.b16 %v3152, %v3145
    %v3440 = vpack.c.b16 %v3160, %v3153
    %v3441 = vpack.c.b16 %v3161, %v3154
    %v3442 = vpack.c.b16 %v3162, %v3155
    %v3443 = vpack.c.b16 %v3163, %v3156
    %v3444 = vpack.c.b16 %v3164, %v3157
    %v3445 = vpack.c.b16 %v3165, %v3158
    %v3446 = vpack.c.b16 %v3166, %v3159
    %v3447 = vpack.c.b16 %v3174, %v3167
    %v3448 = vpack.c.b16 %v3175, %v3168
    %v3449 = vpack.c.b16 %v3176, %v3169
    %v3450 = vpack.c.b16 %v3177, %v3170
    %v3451 = vpack.c.b16 %v3178, %v3171
    %v3452 = vpack.c.b16 %v3179, %v3172
    %v3453 = vpack.c.b16 %v3180, %v3173
    %v3454 = vpack.c.b16 %v3188, %v3181
    %v3455 = vpack.c.b16 %v3189, %v3182
    %v3456 = vpack.c.b16 %v3190, %v3183
    %v3457 = vpack.c.b16 %v3191, %v3184
    %v3458 = vpack.c.b16 %v3192, %v3185
    %v3459 = vpack.c.b16 %v3193, %v3186
    %v3460 = vpack.c.b16 %v3194, %v3187
    %v3461 = vpack.c.b16 %v3202, %v3195
    %v3462 = vpack.c.b16 %v3203, %v3196
    %v3463 = vpack.c.b16 %v3204, %v3197
    %v3464 = vpack.c.b16 %v3205, %v3198
    %v3465 = vpack.c.b16 %v3206, %v3199
    %v3466 = vpack.c.b16 %v3207, %v3200
    %v3467 = vpack.c.b16 %v3208, %v3201
    %v3468 = vpack.c.b16 %v3216, %v3209
    %v3469 = vpack.c.b16 %v3217, %v3210
    %v3470 = vpack.c.b16 %v3218, %v3211
    %v3471 = vpack.c.b16 %v3219, %v3212
    %v3472 = vpack.c.b16 %v3220, %v3213
    %v3473 = vpack.c.b16 %v3221, %v3214
    %v3474 = vpack.c.b16 %v3222, %v3215
    %v3475 = vpack.c.b16 %v3230, %v3223
    %v3476 = vpack.c.b16 %v3231, %v3224
    %v3477 = vpack.c.b16 %v3232, %v3225
    %v3478 = vpack.c.b16 %v3233, %v3226
    %v3479 = vpack.c.b16 %v3234, %v3227
    %v3480 = vpack.c.b16 %v3235, %v3228
    %v3481 = vpack.c.b16 %v3236, %v3229
    %v3482 = vpack.c.b16 %v3244, %v3237
    %v3483 = vpack.c.b16 %v3245, %v3238
    %v3484 = vpack.c.b16 %v3246, %v3239
    %v3485 = vpack.c.b16 %v3247, %v3240
    %v3486 = vpack.c.b16 %v3248, %v3241
    %v3487 = vpack.c.b16 %v3249, %v3242
    %v3488 = vpack.c.b16 %v3250, %v3243
    %v3489 = vpack.c.b16 %v3258, %v3251
    %v3490 = vpack.c.b16 %v3259, %v3252
    %v3491 = vpack.c.b16 %v3260, %v3253
    %v3492 = vpack.c.b16 %v3261, %v3254
    %v3493 = vpack.c.b16 %v3262, %v3255
    %v3494 = vpack.c.b16 %v3263, %v3256
    %v3495 = vpack.c.b16 %v3264, %v3257
    %v3496 = vpack.c.b16 %v3272, %v3265
    %v3497 = vpack.c.b16 %v3273, %v3266
    %v3498 = vpack.c.b16 %v3274, %v3267
    %v3499 = vpack.c.b16 %v3275, %v3268
    %v3500 = vpack.c.b16 %v3276, %v3269
    %v3501 = vpack.c.b16 %v3277, %v3270
    %v3502 = vpack.c.b16 %v3278, %v3271
    %3727 = vmatprep.subr.bf16.mxu0 %v3329
    %3728 = vmatpush1.bf16.msra.mxu0 %v3328
    %3729 = vmatprep.subr.bf16.mxu0 %v3322
    %3730 = vmatpush1.bf16.msra.mxu0 %v3321
    %3731 = vmatprep.subr.bf16.mxu0 %v3315
    %3732 = vmatpush1.bf16.msra.mxu0 %v3314
    %3733 = vmatprep.subr.bf16.mxu0 %v3308
    %3734 = vmatpush1.bf16.msra.mxu0 %v3307
    %3735 = vmatprep.subr.bf16.mxu0 %v3301
    %3736 = vmatpush1.bf16.msra.mxu0 %v3300
    %3737 = vmatprep.subr.bf16.mxu0 %v3294
    %3738 = vmatpush1.bf16.msra.mxu0 %v3293
    %3739 = vmatprep.subr.bf16.mxu0 %v3287
    %3740 = vmatpush1.bf16.msra.mxu0 %v3286
    %3741 = vmatprep.subr.bf16.mxu0 %v3280
    %3742 = vmatpush1.bf16.msra.mxu0 %v3279
    %3743 = vmatprep.subr.bf16.mxu0 %v3385
    %3744 = vmatpush2.bf16.msra.mxu0 %v3384
    %3745 = vmatprep.subr.bf16.mxu0 %v3378
    %3746 = vmatpush2.bf16.msra.mxu0 %v3377
    %3747 = vmatprep.subr.bf16.mxu0 %v3371
    %3748 = vmatpush2.bf16.msra.mxu0 %v3370
    %3749 = vmatprep.subr.bf16.mxu0 %v3364
    %3750 = vmatpush2.bf16.msra.mxu0 %v3363
    %3751 = vmatprep.subr.bf16.mxu0 %v3357
    %3752 = vmatpush2.bf16.msra.mxu0 %v3356
    %3753 = vmatprep.subr.bf16.mxu0 %v3350
    %3754 = vmatpush2.bf16.msra.mxu0 %v3349
    %3755 = vmatprep.subr.bf16.mxu0 %v3343
    %3756 = vmatpush2.bf16.msra.mxu0 %v3342
    %3757 = vmatprep.subr.bf16.mxu0 %v3336
    %3758 = vmatpush2.bf16.msra.mxu0 %v3335
    %3759 = vmatprep.mubr.bf16.mxu0 %v2279
    %3760 = vmatmul.mubr.bf16.gmra.mxu0 %v2278
    %v3761 = vpop.f32.mrf.mxu0
    %v3762 = vadd.f32 %v2543, %v3761
    %v3763 = vpop.f32.mrf.mxu0
    %v3764 = vadd.f32 %v2547, %v3763
    %v3765 = vpop.f32.mrf.mxu0
    %v3766 = vadd.f32 %v2543, %v3765
    %v3767 = vpop.f32.mrf.mxu0
    %v3768 = vadd.f32 %v2547, %v3767
    %3769 = vdwg.mxu0
    %3770 = vmatprep.subr.bf16.mxu0 %v3441
    %3771 = vmatpush1.bf16.msra.mxu0 %v3440
    %3772 = vmatprep.subr.bf16.mxu0 %v3434
    %3773 = vmatpush1.bf16.msra.mxu0 %v3433
    %3774 = vmatprep.subr.bf16.mxu0 %v3427
    %3775 = vmatpush1.bf16.msra.mxu0 %v3426
    %3776 = vmatprep.subr.bf16.mxu0 %v3420
    %3777 = vmatpush1.bf16.msra.mxu0 %v3419
    %3778 = vmatprep.subr.bf16.mxu0 %v3413
    %3779 = vmatpush1.bf16.msra.mxu0 %v3412
    %3780 = vmatprep.subr.bf16.mxu0 %v3406
    %3781 = vmatpush1.bf16.msra.mxu0 %v3405
    %3782 = vmatprep.subr.bf16.mxu0 %v3399
    %3783 = vmatpush1.bf16.msra.mxu0 %v3398
    %3784 = vmatprep.subr.bf16.mxu0 %v3392
    %3785 = vmatpush1.bf16.msra.mxu0 %v3391
    %3786 = vmatprep.subr.bf16.mxu0 %v3497
    %3787 = vmatpush2.bf16.msra.mxu0 %v3496
    %3788 = vmatprep.subr.bf16.mxu0 %v3490
    %3789 = vmatpush2.bf16.msra.mxu0 %v3489
    %3790 = vmatprep.subr.bf16.mxu0 %v3483
    %3791 = vmatpush2.bf16.msra.mxu0 %v3482
    %3792 = vmatprep.subr.bf16.mxu0 %v3476
    %3793 = vmatpush2.bf16.msra.mxu0 %v3475
    %3794 = vmatprep.subr.bf16.mxu0 %v3469
    %3795 = vmatpush2.bf16.msra.mxu0 %v3468
    %3796 = vmatprep.subr.bf16.mxu0 %v3462
    %3797 = vmatpush2.bf16.msra.mxu0 %v3461
    %3798 = vmatprep.subr.bf16.mxu0 %v3455
    %3799 = vmatpush2.bf16.msra.mxu0 %v3454
    %3800 = vmatprep.subr.bf16.mxu0 %v3448
    %3801 = vmatpush2.bf16.msra.mxu0 %v3447
    %3802 = vmatprep.mubr.bf16.mxu0 %v2281
    %3803 = vmatmul.mubr.bf16.gmra.mxu0 %v2280
    %v3804 = vpop.f32.mrf.mxu0
    %v3805 = vadd.f32 %v3762, %v3804
    %v3806 = vpop.f32.mrf.mxu0
    %v3807 = vadd.f32 %v3764, %v3806
    %v3808 = vpop.f32.mrf.mxu0
    %v3809 = vadd.f32 %v3766, %v3808
    %v3810 = vpop.f32.mrf.mxu0
    %v3811 = vadd.f32 %v3768, %v3810
    %3812 = vdwg.mxu0
    %3813 = vmatprep.subr.bf16.mxu0 %v3331
    %3814 = vmatpush1.bf16.msra.mxu0 %v3330
    %3815 = vmatprep.subr.bf16.mxu0 %v3324
    %3816 = vmatpush1.bf16.msra.mxu0 %v3323
    %3817 = vmatprep.subr.bf16.mxu0 %v3317
    %3818 = vmatpush1.bf16.msra.mxu0 %v3316
    %3819 = vmatprep.subr.bf16.mxu0 %v3310
    %3820 = vmatpush1.bf16.msra.mxu0 %v3309
    %3821 = vmatprep.subr.bf16.mxu0 %v3303
    %3822 = vmatpush1.bf16.msra.mxu0 %v3302
    %3823 = vmatprep.subr.bf16.mxu0 %v3296
    %3824 = vmatpush1.bf16.msra.mxu0 %v3295
    %3825 = vmatprep.subr.bf16.mxu0 %v3289
    %3826 = vmatpush1.bf16.msra.mxu0 %v3288
    %3827 = vmatprep.subr.bf16.mxu0 %v3282
    %3828 = vmatpush1.bf16.msra.mxu0 %v3281
    %3829 = vmatprep.subr.bf16.mxu0 %v3387
    %3830 = vmatpush2.bf16.msra.mxu0 %v3386
    %3831 = vmatprep.subr.bf16.mxu0 %v3380
    %3832 = vmatpush2.bf16.msra.mxu0 %v3379
    %3833 = vmatprep.subr.bf16.mxu0 %v3373
    %3834 = vmatpush2.bf16.msra.mxu0 %v3372
    %3835 = vmatprep.subr.bf16.mxu0 %v3366
    %3836 = vmatpush2.bf16.msra.mxu0 %v3365
    %3837 = vmatprep.subr.bf16.mxu0 %v3359
    %3838 = vmatpush2.bf16.msra.mxu0 %v3358
    %3839 = vmatprep.subr.bf16.mxu0 %v3352
    %3840 = vmatpush2.bf16.msra.mxu0 %v3351
    %3841 = vmatprep.subr.bf16.mxu0 %v3345
    %3842 = vmatpush2.bf16.msra.mxu0 %v3344
    %3843 = vmatprep.subr.bf16.mxu0 %v3338
    %3844 = vmatpush2.bf16.msra.mxu0 %v3337
    %3845 = vmatprep.mubr.bf16.mxu0 %v2279
    %3846 = vmatmul.mubr.bf16.gmra.mxu0 %v2278
    %v3847 = vpop.f32.mrf.mxu0
    %v3848 = vadd.f32 %v2551, %v3847
    %v3849 = vpop.f32.mrf.mxu0
    %v3850 = vadd.f32 %v2555, %v3849
    %v3851 = vpop.f32.mrf.mxu0
    %v3852 = vadd.f32 %v2551, %v3851
    %v3853 = vpop.f32.mrf.mxu0
    %v3854 = vadd.f32 %v2555, %v3853
    %3855 = vdwg.mxu0
    %3856 = vmatprep.subr.bf16.mxu0 %v3443
    %3857 = vmatpush1.bf16.msra.mxu0 %v3442
    %3858 = vmatprep.subr.bf16.mxu0 %v3436
    %3859 = vmatpush1.bf16.msra.mxu0 %v3435
    %3860 = vmatprep.subr.bf16.mxu0 %v3429
    %3861 = vmatpush1.bf16.msra.mxu0 %v3428
    %3862 = vmatprep.subr.bf16.mxu0 %v3422
    %3863 = vmatpush1.bf16.msra.mxu0 %v3421
    %3864 = vmatprep.subr.bf16.mxu0 %v3415
    %3865 = vmatpush1.bf16.msra.mxu0 %v3414
    %3866 = vmatprep.subr.bf16.mxu0 %v3408
    %3867 = vmatpush1.bf16.msra.mxu0 %v3407
    %3868 = vmatprep.subr.bf16.mxu0 %v3401
    %3869 = vmatpush1.bf16.msra.mxu0 %v3400
    %3870 = vmatprep.subr.bf16.mxu0 %v3394
    %3871 = vmatpush1.bf16.msra.mxu0 %v3393
    %3872 = vmatprep.subr.bf16.mxu0 %v3499
    %3873 = vmatpush2.bf16.msra.mxu0 %v3498
    %3874 = vmatprep.subr.bf16.mxu0 %v3492
    %3875 = vmatpush2.bf16.msra.mxu0 %v3491
    %3876 = vmatprep.subr.bf16.mxu0 %v3485
    %3877 = vmatpush2.bf16.msra.mxu0 %v3484
    %3878 = vmatprep.subr.bf16.mxu0 %v3478
    %3879 = vmatpush2.bf16.msra.mxu0 %v3477
    %3880 = vmatprep.subr.bf16.mxu0 %v3471
    %3881 = vmatpush2.bf16.msra.mxu0 %v3470
    %3882 = vmatprep.subr.bf16.mxu0 %v3464
    %3883 = vmatpush2.bf16.msra.mxu0 %v3463
    %3884 = vmatprep.subr.bf16.mxu0 %v3457
    %3885 = vmatpush2.bf16.msra.mxu0 %v3456
    %3886 = vmatprep.subr.bf16.mxu0 %v3450
    %3887 = vmatpush2.bf16.msra.mxu0 %v3449
    %3888 = vmatprep.mubr.bf16.mxu0 %v2281
    %3889 = vmatmul.mubr.bf16.gmra.mxu0 %v2280
    %v3890 = vpop.f32.mrf.mxu0
    %v3891 = vadd.f32 %v3848, %v3890
    %v3892 = vpop.f32.mrf.mxu0
    %v3893 = vadd.f32 %v3850, %v3892
    %v3894 = vpop.f32.mrf.mxu0
    %v3895 = vadd.f32 %v3852, %v3894
    %v3896 = vpop.f32.mrf.mxu0
    %v3897 = vadd.f32 %v3854, %v3896
    %3898 = vdwg.mxu0
    %3899 = vmatprep.subr.bf16.mxu0 %v3333
    %3900 = vmatpush1.bf16.msra.mxu0 %v3332
    %3901 = vmatprep.subr.bf16.mxu0 %v3326
    %3902 = vmatpush1.bf16.msra.mxu0 %v3325
    %3903 = vmatprep.subr.bf16.mxu0 %v3319
    %3904 = vmatpush1.bf16.msra.mxu0 %v3318
    %3905 = vmatprep.subr.bf16.mxu0 %v3312
    %3906 = vmatpush1.bf16.msra.mxu0 %v3311
    %3907 = vmatprep.subr.bf16.mxu0 %v3305
    %3908 = vmatpush1.bf16.msra.mxu0 %v3304
    %3909 = vmatprep.subr.bf16.mxu0 %v3298
    %3910 = vmatpush1.bf16.msra.mxu0 %v3297
    %3911 = vmatprep.subr.bf16.mxu0 %v3291
    %3912 = vmatpush1.bf16.msra.mxu0 %v3290
    %3913 = vmatprep.subr.bf16.mxu0 %v3284
    %3914 = vmatpush1.bf16.msra.mxu0 %v3283
    %3915 = vmatprep.subr.bf16.mxu0 %v3389
    %3916 = vmatpush2.bf16.msra.mxu0 %v3388
    %3917 = vmatprep.subr.bf16.mxu0 %v3382
    %3918 = vmatpush2.bf16.msra.mxu0 %v3381
    %3919 = vmatprep.subr.bf16.mxu0 %v3375
    %3920 = vmatpush2.bf16.msra.mxu0 %v3374
    %3921 = vmatprep.subr.bf16.mxu0 %v3368
    %3922 = vmatpush2.bf16.msra.mxu0 %v3367
    %3923 = vmatprep.subr.bf16.mxu0 %v3361
    %3924 = vmatpush2.bf16.msra.mxu0 %v3360
    %3925 = vmatprep.subr.bf16.mxu0 %v3354
    %3926 = vmatpush2.bf16.msra.mxu0 %v3353
    %3927 = vmatprep.subr.bf16.mxu0 %v3347
    %3928 = vmatpush2.bf16.msra.mxu0 %v3346
    %3929 = vmatprep.subr.bf16.mxu0 %v3340
    %3930 = vmatpush2.bf16.msra.mxu0 %v3339
    %3931 = vmatprep.mubr.bf16.mxu0 %v2279
    %3932 = vmatmul.mubr.bf16.gmra.mxu0 %v2278
    %v3933 = vpop.f32.mrf.mxu0
    %v3934 = vadd.f32 %v2559, %v3933
    %v3935 = vpop.f32.mrf.mxu0
    %v3936 = vadd.f32 %v2563, %v3935
    %v3937 = vpop.f32.mrf.mxu0
    %v3938 = vadd.f32 %v2559, %v3937
    %v3939 = vpop.f32.mrf.mxu0
    %v3940 = vadd.f32 %v2563, %v3939
    %3941 = vdwg.mxu0
    %3942 = vmatprep.subr.bf16.mxu0 %v3445
    %3943 = vmatpush1.bf16.msra.mxu0 %v3444
    %3944 = vmatprep.subr.bf16.mxu0 %v3438
    %3945 = vmatpush1.bf16.msra.mxu0 %v3437
    %3946 = vmatprep.subr.bf16.mxu0 %v3431
    %3947 = vmatpush1.bf16.msra.mxu0 %v3430
    %3948 = vmatprep.subr.bf16.mxu0 %v3424
    %3949 = vmatpush1.bf16.msra.mxu0 %v3423
    %3950 = vmatprep.subr.bf16.mxu0 %v3417
    %3951 = vmatpush1.bf16.msra.mxu0 %v3416
    %3952 = vmatprep.subr.bf16.mxu0 %v3410
    %3953 = vmatpush1.bf16.msra.mxu0 %v3409
    %3954 = vmatprep.subr.bf16.mxu0 %v3403
    %3955 = vmatpush1.bf16.msra.mxu0 %v3402
    %3956 = vmatprep.subr.bf16.mxu0 %v3396
    %3957 = vmatpush1.bf16.msra.mxu0 %v3395
    %3958 = vmatprep.subr.bf16.mxu0 %v3501
    %3959 = vmatpush2.bf16.msra.mxu0 %v3500
    %3960 = vmatprep.subr.bf16.mxu0 %v3494
    %3961 = vmatpush2.bf16.msra.mxu0 %v3493
    %3962 = vmatprep.subr.bf16.mxu0 %v3487
    %3963 = vmatpush2.bf16.msra.mxu0 %v3486
    %3964 = vmatprep.subr.bf16.mxu0 %v3480
    %3965 = vmatpush2.bf16.msra.mxu0 %v3479
    %3966 = vmatprep.subr.bf16.mxu0 %v3473
    %3967 = vmatpush2.bf16.msra.mxu0 %v3472
    %3968 = vmatprep.subr.bf16.mxu0 %v3466
    %3969 = vmatpush2.bf16.msra.mxu0 %v3465
    %3970 = vmatprep.subr.bf16.mxu0 %v3459
    %3971 = vmatpush2.bf16.msra.mxu0 %v3458
    %3972 = vmatprep.subr.bf16.mxu0 %v3452
    %3973 = vmatpush2.bf16.msra.mxu0 %v3451
    %3974 = vmatprep.mubr.bf16.mxu0 %v2281
    %3975 = vmatmul.mubr.bf16.gmra.mxu0 %v2280
    %v3976 = vpop.f32.mrf.mxu0
    %v3977 = vadd.f32 %v3934, %v3976
    %v3978 = vpop.f32.mrf.mxu0
    %v3979 = vadd.f32 %v3936, %v3978
    %v3980 = vpop.f32.mrf.mxu0
    %v3981 = vadd.f32 %v3938, %v3980
    %v3982 = vpop.f32.mrf.mxu0
    %v3983 = vadd.f32 %v3940, %v3982
    %3984 = vdwg.mxu0
    %3985 = vmatprep.subr.bf16.mxu0 0
    %3986 = vmatpush1.bf16.msra.mxu0 %v3334
    %3987 = vmatprep.subr.bf16.mxu0 0
    %3988 = vmatpush1.bf16.msra.mxu0 %v3327
    %3989 = vmatprep.subr.bf16.mxu0 0
    %3990 = vmatpush1.bf16.msra.mxu0 %v3320
    %3991 = vmatprep.subr.bf16.mxu0 0
    %3992 = vmatpush1.bf16.msra.mxu0 %v3313
    %3993 = vmatprep.subr.bf16.mxu0 0
    %3994 = vmatpush1.bf16.msra.mxu0 %v3306
    %3995 = vmatprep.subr.bf16.mxu0 0
    %3996 = vmatpush1.bf16.msra.mxu0 %v3299
    %3997 = vmatprep.subr.bf16.mxu0 0
    %3998 = vmatpush1.bf16.msra.mxu0 %v3292
    %3999 = vmatprep.subr.bf16.mxu0 0
    %4000 = vmatpush1.bf16.msra.mxu0 %v3285
    %4001 = vmatprep.subr.bf16.mxu0 0
    %4002 = vmatpush2.bf16.msra.mxu0 %v3390
    %4003 = vmatprep.subr.bf16.mxu0 0
    %4004 = vmatpush2.bf16.msra.mxu0 %v3383
    %4005 = vmatprep.subr.bf16.mxu0 0
    %4006 = vmatpush2.bf16.msra.mxu0 %v3376
    %4007 = vmatprep.subr.bf16.mxu0 0
    %4008 = vmatpush2.bf16.msra.mxu0 %v3369
    %4009 = vmatprep.subr.bf16.mxu0 0
    %4010 = vmatpush2.bf16.msra.mxu0 %v3362
    %4011 = vmatprep.subr.bf16.mxu0 0
    %4012 = vmatpush2.bf16.msra.mxu0 %v3355
    %4013 = vmatprep.subr.bf16.mxu0 0
    %4014 = vmatpush2.bf16.msra.mxu0 %v3348
    %4015 = vmatprep.subr.bf16.mxu0 0
    %4016 = vmatpush2.bf16.msra.mxu0 %v3341
    %4017 = vmatprep.mubr.bf16.mxu0 %v2279
    %4018 = vmatmul.mubr.bf16.gmra.mxu0 %v2278
    %v4019 = vpop.f32.mrf.mxu0
    %v4020 = vadd.f32 %v2567, %v4019
    %v4021 = vpop.f32.mrf.mxu0
    %v4022 = vpop.f32.mrf.mxu0
    %v4023 = vadd.f32 %v2567, %v4022
    %v4024 = vpop.f32.mrf.mxu0
    %4025 = vdwg.mxu0
    %4026 = vmatprep.subr.bf16.mxu0 0
    %4027 = vmatpush1.bf16.msra.mxu0 %v3446
    %4028 = vmatprep.subr.bf16.mxu0 0
    %4029 = vmatpush1.bf16.msra.mxu0 %v3439
    %4030 = vmatprep.subr.bf16.mxu0 0
    %4031 = vmatpush1.bf16.msra.mxu0 %v3432
    %4032 = vmatprep.subr.bf16.mxu0 0
    %4033 = vmatpush1.bf16.msra.mxu0 %v3425
    %4034 = vmatprep.subr.bf16.mxu0 0
    %4035 = vmatpush1.bf16.msra.mxu0 %v3418
    %4036 = vmatprep.subr.bf16.mxu0 0
    %4037 = vmatpush1.bf16.msra.mxu0 %v3411
    %4038 = vmatprep.subr.bf16.mxu0 0
    %4039 = vmatpush1.bf16.msra.mxu0 %v3404
    %4040 = vmatprep.subr.bf16.mxu0 0
    %4041 = vmatpush1.bf16.msra.mxu0 %v3397
    %4042 = vmatprep.subr.bf16.mxu0 0
    %4043 = vmatpush2.bf16.msra.mxu0 %v3502
    %4044 = vmatprep.subr.bf16.mxu0 0
    %4045 = vmatpush2.bf16.msra.mxu0 %v3495
    %4046 = vmatprep.subr.bf16.mxu0 0
    %4047 = vmatpush2.bf16.msra.mxu0 %v3488
    %4048 = vmatprep.subr.bf16.mxu0 0
    %4049 = vmatpush2.bf16.msra.mxu0 %v3481
    %4050 = vmatprep.subr.bf16.mxu0 0
    %4051 = vmatpush2.bf16.msra.mxu0 %v3474
    %4052 = vmatprep.subr.bf16.mxu0 0
    %4053 = vmatpush2.bf16.msra.mxu0 %v3467
    %4054 = vmatprep.subr.bf16.mxu0 0
    %4055 = vmatpush2.bf16.msra.mxu0 %v3460
    %4056 = vmatprep.subr.bf16.mxu0 0
    %4057 = vmatpush2.bf16.msra.mxu0 %v3453
    %4058 = vmatprep.mubr.bf16.mxu0 %v2281
    %4059 = vmatmul.mubr.bf16.gmra.mxu0 %v2280
    %v4060 = vpop.f32.mrf.mxu0
    %v4061 = vadd.f32 %v4020, %v4060
    %v4062 = vpop.f32.mrf.mxu0
    %v4063 = vpop.f32.mrf.mxu0
    %v4064 = vadd.f32 %v4023, %v4063
    %v4065 = vpop.f32.mrf.mxu0
    %4066 = vdwg.mxu0
    %v4067 = vxor.u32 %v3805, 2147483648
    %v4068 = vxor.u32 %v3807, 2147483648
    %v4069 = vxor.u32 %v3891, 2147483648
    %v4070 = vxor.u32 %v3893, 2147483648
    %v4071 = vxor.u32 %v3977, 2147483648
    %v4072 = vxor.u32 %v3979, 2147483648
    %v4073 = vxor.u32 %v4061, 2147483648
    %v4074 = vxor.u32 %v3809, 2147483648
    %v4075 = vxor.u32 %v3811, 2147483648
    %v4076 = vxor.u32 %v3895, 2147483648
    %v4077 = vxor.u32 %v3897, 2147483648
    %v4078 = vxor.u32 %v3981, 2147483648
    %v4079 = vxor.u32 %v3983, 2147483648
    %v4080 = vxor.u32 %v4064, 2147483648
    %v4081 = vmul.f32 %v4067, 1.442695
    %v4082 = vpow.pop %v4081
    %v4083 = vmul.f32 %v4068, 1.442695
    %v4084 = vpow.pop %v4083
    %v4085 = vmul.f32 %v4069, 1.442695
    %v4086 = vpow.pop %v4085
    %v4087 = vmul.f32 %v4070, 1.442695
    %v4088 = vpow.pop %v4087
    %v4089 = vmul.f32 %v4071, 1.442695
    %v4090 = vpow.pop %v4089
    %v4091 = vmul.f32 %v4072, 1.442695
    %v4092 = vpow.pop %v4091
    %v4093 = vmul.f32 %v4073, 1.442695
    %v4094 = vpow.pop %v4093
    %v4095 = vmul.f32 %v4074, 1.442695
    %v4096 = vpow.pop %v4095
    %v4097 = vmul.f32 %v4075, 1.442695
    %v4098 = vpow.pop %v4097
    %v4099 = vmul.f32 %v4076, 1.442695
    %v4100 = vpow.pop %v4099
    %v4101 = vmul.f32 %v4077, 1.442695
    %v4102 = vpow.pop %v4101
    %v4103 = vmul.f32 %v4078, 1.442695
    %v4104 = vpow.pop %v4103
    %v4105 = vmul.f32 %v4079, 1.442695
    %v4106 = vpow.pop %v4105
    %v4107 = vmul.f32 %v4080, 1.442695
    %v4108 = vpow.pop %v4107
    %v4109 = vadd.f32 %v4082, 1.0
    %v4110 = vadd.f32 %v4084, 1.0
    %v4111 = vadd.f32 %v4086, 1.0
    %v4112 = vadd.f32 %v4088, 1.0
    %v4113 = vadd.f32 %v4090, 1.0
    %v4114 = vadd.f32 %v4092, 1.0
    %v4115 = vadd.f32 %v4094, 1.0
    %v4116 = vadd.f32 %v4096, 1.0
    %v4117 = vadd.f32 %v4098, 1.0
    %v4118 = vadd.f32 %v4100, 1.0
    %v4119 = vadd.f32 %v4102, 1.0
    %v4120 = vadd.f32 %v4104, 1.0
    %v4121 = vadd.f32 %v4106, 1.0
    %v4122 = vadd.f32 %v4108, 1.0
    %v4123 = vrcp.pop %v4109
    %v4124 = vmul.f32 1.0, %v4123
    %v4125 = vrcp.pop %v4110
    %v4126 = vmul.f32 1.0, %v4125
    %v4127 = vrcp.pop %v4111
    %v4128 = vmul.f32 1.0, %v4127
    %v4129 = vrcp.pop %v4112
    %v4130 = vmul.f32 1.0, %v4129
    %v4131 = vrcp.pop %v4113
    %v4132 = vmul.f32 1.0, %v4131
    %v4133 = vrcp.pop %v4114
    %v4134 = vmul.f32 1.0, %v4133
    %v4135 = vrcp.pop %v4115
    %v4136 = vmul.f32 1.0, %v4135
    %v4137 = vrcp.pop %v4116
    %v4138 = vmul.f32 1.0, %v4137
    %v4139 = vrcp.pop %v4117
    %v4140 = vmul.f32 1.0, %v4139
    %v4141 = vrcp.pop %v4118
    %v4142 = vmul.f32 1.0, %v4141
    %v4143 = vrcp.pop %v4119
    %v4144 = vmul.f32 1.0, %v4143
    %v4145 = vrcp.pop %v4120
    %v4146 = vmul.f32 1.0, %v4145
    %v4147 = vrcp.pop %v4121
    %v4148 = vmul.f32 1.0, %v4147
    %v4149 = vrcp.pop %v4122
    %v4150 = vmul.f32 1.0, %v4149
    %v4151 = vpack.c.bf16 %v4138, %v4124
    %v4152 = vpack.c.bf16 %v4140, %v4126
    %v4153 = vpack.c.bf16 %v4142, %v4128
    %v4154 = vpack.c.bf16 %v4144, %v4130
    %v4155 = vpack.c.bf16 %v4146, %v4132
    %v4156 = vpack.c.bf16 %v4148, %v4134
    %v4157 = vpack.c.bf16 %v4150, %v4136
    %v4165 = vunpack.c.l.b16 %v4151
    %v4166 = vunpack.c.l.b16 %v4152
    %v4167 = vunpack.c.l.b16 %v4153
    %v4168 = vunpack.c.l.b16 %v4154
    %v4169 = vunpack.c.l.b16 %v4155
    %v4170 = vunpack.c.l.b16 %v4156
    %v4171 = vunpack.c.l.b16 %v4157
    %v4172 = vunpack.c.h.b16 %v4151
    %v4173 = vunpack.c.h.b16 %v4152
    %v4174 = vunpack.c.h.b16 %v4153
    %v4175 = vunpack.c.h.b16 %v4154
    %v4176 = vunpack.c.h.b16 %v4155
    %v4177 = vunpack.c.h.b16 %v4156
    %v4178 = vunpack.c.h.b16 %v4157
    %v4179 = vpack.c.b16 %v4166, %v4165
    %v4180 = vpack.c.b16 %v4168, %v4167
    %v4181 = vpack.c.b16 %v4170, %v4169
    %v4182 = vpack.c.b16 %v4171, %v4171
    %v4183 = vpack.c.b16 %v4173, %v4172
    %v4184 = vpack.c.b16 %v4175, %v4174
    %v4185 = vpack.c.b16 %v4177, %v4176
    %v4186 = vpack.c.b16 %v4178, %v4178
    %4195 = vst [vmem:[#allocation2] sm:$0xff] %v4179
    %4196 = vst [vmem:[#allocation2 + $0x8] sm:$0xff] %v4180
    %4197 = vst [vmem:[#allocation2 + $0x10] sm:$0xff] %v4181
    %vm4198 = vcmask 125952
    %4199 = vst.msk [vmem:[#allocation2 + $0x18] sm:$0xf] %vm4198, %v4182
    %4200 = vst [vmem:[#allocation2 + $0x1c] sm:$0xff] %v4183
    %4201 = vst [vmem:[#allocation2 + $0x24] sm:$0xff] %v4184
    %4202 = vst [vmem:[#allocation2 + $0x2c] sm:$0xff] %v4185
    %4203 = vst.msk [vmem:[#allocation2 + $0x34] sm:$0xf] %vm4198, %v4186
    // Predicated region
    $region42: #{tpu_custom_call.1} parent=1 // pred_check
      _
    $region43: #{tpu_custom_call.1} parent=1 // pred_check_branch
      %4205 = sbr.rel (0) target = $region45
    $region44: #{tpu_custom_call.1} parent=1 // pred_region
      %s4207 = ssub.s32 896, 896
      %4208 = vsyncadd [#allocation3], %s4207
      %s4209 = sshll.u32 [#allocation2], 4
      %s4210 = int_to_ptr.vmem [resolvable:$true] %s4209
      %4215 = dma.vmem_to_hbm [thread:$0]  %s4210, 896, %s10, [#allocation3], 448, 448, 28
    $region45: #{tpu_custom_call.1} parent=1 // pred_fallthru
      _
    // Predicated region
    $region46: #{tpu_custom_call.1} parent=1 // pred_check
      _
    $region47: #{tpu_custom_call.1} parent=1 // pred_check_branch
      %4217 = sbr.rel (0) target = $region49
    $region48: #{tpu_custom_call.1} parent=1 // pred_region
      %4218 = dma.done [#allocation3], 896
    $region49: #{tpu_custom_call.1} parent=1 // pred_fallthru
      _
    %4219 = vsyncpa [#allocation3], 1

</llo_original>
